<compile_context>
chip_gen: v5e
topology: v5e:2x2
jax: 0.10.0
libtpu: 0.0.40
codegen_flags: <defaults>
</compile_context>

<pallas_src>
import jax
import jax.numpy as jnp
from jax.experimental import pallas as pl
from jax.experimental.pallas import tpu as pltpu

# ----------------------------- small ViT config -----------------------------
B         = 2
C_IN      = 3
IM_H      = IM_W = 16
PATCH     = 4
GRID_HW   = IM_H // PATCH              # 4
N_PATCH   = GRID_HW * GRID_HW          # 16
N_TOK     = N_PATCH + 1                # 17 (cls + patches)
N_TOK_PAD = 24                         # per-batch token block padded to 8-row multiple
PATCH_DIM = C_IN * PATCH * PATCH       # 48
D_MODEL   = 128
N_HEADS   = 2
HEAD_DIM  = D_MODEL // N_HEADS         # 64
D_FF      = 256
N_LAYERS  = 2
LN_EPS    = 1e-6
QK_COLS   = 2 * N_HEADS * 128          # 512: [q_h0 | q_h1 | k_h0 | k_h1] lane groups

_SQRT_HALF = 0.7071067811865476


def _gelu(x):
    # exact (erf-based) GELU, matching torch nn.GELU default
    return 0.5 * x * (1.0 + jax.lax.erf(x * _SQRT_HALF))


def _layer_norm(v, w, b):
    mu = jnp.mean(v, axis=-1, keepdims=True)
    var = jnp.mean(jnp.square(v - mu), axis=-1, keepdims=True)
    return (v - mu) * jax.lax.rsqrt(var + LN_EPS) * w + b


# ----------------------------- parameter packing ----------------------------
def _pack_rows(entries, n_cols, align=16, dtype=jnp.bfloat16):
    """Stack 2-D arrays into one (rows, n_cols) bf16 slab.

    Each entry is zero-padded to n_cols columns and its row count padded to a
    multiple of `align` (16 = bf16 sublane tile) so every in-kernel slice starts
    on a tile boundary.  Returns (slab, {name: (row_start, n_real_rows)}).
    """
    pieces, offsets, cur = [], {}, 0
    for name, arr in entries:
        arr = jnp.asarray(arr, jnp.float32)
        r, c = arr.shape
        assert c <= n_cols, (name, arr.shape, n_cols)
        arr = jnp.pad(arr, ((0, (-r) % align), (0, n_cols - c)))
        offsets[name] = (cur, r)
        pieces.append(arr)
        cur += arr.shape[0]
    return jnp.concatenate(pieces, axis=0).astype(dtype), offsets


def pack_params(p, batch):
    scale = HEAD_DIM ** -0.5

    # Additive token table: row 0 = cls + pos[0], rows 1..16 = b_pe + pos[1+i],
    # rows 17..23 = 0 (padding).  Tiled over batch so the kernel adds it directly.
    add = jnp.zeros((N_TOK_PAD, D_MODEL), jnp.float32)
    add = add.at[0].set((p["cls"] + p["pos"][0:1, :])[0])
    add = add.at[1:1 + N_PATCH].set(p["b_pe"] + p["pos"][1:, :])
    add_full = jnp.tile(add, (batch, 1))                       # (batch*24, 128)

    # patch-projection weight with contraction dim zero-padded 48 -> 128
    w_pe_pad = jnp.pad(p["w_pe"], ((0, D_MODEL - PATCH_DIM), (0, 0)))

    entries_a = [
        ("w_pe", w_pe_pad), ("add", add_full),
        ("lnf_w", p["lnf_w"]), ("lnf_b", p["lnf_b"]),
    ]
    entries_b = []
    for l, lp in enumerate(p["layers"]):
        wq = lp["wqkv"][:, 0:D_MODEL] * scale                  # fold attn scale into Q
        wk = lp["wqkv"][:, D_MODEL:2 * D_MODEL]
        wv = lp["wqkv"][:, 2 * D_MODEL:3 * D_MODEL]
        bq = lp["bqkv"][:, 0:D_MODEL] * scale
        bk = lp["bqkv"][:, D_MODEL:2 * D_MODEL]
        bv = lp["bqkv"][:, 2 * D_MODEL:3 * D_MODEL]

        def head_groups(w):
            # (rows, 128) -> (rows, N_HEADS*128): each head's 64 cols zero-padded
            # to its own 128-lane group so per-head slices are lane-group aligned.
            pieces = []
            for h in range(N_HEADS):
                blk = w[:, h * HEAD_DIM:(h + 1) * HEAD_DIM]
                pieces.append(jnp.pad(blk, ((0, 0), (0, 128 - HEAD_DIM))))
            return jnp.concatenate(pieces, axis=1)

        w_qk = jnp.concatenate([head_groups(wq), head_groups(wk)], axis=1)  # (128,512)
        b_qk = jnp.concatenate([head_groups(bq), head_groups(bk)], axis=1)  # (1,512)

        entries_a += [
            (f"l{l}_ln1_w", lp["ln1_w"]), (f"l{l}_ln1_b", lp["ln1_b"]),
            (f"l{l}_wv", wv), (f"l{l}_bv", bv),
            (f"l{l}_wo", lp["wo"]), (f"l{l}_bo", lp["bo"]),
            (f"l{l}_ln2_w", lp["ln2_w"]), (f"l{l}_ln2_b", lp["ln2_b"]),
            (f"l{l}_w2", lp["w2"]), (f"l{l}_b2", lp["b2"]),
        ]
        entries_b += [
            (f"l{l}_wqk", w_qk), (f"l{l}_bqk", b_qk),
            (f"l{l}_w1", lp["w1"]), (f"l{l}_b1", lp["b1"]),
        ]
    slab_a, off_a = _pack_rows(entries_a, D_MODEL)   # 128-column slab
    slab_b, off_b = _pack_rows(entries_b, QK_COLS)   # 512-column slab
    return slab_a, off_a, slab_b, off_b


# --------------------------------- kernel -----------------------------------
def make_kernel(off_a, off_b, batch):
    def kernel(x_ref, a_ref, b_ref, out_ref):
        f32, bf16 = jnp.float32, jnp.bfloat16

        def A(name):
            r, n = off_a[name]
            return a_ref[r:r + n, :]

        def Bm(name, cols=QK_COLS):
            r, n = off_b[name]
            return b_ref[r:r + n, :cols]

        # ---- patch embedding + token/positional additive table ----
        # cls / pad rows of x_ref are zero, so they pass through the matmul
        # untouched and pick up their values purely from the "add" table.
        x = jnp.dot(x_ref[...], A("w_pe"), preferred_element_type=f32)
        x = x + A("add").astype(f32)                              # (batch*24, 128) f32

        # mask for the 24-17 padded key columns inside each per-batch block
        key_col = jax.lax.broadcasted_iota(jnp.int32, (N_TOK_PAD, N_TOK_PAD), 1)
        key_mask = key_col < N_TOK
        lane = jax.lax.broadcasted_iota(jnp.int32, (N_TOK_PAD, D_MODEL), 1)

        for l in range(N_LAYERS):
            # ---------------- pre-norm fused multi-head self-attention ----------
            y = _layer_norm(x, A(f"l{l}_ln1_w"), A(f"l{l}_ln1_b")).astype(bf16)
            # one 512-wide Q|K matmul (scale pre-folded) + one 128-wide V matmul
            qk = jnp.dot(y, Bm(f"l{l}_wqk"), preferred_element_type=f32) \
                 + Bm(f"l{l}_bqk").astype(f32)                    # (R, 512)
            v = jnp.dot(y, A(f"l{l}_wv"), preferred_element_type=f32) \
                + A(f"l{l}_bv").astype(f32)                       # (R, 128)

            per_batch = []
            for b in range(batch):            # attention is block-diagonal per batch
                lo = b * N_TOK_PAD            # 24-row blocks -> 8-aligned slices
                vb = v[lo:lo + N_TOK_PAD, :].astype(bf16)
                o = None
                for h in range(N_HEADS):
                    qh = qk[lo:lo + N_TOK_PAD, h * 128:(h + 1) * 128]
                    kh = qk[lo:lo + N_TOK_PAD,
                            (N_HEADS + h) * 128:(N_HEADS + h + 1) * 128]
                    s = jax.lax.dot_general(
                        qh.astype(bf16), kh.astype(bf16),
                        (((1,), (1,)), ((), ())),
                        preferred_element_type=f32)               # (24, 24)
                    s = jnp.where(key_mask, s, -1e9)              # mask pad keys
                    s = s - jnp.max(s, axis=-1, keepdims=True)
                    e = jnp.exp(s)
                    att = e * pl.reciprocal(
                        jnp.sum(e, axis=-1, keepdims=True), approx=True)
                    oh = jnp.dot(att.astype(bf16), vb,
                                 preferred_element_type=f32)      # (24, 128)
                    # head h's real values live in lanes h*64:(h+1)*64
                    o = oh if o is None else jnp.where(lane < h * HEAD_DIM, o, oh)
                # ONE full-width output projection per batch
                proj = jnp.dot(o.astype(bf16), A(f"l{l}_wo"),
                               preferred_element_type=f32)        # (24, 128)
                per_batch.append(proj)
            attn = jnp.concatenate(per_batch, axis=0)             # aligned 24-row blocks
            x = x + attn + A(f"l{l}_bo").astype(f32)

            # ------------------------ pre-norm MLP (GELU) -----------------------
            y = _layer_norm(x, A(f"l{l}_ln2_w"), A(f"l{l}_ln2_b")).astype(bf16)
            h1 = jnp.dot(y, Bm(f"l{l}_w1", D_FF), preferred_element_type=f32) \
                 + Bm(f"l{l}_b1", D_FF).astype(f32)
            h1 = _gelu(h1).astype(bf16)
            x = x + jnp.dot(h1, A(f"l{l}_w2"), preferred_element_type=f32) \
                  + A(f"l{l}_b2").astype(f32)

        # ---- final encoder LayerNorm; output is lane-dense (last dim = 128) ----
        out_ref[...] = _layer_norm(x, A("lnf_w"), A("lnf_b")).astype(out_ref.dtype)

    return kernel


# -------------------------------- wrapper ------------------------------------
def patchify(images):
    """(B, C, H, W) -> (B, N_PATCH, C*P*P); pure layout (im2col for the conv proj)."""
    bsz, c, hh, ww = images.shape
    gh, gw = hh // PATCH, ww // PATCH
    x = images.reshape(bsz, c, gh, PATCH, gw, PATCH)
    x = x.transpose(0, 2, 4, 1, 3, 5)
    return x.reshape(bsz, gh * gw, c * PATCH * PATCH)


def build_x_in(images):
    """Host-side layout: (B*24, 128) bf16; row 24b is the (zero) cls slot,
    rows 24b+1..24b+16 hold patch pixels zero-padded 48 -> 128, rest is pad."""
    bsz = images.shape[0]
    patches = patchify(images)                                    # (B, 16, 48)
    patches = jnp.pad(patches, ((0, 0), (0, 0), (0, D_MODEL - PATCH_DIM)))
    x = jnp.zeros((bsz, N_TOK_PAD, D_MODEL), jnp.float32)
    x = x.at[:, 1:1 + N_PATCH, :].set(patches)
    return x.reshape(bsz * N_TOK_PAD, D_MODEL).astype(jnp.bfloat16)


def mae_decoder_forward(images, slab_a, off_a, slab_b, off_b):
    bsz = images.shape[0]
    rows = bsz * N_TOK_PAD
    x_in = build_x_in(images)
    kernel = make_kernel(off_a, off_b, bsz)
    out = pl.pallas_call(
        kernel,
        out_shape=jax.ShapeDtypeStruct((rows, D_MODEL), jnp.float32),
        grid=(1,),                                   # batch folded: single grid step
        in_specs=[
            pl.BlockSpec((rows, D_MODEL), lambda i: (0, 0)),
            pl.BlockSpec(slab_a.shape, lambda i: (0, 0)),
            pl.BlockSpec(slab_b.shape, lambda i: (0, 0)),
        ],
        out_specs=pl.BlockSpec((rows, D_MODEL), lambda i: (0, 0)),
        compiler_params=pltpu.CompilerParams(dimension_semantics=("arbitrary",)),
    )(x_in, slab_a, slab_b)
    # drop the 7 pad rows per batch; reshape is free, output stays lane-dense
    return out.reshape(bsz, N_TOK_PAD, D_MODEL)[:, :N_TOK, :]


# ----------------------------- params & reference ----------------------------
def init_params(key):
    f32 = jnp.float32
    kit = iter(jax.random.split(key, 64))

    def nrm(shape, scale):
        return (scale * jax.random.normal(next(kit), shape)).astype(f32)

    p = {
        "w_pe": nrm((PATCH_DIM, D_MODEL), PATCH_DIM ** -0.5),
        "b_pe": nrm((1, D_MODEL), 0.02),
        "cls": nrm((1, D_MODEL), 0.02),
        "pos": nrm((N_TOK, D_MODEL), 0.02),
        "lnf_w": jnp.ones((1, D_MODEL), f32),
        "lnf_b": jnp.zeros((1, D_MODEL), f32),
        "layers": [],
    }
    for _ in range(N_LAYERS):
        p["layers"].append({
            "ln1_w": jnp.ones((1, D_MODEL), f32),
            "ln1_b": jnp.zeros((1, D_MODEL), f32),
            "wqkv": nrm((D_MODEL, 3 * D_MODEL), D_MODEL ** -0.5),
            "bqkv": nrm((1, 3 * D_MODEL), 0.02),
            "wo": nrm((D_MODEL, D_MODEL), D_MODEL ** -0.5),
            "bo": nrm((1, D_MODEL), 0.02),
            "ln2_w": jnp.ones((1, D_MODEL), f32),
            "ln2_b": jnp.zeros((1, D_MODEL), f32),
            "w1": nrm((D_MODEL, D_FF), D_MODEL ** -0.5),
            "b1": nrm((1, D_FF), 0.02),
            "w2": nrm((D_FF, D_MODEL), D_FF ** -0.5),
            "b2": nrm((1, D_MODEL), 0.02),
        })
    return p


def reference_forward(images, p):
    """Pure-JAX fp32 ViT encode with identical math (for correctness check)."""
    bsz = images.shape[0]
    xp = patchify(images) @ p["w_pe"] + p["b_pe"]                 # (B, NP, D)
    cls = jnp.broadcast_to(p["cls"][None, :, :], (bsz, 1, D_MODEL))
    x = jnp.concatenate([cls, xp], axis=1) + p["pos"][None, :, :]
    for lp in p["layers"]:
        y = _layer_norm(x, lp["ln1_w"], lp["ln1_b"])
        qkv = y @ lp["wqkv"] + lp["bqkv"]
        q, k, v = jnp.split(qkv, 3, axis=-1)

        def heads(t):
            return t.reshape(bsz, N_TOK, N_HEADS, HEAD_DIM).transpose(0, 2, 1, 3)

        q, k, v = heads(q), heads(k), heads(v)
        att = jnp.einsum("bhqd,bhkd->bhqk", q, k) * (HEAD_DIM ** -0.5)
        att = jax.nn.softmax(att, axis=-1)
        o = jnp.einsum("bhqk,bhkd->bhqd", att, v)
        o = o.transpose(0, 2, 1, 3).reshape(bsz, N_TOK, D_MODEL)
        x = x + o @ lp["wo"] + lp["bo"]
        y = _layer_norm(x, lp["ln2_w"], lp["ln2_b"])
        x = x + _gelu(y @ lp["w1"] + lp["b1"]) @ lp["w2"] + lp["b2"]
    return _layer_norm(x, p["lnf_w"], p["lnf_b"])


if __name__ == "__main__":
    key = jax.random.PRNGKey(0)
    k_img, k_par = jax.random.split(key)
    images = jax.random.normal(k_img, (B, C_IN, IM_H, IM_W), jnp.float32)
    params = init_params(k_par)
    slab_a, off_a, slab_b, off_b = pack_params(params, B)

    x_encoded = mae_decoder_forward(images, slab_a, off_a, slab_b, off_b)
    x_encoded = jax.block_until_ready(x_encoded)
    assert x_encoded.shape == (B, N_TOK, D_MODEL), x_encoded.shape

    ref = reference_forward(images, params)
    err = float(jnp.max(jnp.abs(x_encoded - ref)))
    # Tolerance reflects bf16 MXU operands + EUP approx reciprocal over a
    # 2-layer transformer (the fp32 variant of this kernel matched at < 2e-3);
    # outputs are LayerNorm'd (~unit scale), so this is a ~1-2% relative check.
    if err > 7.5e-2:
        raise AssertionError(f"Pallas kernel mismatch vs JAX reference: {err}")
    print("KERNEL_OK")
</pallas_src>

<mosaic_0001>
module attributes {stable_mosaic.version = 11 : i64} {
  func.func @kernel(%arg0: i32, %arg1: memref<48x128xbf16, #tpu.memory_space<vmem>>, %arg2: memref<1456x128xbf16, #tpu.memory_space<vmem>>, %arg3: memref<576x512xbf16, #tpu.memory_space<vmem>>, %arg4: memref<48x128xf32, #tpu.memory_space<vmem>>) attributes {dimension_semantics = [#tpu.dimension_semantics<arbitrary>], iteration_bounds = array<i64: 1>, scalar_prefetch = 0 : i64, scratch_operands = 0 : i64, tpu.core_type = #tpu.core_type<tc>, window_params = [{pipeline_mode = #tpu.pipeline_mode<synchronous>, transform_indices = @transform_0, window_bounds = array<i64: 48, 128>}, {pipeline_mode = #tpu.pipeline_mode<synchronous>, transform_indices = @transform_1, window_bounds = array<i64: 1456, 128>}, {pipeline_mode = #tpu.pipeline_mode<synchronous>, transform_indices = @transform_2, window_bounds = array<i64: 576, 512>}, {pipeline_mode = #tpu.pipeline_mode<synchronous>, transform_indices = @transform_3, window_bounds = array<i64: 48, 128>}]} {
    %c0 = arith.constant 0 : index
    %c0_0 = arith.constant 0 : index
    %0 = vector.load %arg1[%c0, %c0_0] : memref<48x128xbf16, #tpu.memory_space<vmem>>, vector<48x128xbf16>
    %c0_1 = arith.constant 0 : index
    %c0_2 = arith.constant 0 : index
    %1 = vector.load %arg2[%c0_1, %c0_2] : memref<1456x128xbf16, #tpu.memory_space<vmem>>, vector<128x128xbf16>
    %cst = arith.constant dense<0.000000e+00> : vector<48x128xf32>
    %2 = tpu.matmul %0, %1, %cst {dimension_numbers = #tpu.dot_dimension_numbers<[1], [0], [0], [1], [0, 0, 1, 1], [], []>} : vector<48x128xbf16>, vector<128x128xbf16>, vector<48x128xf32> -> vector<48x128xf32>
    %c128 = arith.constant 128 : index
    %c0_3 = arith.constant 0 : index
    %3 = vector.load %arg2[%c128, %c0_3] : memref<1456x128xbf16, #tpu.memory_space<vmem>>, vector<48x128xbf16>
    %4 = arith.extf %3 : vector<48x128xbf16> to vector<48x128xf32>
    %5 = arith.addf %2, %4 : vector<48x128xf32>
    %6 = tpu.iota {dimensions = array<i32: 1>} : vector<24x24xi32>
    %c17_i32 = arith.constant 17 : i32
    %7 = vector.broadcast %c17_i32 : i32 to vector<24x24xi32>
    %8 = arith.cmpi slt, %6, %7 : vector<24x24xi32>
    %9 = tpu.iota {dimensions = array<i32: 1>} : vector<24x128xi32>
    %c208 = arith.constant 208 : index
    %c0_4 = arith.constant 0 : index
    %10 = vector.load %arg2[%c208, %c0_4] : memref<1456x128xbf16, #tpu.memory_space<vmem>>, vector<1x128xbf16>
    %c224 = arith.constant 224 : index
    %c0_5 = arith.constant 0 : index
    %11 = vector.load %arg2[%c224, %c0_5] : memref<1456x128xbf16, #tpu.memory_space<vmem>>, vector<1x128xbf16>
    %cst_6 = arith.constant dense<0.000000e+00> : vector<48xf32>
    %12 = vector.multi_reduction <add>, %5, %cst_6 [1] : vector<48x128xf32> to vector<48xf32>
    %13 = vector.shape_cast %12 : vector<48xf32> to vector<48x1xf32>
    %cst_7 = arith.constant 1.280000e+02 : f32
    %14 = vector.broadcast %cst_7 : f32 to vector<48x1xf32>
    %15 = arith.divf %13, %14 : vector<48x1xf32>
    %16 = vector.broadcast %15 : vector<48x1xf32> to vector<48x128xf32>
    %17 = arith.subf %5, %16 : vector<48x128xf32>
    %18 = arith.mulf %17, %17 : vector<48x128xf32>
    %cst_8 = arith.constant dense<0.000000e+00> : vector<48xf32>
    %19 = vector.multi_reduction <add>, %18, %cst_8 [1] : vector<48x128xf32> to vector<48xf32>
    %20 = vector.shape_cast %19 : vector<48xf32> to vector<48x1xf32>
    %cst_9 = arith.constant 1.280000e+02 : f32
    %21 = vector.broadcast %cst_9 : f32 to vector<48x1xf32>
    %22 = arith.divf %20, %21 : vector<48x1xf32>
    %23 = vector.broadcast %15 : vector<48x1xf32> to vector<48x128xf32>
    %24 = arith.subf %5, %23 : vector<48x128xf32>
    %cst_10 = arith.constant 9.99999997E-7 : f32
    %25 = vector.broadcast %cst_10 : f32 to vector<48x1xf32>
    %26 = arith.addf %22, %25 : vector<48x1xf32>
    %27 = math.rsqrt %26 : vector<48x1xf32>
    %28 = vector.broadcast %27 : vector<48x1xf32> to vector<48x128xf32>
    %29 = arith.mulf %24, %28 : vector<48x128xf32>
    %30 = arith.extf %10 : vector<1x128xbf16> to vector<1x128xf32>
    %31 = vector.broadcast %30 : vector<1x128xf32> to vector<48x128xf32>
    %32 = arith.mulf %29, %31 : vector<48x128xf32>
    %33 = arith.extf %11 : vector<1x128xbf16> to vector<1x128xf32>
    %34 = vector.broadcast %33 : vector<1x128xf32> to vector<48x128xf32>
    %35 = arith.addf %32, %34 : vector<48x128xf32>
    %36 = arith.truncf %35 : vector<48x128xf32> to vector<48x128xbf16>
    %c0_11 = arith.constant 0 : index
    %c0_12 = arith.constant 0 : index
    %37 = vector.load %arg3[%c0_11, %c0_12] : memref<576x512xbf16, #tpu.memory_space<vmem>>, vector<128x512xbf16>
    %cst_13 = arith.constant dense<0.000000e+00> : vector<48x512xf32>
    %38 = tpu.matmul %36, %37, %cst_13 {dimension_numbers = #tpu.dot_dimension_numbers<[1], [0], [0], [1], [0, 0, 1, 1], [], []>} : vector<48x128xbf16>, vector<128x512xbf16>, vector<48x512xf32> -> vector<48x512xf32>
    %c128_14 = arith.constant 128 : index
    %c0_15 = arith.constant 0 : index
    %39 = vector.load %arg3[%c128_14, %c0_15] : memref<576x512xbf16, #tpu.memory_space<vmem>>, vector<1x512xbf16>
    %40 = arith.extf %39 : vector<1x512xbf16> to vector<1x512xf32>
    %41 = vector.broadcast %40 : vector<1x512xf32> to vector<48x512xf32>
    %42 = arith.addf %38, %41 : vector<48x512xf32>
    %c240 = arith.constant 240 : index
    %c0_16 = arith.constant 0 : index
    %43 = vector.load %arg2[%c240, %c0_16] : memref<1456x128xbf16, #tpu.memory_space<vmem>>, vector<128x128xbf16>
    %cst_17 = arith.constant dense<0.000000e+00> : vector<48x128xf32>
    %44 = tpu.matmul %36, %43, %cst_17 {dimension_numbers = #tpu.dot_dimension_numbers<[1], [0], [0], [1], [0, 0, 1, 1], [], []>} : vector<48x128xbf16>, vector<128x128xbf16>, vector<48x128xf32> -> vector<48x128xf32>
    %c368 = arith.constant 368 : index
    %c0_18 = arith.constant 0 : index
    %45 = vector.load %arg2[%c368, %c0_18] : memref<1456x128xbf16, #tpu.memory_space<vmem>>, vector<1x128xbf16>
    %46 = arith.extf %45 : vector<1x128xbf16> to vector<1x128xf32>
    %47 = vector.broadcast %46 : vector<1x128xf32> to vector<48x128xf32>
    %48 = arith.addf %44, %47 : vector<48x128xf32>
    %49 = vector.extract_strided_slice %48 {offsets = [0, 0], sizes = [24, 128], strides = [1, 1]} : vector<48x128xf32> to vector<24x128xf32>
    %50 = arith.truncf %49 : vector<24x128xf32> to vector<24x128xbf16>
    %51 = vector.extract_strided_slice %42 {offsets = [0, 0], sizes = [24, 128], strides = [1, 1]} : vector<48x512xf32> to vector<24x128xf32>
    %52 = vector.extract_strided_slice %42 {offsets = [0, 256], sizes = [24, 128], strides = [1, 1]} : vector<48x512xf32> to vector<24x128xf32>
    %53 = arith.truncf %51 : vector<24x128xf32> to vector<24x128xbf16>
    %54 = arith.truncf %52 : vector<24x128xf32> to vector<24x128xbf16>
    %cst_19 = arith.constant dense<0.000000e+00> : vector<24x24xf32>
    %55 = tpu.matmul %53, %54, %cst_19 {dimension_numbers = #tpu.dot_dimension_numbers<[1], [1], [0], [0], [0, 0, 1, 0], [], []>} : vector<24x128xbf16>, vector<24x128xbf16>, vector<24x24xf32> -> vector<24x24xf32>
    %cst_20 = arith.constant -1.000000e+09 : f32
    %56 = vector.broadcast %cst_20 : f32 to vector<24x24xf32>
    %57 = arith.select %8, %55, %56 : vector<24x24xi1>, vector<24x24xf32>
    %cst_21 = arith.constant dense<0xFF800000> : vector<24xf32>
    %58 = vector.multi_reduction <maximumf>, %57, %cst_21 [1] : vector<24x24xf32> to vector<24xf32>
    %59 = vector.shape_cast %58 : vector<24xf32> to vector<24x1xf32>
    %60 = vector.broadcast %59 : vector<24x1xf32> to vector<24x24xf32>
    %61 = arith.subf %57, %60 : vector<24x24xf32>
    %62 = math.exp %61 : vector<24x24xf32>
    %cst_22 = arith.constant dense<0.000000e+00> : vector<24xf32>
    %63 = vector.multi_reduction <add>, %62, %cst_22 [1] : vector<24x24xf32> to vector<24xf32>
    %64 = vector.shape_cast %63 : vector<24xf32> to vector<24x1xf32>
    %65 = tpu.reciprocal %64 {approx = true} : vector<24x1xf32> -> vector<24x1xf32>
    %66 = vector.broadcast %65 : vector<24x1xf32> to vector<24x24xf32>
    %67 = arith.mulf %62, %66 : vector<24x24xf32>
    %68 = arith.truncf %67 : vector<24x24xf32> to vector<24x24xbf16>
    %cst_23 = arith.constant dense<0.000000e+00> : vector<24x128xf32>
    %69 = tpu.matmul %68, %50, %cst_23 {dimension_numbers = #tpu.dot_dimension_numbers<[1], [0], [0], [1], [0, 0, 1, 1], [], []>} : vector<24x24xbf16>, vector<24x128xbf16>, vector<24x128xf32> -> vector<24x128xf32>
    %70 = vector.extract_strided_slice %42 {offsets = [0, 128], sizes = [24, 128], strides = [1, 1]} : vector<48x512xf32> to vector<24x128xf32>
    %71 = vector.extract_strided_slice %42 {offsets = [0, 384], sizes = [24, 128], strides = [1, 1]} : vector<48x512xf32> to vector<24x128xf32>
    %72 = arith.truncf %70 : vector<24x128xf32> to vector<24x128xbf16>
    %73 = arith.truncf %71 : vector<24x128xf32> to vector<24x128xbf16>
    %cst_24 = arith.constant dense<0.000000e+00> : vector<24x24xf32>
    %74 = tpu.matmul %72, %73, %cst_24 {dimension_numbers = #tpu.dot_dimension_numbers<[1], [1], [0], [0], [0, 0, 1, 0], [], []>} : vector<24x128xbf16>, vector<24x128xbf16>, vector<24x24xf32> -> vector<24x24xf32>
    %cst_25 = arith.constant -1.000000e+09 : f32
    %75 = vector.broadcast %cst_25 : f32 to vector<24x24xf32>
    %76 = arith.select %8, %74, %75 : vector<24x24xi1>, vector<24x24xf32>
    %cst_26 = arith.constant dense<0xFF800000> : vector<24xf32>
    %77 = vector.multi_reduction <maximumf>, %76, %cst_26 [1] : vector<24x24xf32> to vector<24xf32>
    %78 = vector.shape_cast %77 : vector<24xf32> to vector<24x1xf32>
    %79 = vector.broadcast %78 : vector<24x1xf32> to vector<24x24xf32>
    %80 = arith.subf %76, %79 : vector<24x24xf32>
    %81 = math.exp %80 : vector<24x24xf32>
    %cst_27 = arith.constant dense<0.000000e+00> : vector<24xf32>
    %82 = vector.multi_reduction <add>, %81, %cst_27 [1] : vector<24x24xf32> to vector<24xf32>
    %83 = vector.shape_cast %82 : vector<24xf32> to vector<24x1xf32>
    %84 = tpu.reciprocal %83 {approx = true} : vector<24x1xf32> -> vector<24x1xf32>
    %85 = vector.broadcast %84 : vector<24x1xf32> to vector<24x24xf32>
    %86 = arith.mulf %81, %85 : vector<24x24xf32>
    %87 = arith.truncf %86 : vector<24x24xf32> to vector<24x24xbf16>
    %cst_28 = arith.constant dense<0.000000e+00> : vector<24x128xf32>
    %88 = tpu.matmul %87, %50, %cst_28 {dimension_numbers = #tpu.dot_dimension_numbers<[1], [0], [0], [1], [0, 0, 1, 1], [], []>} : vector<24x24xbf16>, vector<24x128xbf16>, vector<24x128xf32> -> vector<24x128xf32>
    %c64_i32 = arith.constant 64 : i32
    %89 = vector.broadcast %c64_i32 : i32 to vector<24x128xi32>
    %90 = arith.cmpi slt, %9, %89 : vector<24x128xi32>
    %91 = arith.select %90, %69, %88 : vector<24x128xi1>, vector<24x128xf32>
    %92 = arith.truncf %91 : vector<24x128xf32> to vector<24x128xbf16>
    %c384 = arith.constant 384 : index
    %c0_29 = arith.constant 0 : index
    %93 = vector.load %arg2[%c384, %c0_29] : memref<1456x128xbf16, #tpu.memory_space<vmem>>, vector<128x128xbf16>
    %cst_30 = arith.constant dense<0.000000e+00> : vector<24x128xf32>
    %94 = tpu.matmul %92, %93, %cst_30 {dimension_numbers = #tpu.dot_dimension_numbers<[1], [0], [0], [1], [0, 0, 1, 1], [], []>} : vector<24x128xbf16>, vector<128x128xbf16>, vector<24x128xf32> -> vector<24x128xf32>
    %95 = vector.extract_strided_slice %48 {offsets = [24, 0], sizes = [24, 128], strides = [1, 1]} : vector<48x128xf32> to vector<24x128xf32>
    %96 = arith.truncf %95 : vector<24x128xf32> to vector<24x128xbf16>
    %97 = vector.extract_strided_slice %42 {offsets = [24, 0], sizes = [24, 128], strides = [1, 1]} : vector<48x512xf32> to vector<24x128xf32>
    %98 = vector.extract_strided_slice %42 {offsets = [24, 256], sizes = [24, 128], strides = [1, 1]} : vector<48x512xf32> to vector<24x128xf32>
    %99 = arith.truncf %97 : vector<24x128xf32> to vector<24x128xbf16>
    %100 = arith.truncf %98 : vector<24x128xf32> to vector<24x128xbf16>
    %cst_31 = arith.constant dense<0.000000e+00> : vector<24x24xf32>
    %101 = tpu.matmul %99, %100, %cst_31 {dimension_numbers = #tpu.dot_dimension_numbers<[1], [1], [0], [0], [0, 0, 1, 0], [], []>} : vector<24x128xbf16>, vector<24x128xbf16>, vector<24x24xf32> -> vector<24x24xf32>
    %cst_32 = arith.constant -1.000000e+09 : f32
    %102 = vector.broadcast %cst_32 : f32 to vector<24x24xf32>
    %103 = arith.select %8, %101, %102 : vector<24x24xi1>, vector<24x24xf32>
    %cst_33 = arith.constant dense<0xFF800000> : vector<24xf32>
    %104 = vector.multi_reduction <maximumf>, %103, %cst_33 [1] : vector<24x24xf32> to vector<24xf32>
    %105 = vector.shape_cast %104 : vector<24xf32> to vector<24x1xf32>
    %106 = vector.broadcast %105 : vector<24x1xf32> to vector<24x24xf32>
    %107 = arith.subf %103, %106 : vector<24x24xf32>
    %108 = math.exp %107 : vector<24x24xf32>
    %cst_34 = arith.constant dense<0.000000e+00> : vector<24xf32>
    %109 = vector.multi_reduction <add>, %108, %cst_34 [1] : vector<24x24xf32> to vector<24xf32>
    %110 = vector.shape_cast %109 : vector<24xf32> to vector<24x1xf32>
    %111 = tpu.reciprocal %110 {approx = true} : vector<24x1xf32> -> vector<24x1xf32>
    %112 = vector.broadcast %111 : vector<24x1xf32> to vector<24x24xf32>
    %113 = arith.mulf %108, %112 : vector<24x24xf32>
    %114 = arith.truncf %113 : vector<24x24xf32> to vector<24x24xbf16>
    %cst_35 = arith.constant dense<0.000000e+00> : vector<24x128xf32>
    %115 = tpu.matmul %114, %96, %cst_35 {dimension_numbers = #tpu.dot_dimension_numbers<[1], [0], [0], [1], [0, 0, 1, 1], [], []>} : vector<24x24xbf16>, vector<24x128xbf16>, vector<24x128xf32> -> vector<24x128xf32>
    %116 = vector.extract_strided_slice %42 {offsets = [24, 128], sizes = [24, 128], strides = [1, 1]} : vector<48x512xf32> to vector<24x128xf32>
    %117 = vector.extract_strided_slice %42 {offsets = [24, 384], sizes = [24, 128], strides = [1, 1]} : vector<48x512xf32> to vector<24x128xf32>
    %118 = arith.truncf %116 : vector<24x128xf32> to vector<24x128xbf16>
    %119 = arith.truncf %117 : vector<24x128xf32> to vector<24x128xbf16>
    %cst_36 = arith.constant dense<0.000000e+00> : vector<24x24xf32>
    %120 = tpu.matmul %118, %119, %cst_36 {dimension_numbers = #tpu.dot_dimension_numbers<[1], [1], [0], [0], [0, 0, 1, 0], [], []>} : vector<24x128xbf16>, vector<24x128xbf16>, vector<24x24xf32> -> vector<24x24xf32>
    %cst_37 = arith.constant -1.000000e+09 : f32
    %121 = vector.broadcast %cst_37 : f32 to vector<24x24xf32>
    %122 = arith.select %8, %120, %121 : vector<24x24xi1>, vector<24x24xf32>
    %cst_38 = arith.constant dense<0xFF800000> : vector<24xf32>
    %123 = vector.multi_reduction <maximumf>, %122, %cst_38 [1] : vector<24x24xf32> to vector<24xf32>
    %124 = vector.shape_cast %123 : vector<24xf32> to vector<24x1xf32>
    %125 = vector.broadcast %124 : vector<24x1xf32> to vector<24x24xf32>
    %126 = arith.subf %122, %125 : vector<24x24xf32>
    %127 = math.exp %126 : vector<24x24xf32>
    %cst_39 = arith.constant dense<0.000000e+00> : vector<24xf32>
    %128 = vector.multi_reduction <add>, %127, %cst_39 [1] : vector<24x24xf32> to vector<24xf32>
    %129 = vector.shape_cast %128 : vector<24xf32> to vector<24x1xf32>
    %130 = tpu.reciprocal %129 {approx = true} : vector<24x1xf32> -> vector<24x1xf32>
    %131 = vector.broadcast %130 : vector<24x1xf32> to vector<24x24xf32>
    %132 = arith.mulf %127, %131 : vector<24x24xf32>
    %133 = arith.truncf %132 : vector<24x24xf32> to vector<24x24xbf16>
    %cst_40 = arith.constant dense<0.000000e+00> : vector<24x128xf32>
    %134 = tpu.matmul %133, %96, %cst_40 {dimension_numbers = #tpu.dot_dimension_numbers<[1], [0], [0], [1], [0, 0, 1, 1], [], []>} : vector<24x24xbf16>, vector<24x128xbf16>, vector<24x128xf32> -> vector<24x128xf32>
    %c64_i32_41 = arith.constant 64 : i32
    %135 = vector.broadcast %c64_i32_41 : i32 to vector<24x128xi32>
    %136 = arith.cmpi slt, %9, %135 : vector<24x128xi32>
    %137 = arith.select %136, %115, %134 : vector<24x128xi1>, vector<24x128xf32>
    %138 = arith.truncf %137 : vector<24x128xf32> to vector<24x128xbf16>
    %c384_42 = arith.constant 384 : index
    %c0_43 = arith.constant 0 : index
    %139 = vector.load %arg2[%c384_42, %c0_43] : memref<1456x128xbf16, #tpu.memory_space<vmem>>, vector<128x128xbf16>
    %cst_44 = arith.constant dense<0.000000e+00> : vector<24x128xf32>
    %140 = tpu.matmul %138, %139, %cst_44 {dimension_numbers = #tpu.dot_dimension_numbers<[1], [0], [0], [1], [0, 0, 1, 1], [], []>} : vector<24x128xbf16>, vector<128x128xbf16>, vector<24x128xf32> -> vector<24x128xf32>
    %141 = tpu.concatenate %94, %140 in 0 : vector<24x128xf32>, vector<24x128xf32> -> vector<48x128xf32>
    %142 = arith.addf %5, %141 : vector<48x128xf32>
    %c512 = arith.constant 512 : index
    %c0_45 = arith.constant 0 : index
    %143 = vector.load %arg2[%c512, %c0_45] : memref<1456x128xbf16, #tpu.memory_space<vmem>>, vector<1x128xbf16>
    %144 = arith.extf %143 : vector<1x128xbf16> to vector<1x128xf32>
    %145 = vector.broadcast %144 : vector<1x128xf32> to vector<48x128xf32>
    %146 = arith.addf %142, %145 : vector<48x128xf32>
    %c528 = arith.constant 528 : index
    %c0_46 = arith.constant 0 : index
    %147 = vector.load %arg2[%c528, %c0_46] : memref<1456x128xbf16, #tpu.memory_space<vmem>>, vector<1x128xbf16>
    %c544 = arith.constant 544 : index
    %c0_47 = arith.constant 0 : index
    %148 = vector.load %arg2[%c544, %c0_47] : memref<1456x128xbf16, #tpu.memory_space<vmem>>, vector<1x128xbf16>
    %cst_48 = arith.constant dense<0.000000e+00> : vector<48xf32>
    %149 = vector.multi_reduction <add>, %146, %cst_48 [1] : vector<48x128xf32> to vector<48xf32>
    %150 = vector.shape_cast %149 : vector<48xf32> to vector<48x1xf32>
    %cst_49 = arith.constant 1.280000e+02 : f32
    %151 = vector.broadcast %cst_49 : f32 to vector<48x1xf32>
    %152 = arith.divf %150, %151 : vector<48x1xf32>
    %153 = vector.broadcast %152 : vector<48x1xf32> to vector<48x128xf32>
    %154 = arith.subf %146, %153 : vector<48x128xf32>
    %155 = arith.mulf %154, %154 : vector<48x128xf32>
    %cst_50 = arith.constant dense<0.000000e+00> : vector<48xf32>
    %156 = vector.multi_reduction <add>, %155, %cst_50 [1] : vector<48x128xf32> to vector<48xf32>
    %157 = vector.shape_cast %156 : vector<48xf32> to vector<48x1xf32>
    %cst_51 = arith.constant 1.280000e+02 : f32
    %158 = vector.broadcast %cst_51 : f32 to vector<48x1xf32>
    %159 = arith.divf %157, %158 : vector<48x1xf32>
    %160 = vector.broadcast %152 : vector<48x1xf32> to vector<48x128xf32>
    %161 = arith.subf %146, %160 : vector<48x128xf32>
    %cst_52 = arith.constant 9.99999997E-7 : f32
    %162 = vector.broadcast %cst_52 : f32 to vector<48x1xf32>
    %163 = arith.addf %159, %162 : vector<48x1xf32>
    %164 = math.rsqrt %163 : vector<48x1xf32>
    %165 = vector.broadcast %164 : vector<48x1xf32> to vector<48x128xf32>
    %166 = arith.mulf %161, %165 : vector<48x128xf32>
    %167 = arith.extf %147 : vector<1x128xbf16> to vector<1x128xf32>
    %168 = vector.broadcast %167 : vector<1x128xf32> to vector<48x128xf32>
    %169 = arith.mulf %166, %168 : vector<48x128xf32>
    %170 = arith.extf %148 : vector<1x128xbf16> to vector<1x128xf32>
    %171 = vector.broadcast %170 : vector<1x128xf32> to vector<48x128xf32>
    %172 = arith.addf %169, %171 : vector<48x128xf32>
    %173 = arith.truncf %172 : vector<48x128xf32> to vector<48x128xbf16>
    %c144 = arith.constant 144 : index
    %c0_53 = arith.constant 0 : index
    %174 = vector.load %arg3[%c144, %c0_53] : memref<576x512xbf16, #tpu.memory_space<vmem>>, vector<128x256xbf16>
    %cst_54 = arith.constant dense<0.000000e+00> : vector<48x256xf32>
    %175 = tpu.matmul %173, %174, %cst_54 {dimension_numbers = #tpu.dot_dimension_numbers<[1], [0], [0], [1], [0, 0, 1, 1], [], []>} : vector<48x128xbf16>, vector<128x256xbf16>, vector<48x256xf32> -> vector<48x256xf32>
    %c272 = arith.constant 272 : index
    %c0_55 = arith.constant 0 : index
    %176 = vector.load %arg3[%c272, %c0_55] : memref<576x512xbf16, #tpu.memory_space<vmem>>, vector<1x256xbf16>
    %177 = arith.extf %176 : vector<1x256xbf16> to vector<1x256xf32>
    %178 = vector.broadcast %177 : vector<1x256xf32> to vector<48x256xf32>
    %179 = arith.addf %175, %178 : vector<48x256xf32>
    %cst_56 = arith.constant 5.000000e-01 : f32
    %180 = vector.broadcast %cst_56 : f32 to vector<48x256xf32>
    %181 = arith.mulf %180, %179 : vector<48x256xf32>
    %cst_57 = arith.constant 0.707106769 : f32
    %182 = vector.broadcast %cst_57 : f32 to vector<48x256xf32>
    %183 = arith.mulf %179, %182 : vector<48x256xf32>
    %184 = math.erf %183 : vector<48x256xf32>
    %cst_58 = arith.constant 1.000000e+00 : f32
    %185 = vector.broadcast %cst_58 : f32 to vector<48x256xf32>
    %186 = arith.addf %185, %184 : vector<48x256xf32>
    %187 = arith.mulf %181, %186 : vector<48x256xf32>
    %188 = arith.truncf %187 : vector<48x256xf32> to vector<48x256xbf16>
    %c560 = arith.constant 560 : index
    %c0_59 = arith.constant 0 : index
    %189 = vector.load %arg2[%c560, %c0_59] : memref<1456x128xbf16, #tpu.memory_space<vmem>>, vector<256x128xbf16>
    %cst_60 = arith.constant dense<0.000000e+00> : vector<48x128xf32>
    %190 = tpu.matmul %188, %189, %cst_60 {dimension_numbers = #tpu.dot_dimension_numbers<[1], [0], [0], [1], [0, 0, 1, 1], [], []>} : vector<48x256xbf16>, vector<256x128xbf16>, vector<48x128xf32> -> vector<48x128xf32>
    %191 = arith.addf %146, %190 : vector<48x128xf32>
    %c816 = arith.constant 816 : index
    %c0_61 = arith.constant 0 : index
    %192 = vector.load %arg2[%c816, %c0_61] : memref<1456x128xbf16, #tpu.memory_space<vmem>>, vector<1x128xbf16>
    %193 = arith.extf %192 : vector<1x128xbf16> to vector<1x128xf32>
    %194 = vector.broadcast %193 : vector<1x128xf32> to vector<48x128xf32>
    %195 = arith.addf %191, %194 : vector<48x128xf32>
    %c832 = arith.constant 832 : index
    %c0_62 = arith.constant 0 : index
    %196 = vector.load %arg2[%c832, %c0_62] : memref<1456x128xbf16, #tpu.memory_space<vmem>>, vector<1x128xbf16>
    %c848 = arith.constant 848 : index
    %c0_63 = arith.constant 0 : index
    %197 = vector.load %arg2[%c848, %c0_63] : memref<1456x128xbf16, #tpu.memory_space<vmem>>, vector<1x128xbf16>
    %cst_64 = arith.constant dense<0.000000e+00> : vector<48xf32>
    %198 = vector.multi_reduction <add>, %195, %cst_64 [1] : vector<48x128xf32> to vector<48xf32>
    %199 = vector.shape_cast %198 : vector<48xf32> to vector<48x1xf32>
    %cst_65 = arith.constant 1.280000e+02 : f32
    %200 = vector.broadcast %cst_65 : f32 to vector<48x1xf32>
    %201 = arith.divf %199, %200 : vector<48x1xf32>
    %202 = vector.broadcast %201 : vector<48x1xf32> to vector<48x128xf32>
    %203 = arith.subf %195, %202 : vector<48x128xf32>
    %204 = arith.mulf %203, %203 : vector<48x128xf32>
    %cst_66 = arith.constant dense<0.000000e+00> : vector<48xf32>
    %205 = vector.multi_reduction <add>, %204, %cst_66 [1] : vector<48x128xf32> to vector<48xf32>
    %206 = vector.shape_cast %205 : vector<48xf32> to vector<48x1xf32>
    %cst_67 = arith.constant 1.280000e+02 : f32
    %207 = vector.broadcast %cst_67 : f32 to vector<48x1xf32>
    %208 = arith.divf %206, %207 : vector<48x1xf32>
    %209 = vector.broadcast %201 : vector<48x1xf32> to vector<48x128xf32>
    %210 = arith.subf %195, %209 : vector<48x128xf32>
    %cst_68 = arith.constant 9.99999997E-7 : f32
    %211 = vector.broadcast %cst_68 : f32 to vector<48x1xf32>
    %212 = arith.addf %208, %211 : vector<48x1xf32>
    %213 = math.rsqrt %212 : vector<48x1xf32>
    %214 = vector.broadcast %213 : vector<48x1xf32> to vector<48x128xf32>
    %215 = arith.mulf %210, %214 : vector<48x128xf32>
    %216 = arith.extf %196 : vector<1x128xbf16> to vector<1x128xf32>
    %217 = vector.broadcast %216 : vector<1x128xf32> to vector<48x128xf32>
    %218 = arith.mulf %215, %217 : vector<48x128xf32>
    %219 = arith.extf %197 : vector<1x128xbf16> to vector<1x128xf32>
    %220 = vector.broadcast %219 : vector<1x128xf32> to vector<48x128xf32>
    %221 = arith.addf %218, %220 : vector<48x128xf32>
    %222 = arith.truncf %221 : vector<48x128xf32> to vector<48x128xbf16>
    %c288 = arith.constant 288 : index
    %c0_69 = arith.constant 0 : index
    %223 = vector.load %arg3[%c288, %c0_69] : memref<576x512xbf16, #tpu.memory_space<vmem>>, vector<128x512xbf16>
    %cst_70 = arith.constant dense<0.000000e+00> : vector<48x512xf32>
    %224 = tpu.matmul %222, %223, %cst_70 {dimension_numbers = #tpu.dot_dimension_numbers<[1], [0], [0], [1], [0, 0, 1, 1], [], []>} : vector<48x128xbf16>, vector<128x512xbf16>, vector<48x512xf32> -> vector<48x512xf32>
    %c416 = arith.constant 416 : index
    %c0_71 = arith.constant 0 : index
    %225 = vector.load %arg3[%c416, %c0_71] : memref<576x512xbf16, #tpu.memory_space<vmem>>, vector<1x512xbf16>
    %226 = arith.extf %225 : vector<1x512xbf16> to vector<1x512xf32>
    %227 = vector.broadcast %226 : vector<1x512xf32> to vector<48x512xf32>
    %228 = arith.addf %224, %227 : vector<48x512xf32>
    %c864 = arith.constant 864 : index
    %c0_72 = arith.constant 0 : index
    %229 = vector.load %arg2[%c864, %c0_72] : memref<1456x128xbf16, #tpu.memory_space<vmem>>, vector<128x128xbf16>
    %cst_73 = arith.constant dense<0.000000e+00> : vector<48x128xf32>
    %230 = tpu.matmul %222, %229, %cst_73 {dimension_numbers = #tpu.dot_dimension_numbers<[1], [0], [0], [1], [0, 0, 1, 1], [], []>} : vector<48x128xbf16>, vector<128x128xbf16>, vector<48x128xf32> -> vector<48x128xf32>
    %c992 = arith.constant 992 : index
    %c0_74 = arith.constant 0 : index
    %231 = vector.load %arg2[%c992, %c0_74] : memref<1456x128xbf16, #tpu.memory_space<vmem>>, vector<1x128xbf16>
    %232 = arith.extf %231 : vector<1x128xbf16> to vector<1x128xf32>
    %233 = vector.broadcast %232 : vector<1x128xf32> to vector<48x128xf32>
    %234 = arith.addf %230, %233 : vector<48x128xf32>
    %235 = vector.extract_strided_slice %234 {offsets = [0, 0], sizes = [24, 128], strides = [1, 1]} : vector<48x128xf32> to vector<24x128xf32>
    %236 = arith.truncf %235 : vector<24x128xf32> to vector<24x128xbf16>
    %237 = vector.extract_strided_slice %228 {offsets = [0, 0], sizes = [24, 128], strides = [1, 1]} : vector<48x512xf32> to vector<24x128xf32>
    %238 = vector.extract_strided_slice %228 {offsets = [0, 256], sizes = [24, 128], strides = [1, 1]} : vector<48x512xf32> to vector<24x128xf32>
    %239 = arith.truncf %237 : vector<24x128xf32> to vector<24x128xbf16>
    %240 = arith.truncf %238 : vector<24x128xf32> to vector<24x128xbf16>
    %cst_75 = arith.constant dense<0.000000e+00> : vector<24x24xf32>
    %241 = tpu.matmul %239, %240, %cst_75 {dimension_numbers = #tpu.dot_dimension_numbers<[1], [1], [0], [0], [0, 0, 1, 0], [], []>} : vector<24x128xbf16>, vector<24x128xbf16>, vector<24x24xf32> -> vector<24x24xf32>
    %cst_76 = arith.constant -1.000000e+09 : f32
    %242 = vector.broadcast %cst_76 : f32 to vector<24x24xf32>
    %243 = arith.select %8, %241, %242 : vector<24x24xi1>, vector<24x24xf32>
    %cst_77 = arith.constant dense<0xFF800000> : vector<24xf32>
    %244 = vector.multi_reduction <maximumf>, %243, %cst_77 [1] : vector<24x24xf32> to vector<24xf32>
    %245 = vector.shape_cast %244 : vector<24xf32> to vector<24x1xf32>
    %246 = vector.broadcast %245 : vector<24x1xf32> to vector<24x24xf32>
    %247 = arith.subf %243, %246 : vector<24x24xf32>
    %248 = math.exp %247 : vector<24x24xf32>
    %cst_78 = arith.constant dense<0.000000e+00> : vector<24xf32>
    %249 = vector.multi_reduction <add>, %248, %cst_78 [1] : vector<24x24xf32> to vector<24xf32>
    %250 = vector.shape_cast %249 : vector<24xf32> to vector<24x1xf32>
    %251 = tpu.reciprocal %250 {approx = true} : vector<24x1xf32> -> vector<24x1xf32>
    %252 = vector.broadcast %251 : vector<24x1xf32> to vector<24x24xf32>
    %253 = arith.mulf %248, %252 : vector<24x24xf32>
    %254 = arith.truncf %253 : vector<24x24xf32> to vector<24x24xbf16>
    %cst_79 = arith.constant dense<0.000000e+00> : vector<24x128xf32>
    %255 = tpu.matmul %254, %236, %cst_79 {dimension_numbers = #tpu.dot_dimension_numbers<[1], [0], [0], [1], [0, 0, 1, 1], [], []>} : vector<24x24xbf16>, vector<24x128xbf16>, vector<24x128xf32> -> vector<24x128xf32>
    %256 = vector.extract_strided_slice %228 {offsets = [0, 128], sizes = [24, 128], strides = [1, 1]} : vector<48x512xf32> to vector<24x128xf32>
    %257 = vector.extract_strided_slice %228 {offsets = [0, 384], sizes = [24, 128], strides = [1, 1]} : vector<48x512xf32> to vector<24x128xf32>
    %258 = arith.truncf %256 : vector<24x128xf32> to vector<24x128xbf16>
    %259 = arith.truncf %257 : vector<24x128xf32> to vector<24x128xbf16>
    %cst_80 = arith.constant dense<0.000000e+00> : vector<24x24xf32>
    %260 = tpu.matmul %258, %259, %cst_80 {dimension_numbers = #tpu.dot_dimension_numbers<[1], [1], [0], [0], [0, 0, 1, 0], [], []>} : vector<24x128xbf16>, vector<24x128xbf16>, vector<24x24xf32> -> vector<24x24xf32>
    %cst_81 = arith.constant -1.000000e+09 : f32
    %261 = vector.broadcast %cst_81 : f32 to vector<24x24xf32>
    %262 = arith.select %8, %260, %261 : vector<24x24xi1>, vector<24x24xf32>
    %cst_82 = arith.constant dense<0xFF800000> : vector<24xf32>
    %263 = vector.multi_reduction <maximumf>, %262, %cst_82 [1] : vector<24x24xf32> to vector<24xf32>
    %264 = vector.shape_cast %263 : vector<24xf32> to vector<24x1xf32>
    %265 = vector.broadcast %264 : vector<24x1xf32> to vector<24x24xf32>
    %266 = arith.subf %262, %265 : vector<24x24xf32>
    %267 = math.exp %266 : vector<24x24xf32>
    %cst_83 = arith.constant dense<0.000000e+00> : vector<24xf32>
    %268 = vector.multi_reduction <add>, %267, %cst_83 [1] : vector<24x24xf32> to vector<24xf32>
    %269 = vector.shape_cast %268 : vector<24xf32> to vector<24x1xf32>
    %270 = tpu.reciprocal %269 {approx = true} : vector<24x1xf32> -> vector<24x1xf32>
    %271 = vector.broadcast %270 : vector<24x1xf32> to vector<24x24xf32>
    %272 = arith.mulf %267, %271 : vector<24x24xf32>
    %273 = arith.truncf %272 : vector<24x24xf32> to vector<24x24xbf16>
    %cst_84 = arith.constant dense<0.000000e+00> : vector<24x128xf32>
    %274 = tpu.matmul %273, %236, %cst_84 {dimension_numbers = #tpu.dot_dimension_numbers<[1], [0], [0], [1], [0, 0, 1, 1], [], []>} : vector<24x24xbf16>, vector<24x128xbf16>, vector<24x128xf32> -> vector<24x128xf32>
    %c64_i32_85 = arith.constant 64 : i32
    %275 = vector.broadcast %c64_i32_85 : i32 to vector<24x128xi32>
    %276 = arith.cmpi slt, %9, %275 : vector<24x128xi32>
    %277 = arith.select %276, %255, %274 : vector<24x128xi1>, vector<24x128xf32>
    %278 = arith.truncf %277 : vector<24x128xf32> to vector<24x128xbf16>
    %c1008 = arith.constant 1008 : index
    %c0_86 = arith.constant 0 : index
    %279 = vector.load %arg2[%c1008, %c0_86] : memref<1456x128xbf16, #tpu.memory_space<vmem>>, vector<128x128xbf16>
    %cst_87 = arith.constant dense<0.000000e+00> : vector<24x128xf32>
    %280 = tpu.matmul %278, %279, %cst_87 {dimension_numbers = #tpu.dot_dimension_numbers<[1], [0], [0], [1], [0, 0, 1, 1], [], []>} : vector<24x128xbf16>, vector<128x128xbf16>, vector<24x128xf32> -> vector<24x128xf32>
    %281 = vector.extract_strided_slice %234 {offsets = [24, 0], sizes = [24, 128], strides = [1, 1]} : vector<48x128xf32> to vector<24x128xf32>
    %282 = arith.truncf %281 : vector<24x128xf32> to vector<24x128xbf16>
    %283 = vector.extract_strided_slice %228 {offsets = [24, 0], sizes = [24, 128], strides = [1, 1]} : vector<48x512xf32> to vector<24x128xf32>
    %284 = vector.extract_strided_slice %228 {offsets = [24, 256], sizes = [24, 128], strides = [1, 1]} : vector<48x512xf32> to vector<24x128xf32>
    %285 = arith.truncf %283 : vector<24x128xf32> to vector<24x128xbf16>
    %286 = arith.truncf %284 : vector<24x128xf32> to vector<24x128xbf16>
    %cst_88 = arith.constant dense<0.000000e+00> : vector<24x24xf32>
    %287 = tpu.matmul %285, %286, %cst_88 {dimension_numbers = #tpu.dot_dimension_numbers<[1], [1], [0], [0], [0, 0, 1, 0], [], []>} : vector<24x128xbf16>, vector<24x128xbf16>, vector<24x24xf32> -> vector<24x24xf32>
    %cst_89 = arith.constant -1.000000e+09 : f32
    %288 = vector.broadcast %cst_89 : f32 to vector<24x24xf32>
    %289 = arith.select %8, %287, %288 : vector<24x24xi1>, vector<24x24xf32>
    %cst_90 = arith.constant dense<0xFF800000> : vector<24xf32>
    %290 = vector.multi_reduction <maximumf>, %289, %cst_90 [1] : vector<24x24xf32> to vector<24xf32>
    %291 = vector.shape_cast %290 : vector<24xf32> to vector<24x1xf32>
    %292 = vector.broadcast %291 : vector<24x1xf32> to vector<24x24xf32>
    %293 = arith.subf %289, %292 : vector<24x24xf32>
    %294 = math.exp %293 : vector<24x24xf32>
    %cst_91 = arith.constant dense<0.000000e+00> : vector<24xf32>
    %295 = vector.multi_reduction <add>, %294, %cst_91 [1] : vector<24x24xf32> to vector<24xf32>
    %296 = vector.shape_cast %295 : vector<24xf32> to vector<24x1xf32>
    %297 = tpu.reciprocal %296 {approx = true} : vector<24x1xf32> -> vector<24x1xf32>
    %298 = vector.broadcast %297 : vector<24x1xf32> to vector<24x24xf32>
    %299 = arith.mulf %294, %298 : vector<24x24xf32>
    %300 = arith.truncf %299 : vector<24x24xf32> to vector<24x24xbf16>
    %cst_92 = arith.constant dense<0.000000e+00> : vector<24x128xf32>
    %301 = tpu.matmul %300, %282, %cst_92 {dimension_numbers = #tpu.dot_dimension_numbers<[1], [0], [0], [1], [0, 0, 1, 1], [], []>} : vector<24x24xbf16>, vector<24x128xbf16>, vector<24x128xf32> -> vector<24x128xf32>
    %302 = vector.extract_strided_slice %228 {offsets = [24, 128], sizes = [24, 128], strides = [1, 1]} : vector<48x512xf32> to vector<24x128xf32>
    %303 = vector.extract_strided_slice %228 {offsets = [24, 384], sizes = [24, 128], strides = [1, 1]} : vector<48x512xf32> to vector<24x128xf32>
    %304 = arith.truncf %302 : vector<24x128xf32> to vector<24x128xbf16>
    %305 = arith.truncf %303 : vector<24x128xf32> to vector<24x128xbf16>
    %cst_93 = arith.constant dense<0.000000e+00> : vector<24x24xf32>
    %306 = tpu.matmul %304, %305, %cst_93 {dimension_numbers = #tpu.dot_dimension_numbers<[1], [1], [0], [0], [0, 0, 1, 0], [], []>} : vector<24x128xbf16>, vector<24x128xbf16>, vector<24x24xf32> -> vector<24x24xf32>
    %cst_94 = arith.constant -1.000000e+09 : f32
    %307 = vector.broadcast %cst_94 : f32 to vector<24x24xf32>
    %308 = arith.select %8, %306, %307 : vector<24x24xi1>, vector<24x24xf32>
    %cst_95 = arith.constant dense<0xFF800000> : vector<24xf32>
    %309 = vector.multi_reduction <maximumf>, %308, %cst_95 [1] : vector<24x24xf32> to vector<24xf32>
    %310 = vector.shape_cast %309 : vector<24xf32> to vector<24x1xf32>
    %311 = vector.broadcast %310 : vector<24x1xf32> to vector<24x24xf32>
    %312 = arith.subf %308, %311 : vector<24x24xf32>
    %313 = math.exp %312 : vector<24x24xf32>
    %cst_96 = arith.constant dense<0.000000e+00> : vector<24xf32>
    %314 = vector.multi_reduction <add>, %313, %cst_96 [1] : vector<24x24xf32> to vector<24xf32>
    %315 = vector.shape_cast %314 : vector<24xf32> to vector<24x1xf32>
    %316 = tpu.reciprocal %315 {approx = true} : vector<24x1xf32> -> vector<24x1xf32>
    %317 = vector.broadcast %316 : vector<24x1xf32> to vector<24x24xf32>
    %318 = arith.mulf %313, %317 : vector<24x24xf32>
    %319 = arith.truncf %318 : vector<24x24xf32> to vector<24x24xbf16>
    %cst_97 = arith.constant dense<0.000000e+00> : vector<24x128xf32>
    %320 = tpu.matmul %319, %282, %cst_97 {dimension_numbers = #tpu.dot_dimension_numbers<[1], [0], [0], [1], [0, 0, 1, 1], [], []>} : vector<24x24xbf16>, vector<24x128xbf16>, vector<24x128xf32> -> vector<24x128xf32>
    %c64_i32_98 = arith.constant 64 : i32
    %321 = vector.broadcast %c64_i32_98 : i32 to vector<24x128xi32>
    %322 = arith.cmpi slt, %9, %321 : vector<24x128xi32>
    %323 = arith.select %322, %301, %320 : vector<24x128xi1>, vector<24x128xf32>
    %324 = arith.truncf %323 : vector<24x128xf32> to vector<24x128xbf16>
    %c1008_99 = arith.constant 1008 : index
    %c0_100 = arith.constant 0 : index
    %325 = vector.load %arg2[%c1008_99, %c0_100] : memref<1456x128xbf16, #tpu.memory_space<vmem>>, vector<128x128xbf16>
    %cst_101 = arith.constant dense<0.000000e+00> : vector<24x128xf32>
    %326 = tpu.matmul %324, %325, %cst_101 {dimension_numbers = #tpu.dot_dimension_numbers<[1], [0], [0], [1], [0, 0, 1, 1], [], []>} : vector<24x128xbf16>, vector<128x128xbf16>, vector<24x128xf32> -> vector<24x128xf32>
    %327 = tpu.concatenate %280, %326 in 0 : vector<24x128xf32>, vector<24x128xf32> -> vector<48x128xf32>
    %328 = arith.addf %195, %327 : vector<48x128xf32>
    %c1136 = arith.constant 1136 : index
    %c0_102 = arith.constant 0 : index
    %329 = vector.load %arg2[%c1136, %c0_102] : memref<1456x128xbf16, #tpu.memory_space<vmem>>, vector<1x128xbf16>
    %330 = arith.extf %329 : vector<1x128xbf16> to vector<1x128xf32>
    %331 = vector.broadcast %330 : vector<1x128xf32> to vector<48x128xf32>
    %332 = arith.addf %328, %331 : vector<48x128xf32>
    %c1152 = arith.constant 1152 : index
    %c0_103 = arith.constant 0 : index
    %333 = vector.load %arg2[%c1152, %c0_103] : memref<1456x128xbf16, #tpu.memory_space<vmem>>, vector<1x128xbf16>
    %c1168 = arith.constant 1168 : index
    %c0_104 = arith.constant 0 : index
    %334 = vector.load %arg2[%c1168, %c0_104] : memref<1456x128xbf16, #tpu.memory_space<vmem>>, vector<1x128xbf16>
    %cst_105 = arith.constant dense<0.000000e+00> : vector<48xf32>
    %335 = vector.multi_reduction <add>, %332, %cst_105 [1] : vector<48x128xf32> to vector<48xf32>
    %336 = vector.shape_cast %335 : vector<48xf32> to vector<48x1xf32>
    %cst_106 = arith.constant 1.280000e+02 : f32
    %337 = vector.broadcast %cst_106 : f32 to vector<48x1xf32>
    %338 = arith.divf %336, %337 : vector<48x1xf32>
    %339 = vector.broadcast %338 : vector<48x1xf32> to vector<48x128xf32>
    %340 = arith.subf %332, %339 : vector<48x128xf32>
    %341 = arith.mulf %340, %340 : vector<48x128xf32>
    %cst_107 = arith.constant dense<0.000000e+00> : vector<48xf32>
    %342 = vector.multi_reduction <add>, %341, %cst_107 [1] : vector<48x128xf32> to vector<48xf32>
    %343 = vector.shape_cast %342 : vector<48xf32> to vector<48x1xf32>
    %cst_108 = arith.constant 1.280000e+02 : f32
    %344 = vector.broadcast %cst_108 : f32 to vector<48x1xf32>
    %345 = arith.divf %343, %344 : vector<48x1xf32>
    %346 = vector.broadcast %338 : vector<48x1xf32> to vector<48x128xf32>
    %347 = arith.subf %332, %346 : vector<48x128xf32>
    %cst_109 = arith.constant 9.99999997E-7 : f32
    %348 = vector.broadcast %cst_109 : f32 to vector<48x1xf32>
    %349 = arith.addf %345, %348 : vector<48x1xf32>
    %350 = math.rsqrt %349 : vector<48x1xf32>
    %351 = vector.broadcast %350 : vector<48x1xf32> to vector<48x128xf32>
    %352 = arith.mulf %347, %351 : vector<48x128xf32>
    %353 = arith.extf %333 : vector<1x128xbf16> to vector<1x128xf32>
    %354 = vector.broadcast %353 : vector<1x128xf32> to vector<48x128xf32>
    %355 = arith.mulf %352, %354 : vector<48x128xf32>
    %356 = arith.extf %334 : vector<1x128xbf16> to vector<1x128xf32>
    %357 = vector.broadcast %356 : vector<1x128xf32> to vector<48x128xf32>
    %358 = arith.addf %355, %357 : vector<48x128xf32>
    %359 = arith.truncf %358 : vector<48x128xf32> to vector<48x128xbf16>
    %c432 = arith.constant 432 : index
    %c0_110 = arith.constant 0 : index
    %360 = vector.load %arg3[%c432, %c0_110] : memref<576x512xbf16, #tpu.memory_space<vmem>>, vector<128x256xbf16>
    %cst_111 = arith.constant dense<0.000000e+00> : vector<48x256xf32>
    %361 = tpu.matmul %359, %360, %cst_111 {dimension_numbers = #tpu.dot_dimension_numbers<[1], [0], [0], [1], [0, 0, 1, 1], [], []>} : vector<48x128xbf16>, vector<128x256xbf16>, vector<48x256xf32> -> vector<48x256xf32>
    %c560_112 = arith.constant 560 : index
    %c0_113 = arith.constant 0 : index
    %362 = vector.load %arg3[%c560_112, %c0_113] : memref<576x512xbf16, #tpu.memory_space<vmem>>, vector<1x256xbf16>
    %363 = arith.extf %362 : vector<1x256xbf16> to vector<1x256xf32>
    %364 = vector.broadcast %363 : vector<1x256xf32> to vector<48x256xf32>
    %365 = arith.addf %361, %364 : vector<48x256xf32>
    %cst_114 = arith.constant 5.000000e-01 : f32
    %366 = vector.broadcast %cst_114 : f32 to vector<48x256xf32>
    %367 = arith.mulf %366, %365 : vector<48x256xf32>
    %cst_115 = arith.constant 0.707106769 : f32
    %368 = vector.broadcast %cst_115 : f32 to vector<48x256xf32>
    %369 = arith.mulf %365, %368 : vector<48x256xf32>
    %370 = math.erf %369 : vector<48x256xf32>
    %cst_116 = arith.constant 1.000000e+00 : f32
    %371 = vector.broadcast %cst_116 : f32 to vector<48x256xf32>
    %372 = arith.addf %371, %370 : vector<48x256xf32>
    %373 = arith.mulf %367, %372 : vector<48x256xf32>
    %374 = arith.truncf %373 : vector<48x256xf32> to vector<48x256xbf16>
    %c1184 = arith.constant 1184 : index
    %c0_117 = arith.constant 0 : index
    %375 = vector.load %arg2[%c1184, %c0_117] : memref<1456x128xbf16, #tpu.memory_space<vmem>>, vector<256x128xbf16>
    %cst_118 = arith.constant dense<0.000000e+00> : vector<48x128xf32>
    %376 = tpu.matmul %374, %375, %cst_118 {dimension_numbers = #tpu.dot_dimension_numbers<[1], [0], [0], [1], [0, 0, 1, 1], [], []>} : vector<48x256xbf16>, vector<256x128xbf16>, vector<48x128xf32> -> vector<48x128xf32>
    %377 = arith.addf %332, %376 : vector<48x128xf32>
    %c1440 = arith.constant 1440 : index
    %c0_119 = arith.constant 0 : index
    %378 = vector.load %arg2[%c1440, %c0_119] : memref<1456x128xbf16, #tpu.memory_space<vmem>>, vector<1x128xbf16>
    %379 = arith.extf %378 : vector<1x128xbf16> to vector<1x128xf32>
    %380 = vector.broadcast %379 : vector<1x128xf32> to vector<48x128xf32>
    %381 = arith.addf %377, %380 : vector<48x128xf32>
    %c176 = arith.constant 176 : index
    %c0_120 = arith.constant 0 : index
    %382 = vector.load %arg2[%c176, %c0_120] : memref<1456x128xbf16, #tpu.memory_space<vmem>>, vector<1x128xbf16>
    %c192 = arith.constant 192 : index
    %c0_121 = arith.constant 0 : index
    %383 = vector.load %arg2[%c192, %c0_121] : memref<1456x128xbf16, #tpu.memory_space<vmem>>, vector<1x128xbf16>
    %cst_122 = arith.constant dense<0.000000e+00> : vector<48xf32>
    %384 = vector.multi_reduction <add>, %381, %cst_122 [1] : vector<48x128xf32> to vector<48xf32>
    %385 = vector.shape_cast %384 : vector<48xf32> to vector<48x1xf32>
    %cst_123 = arith.constant 1.280000e+02 : f32
    %386 = vector.broadcast %cst_123 : f32 to vector<48x1xf32>
    %387 = arith.divf %385, %386 : vector<48x1xf32>
    %388 = vector.broadcast %387 : vector<48x1xf32> to vector<48x128xf32>
    %389 = arith.subf %381, %388 : vector<48x128xf32>
    %390 = arith.mulf %389, %389 : vector<48x128xf32>
    %cst_124 = arith.constant dense<0.000000e+00> : vector<48xf32>
    %391 = vector.multi_reduction <add>, %390, %cst_124 [1] : vector<48x128xf32> to vector<48xf32>
    %392 = vector.shape_cast %391 : vector<48xf32> to vector<48x1xf32>
    %cst_125 = arith.constant 1.280000e+02 : f32
    %393 = vector.broadcast %cst_125 : f32 to vector<48x1xf32>
    %394 = arith.divf %392, %393 : vector<48x1xf32>
    %395 = vector.broadcast %387 : vector<48x1xf32> to vector<48x128xf32>
    %396 = arith.subf %381, %395 : vector<48x128xf32>
    %cst_126 = arith.constant 9.99999997E-7 : f32
    %397 = vector.broadcast %cst_126 : f32 to vector<48x1xf32>
    %398 = arith.addf %394, %397 : vector<48x1xf32>
    %399 = math.rsqrt %398 : vector<48x1xf32>
    %400 = vector.broadcast %399 : vector<48x1xf32> to vector<48x128xf32>
    %401 = arith.mulf %396, %400 : vector<48x128xf32>
    %402 = arith.extf %382 : vector<1x128xbf16> to vector<1x128xf32>
    %403 = vector.broadcast %402 : vector<1x128xf32> to vector<48x128xf32>
    %404 = arith.mulf %401, %403 : vector<48x128xf32>
    %405 = arith.extf %383 : vector<1x128xbf16> to vector<1x128xf32>
    %406 = vector.broadcast %405 : vector<1x128xf32> to vector<48x128xf32>
    %407 = arith.addf %404, %406 : vector<48x128xf32>
    %c0_127 = arith.constant 0 : index
    %c0_128 = arith.constant 0 : index
    %408 = vector.load %arg4[%c0_127, %c0_128] : memref<48x128xf32, #tpu.memory_space<vmem>>, vector<48x128xf32>
    tpu.vector_store %arg4[%c0_127, %c0_128], %407 {strides = array<i32>} : memref<48x128xf32, #tpu.memory_space<vmem>>, vector<48x128xf32>,
    return
  }
  func.func @transform_0(%arg0: i32) -> (i32, i32) {
    %c0_i32 = arith.constant 0 : i32
    %c0_i32_0 = arith.constant 0 : i32
    %c0_i32_1 = arith.constant 0 : i32
    return %c0_i32, %c0_i32_0 : i32, i32
  }
  func.func @transform_1(%arg0: i32) -> (i32, i32) {
    %c0_i32 = arith.constant 0 : i32
    %c0_i32_0 = arith.constant 0 : i32
    %c0_i32_1 = arith.constant 0 : i32
    return %c0_i32, %c0_i32_0 : i32, i32
  }
  func.func @transform_2(%arg0: i32) -> (i32, i32) {
    %c0_i32 = arith.constant 0 : i32
    %c0_i32_0 = arith.constant 0 : i32
    %c0_i32_1 = arith.constant 0 : i32
    return %c0_i32, %c0_i32_0 : i32, i32
  }
  func.func @transform_3(%arg0: i32) -> (i32, i32) {
    %c0_i32 = arith.constant 0 : i32
    %c0_i32_0 = arith.constant 0 : i32
    %c0_i32_1 = arith.constant 0 : i32
    return %c0_i32, %c0_i32_0 : i32, i32
  }
}

</mosaic_0001>

<llo_original>
// kernel: tpu_custom_call.1
$region0: #{tpu_custom_call.1}
  #allocation0 [shape = 'u32[]', space=smem, size = 0x4, offset = 0x4, fixed_abs, tag = 'smem constant byte address 0x4 - core index']
  #allocation1 [shape = 'u32[72,128]{1,0:T(1,128)}', space=vmem, size = 0x9000, scoped, tag = 'internal scratch']
  %s0 = inlined_call_operand.hbm [shape: bf16[48,128], index: 0, kind: input, shape index: {}]
  %s1 = inlined_call_operand.hbm [shape: bf16[1456,128], index: 1, kind: input, shape index: {}]
  %s2 = inlined_call_operand.hbm [shape: bf16[576,512], index: 2, kind: input, shape index: {}]
  %s3 = inlined_call_operand.hbm [shape: f32[48,128], index: 3, kind: output, shape index: {}]
  %s4 = sld [smem:[#allocation0]]
  $region34: #{tpu_custom_call.1} parent=0
    _
  %s6 = ssub.s32 1, %s4
  %s7 = scalar_select 0, %s6, %s4
  $region1: #{tpu_custom_call.1} parent=0
    #allocation2 [shape = 'u8[12288]{0}', space=vmem, size = 0x3000, scoped, tag = 'input window, operand 0, single buffered']
    #allocation3 [shape = 's32[1]{0}', space=sflag, size = 0x4, scoped, tag = 'scoped memory for tpu_custom_call.1']
    #allocation4 [shape = 's32[1]{0}', space=sflag, size = 0x4, scoped, tag = 'scoped memory for tpu_custom_call.1']
    #allocation5 [shape = 'u8[372736]{0}', space=vmem, size = 0x5b000, scoped, tag = 'input window, operand 1, single buffered']
    #allocation6 [shape = 's32[1]{0}', space=sflag, size = 0x4, scoped, tag = 'scoped memory for tpu_custom_call.1']
    #allocation7 [shape = 'u8[589824]{0}', space=vmem, size = 0x90000, scoped, tag = 'input window, operand 2, single buffered']
    #allocation8 [shape = 'u8[24576]{0}', space=vmem, size = 0x6000, scoped, tag = 'output window, operand 0, single buffered']
    %8 = vsyncpa [#allocation3], 0
    %9 = vsyncpa [#allocation6], 0
    %10 = vsyncpa [#allocation4], 0
    // Predicated region
    $region2: #{tpu_custom_call.1} parent=1 // pred_check
      _
    $region3: #{tpu_custom_call.1} parent=1 // pred_check_branch
      %12 = sbr.rel (0) target = $region5
    $region4: #{tpu_custom_call.1} parent=1 // pred_region
      %14 = vsyncadd [#allocation3], 0
      %s15 = sshll.u32 %s0, 4
      %s16 = int_to_ptr.hbm [resolvable:$true] %s15
      %s17 = sshll.u32 [#allocation2], 4
      %s18 = int_to_ptr.vmem [resolvable:$true] %s17
      %23 = dma.hbm_to_vmem [thread:$0]  %s16, 384, %s18, [#allocation3], 64, 64, 4
    $region5: #{tpu_custom_call.1} parent=1 // pred_fallthru
      _
    // Predicated region
    $region6: #{tpu_custom_call.1} parent=1 // pred_check
      _
    $region7: #{tpu_custom_call.1} parent=1 // pred_check_branch
      %25 = sbr.rel (0) target = $region9
    $region8: #{tpu_custom_call.1} parent=1 // pred_region
      %27 = vsyncadd [#allocation6], 0
      %s28 = sshll.u32 %s1, 4
      %s29 = int_to_ptr.hbm [resolvable:$true] %s28
      %s30 = sshll.u32 [#allocation5], 4
      %s31 = int_to_ptr.vmem [resolvable:$true] %s30
      %36 = dma.hbm_to_vmem [thread:$0]  %s29, 11648, %s31, [#allocation6], 64, 64, 4
    $region9: #{tpu_custom_call.1} parent=1 // pred_fallthru
      _
    // Predicated region
    $region10: #{tpu_custom_call.1} parent=1 // pred_check
      _
    $region11: #{tpu_custom_call.1} parent=1 // pred_check_branch
      %38 = sbr.rel (0) target = $region13
    $region12: #{tpu_custom_call.1} parent=1 // pred_region
      %40 = vsyncadd [#allocation6], 0
      %s41 = sshll.u32 %s2, 4
      %s42 = int_to_ptr.hbm [resolvable:$true] %s41
      %s43 = sshll.u32 [#allocation7], 4
      %s44 = int_to_ptr.vmem [resolvable:$true] %s43
      %49 = dma.hbm_to_vmem [thread:$0]  %s42, 18432, %s44, [#allocation6], 256, 256, 16
    $region13: #{tpu_custom_call.1} parent=1 // pred_fallthru
      _
    // Predicated region
    $region14: #{tpu_custom_call.1} parent=1 // pred_check
      _
    $region15: #{tpu_custom_call.1} parent=1 // pred_check_branch
      %51 = sbr.rel (0) target = $region17
    $region16: #{tpu_custom_call.1} parent=1 // pred_region
      %53 = dma.done [#allocation3], 384
    $region17: #{tpu_custom_call.1} parent=1 // pred_fallthru
      _
    // Predicated region
    $region18: #{tpu_custom_call.1} parent=1 // pred_check
      _
    $region19: #{tpu_custom_call.1} parent=1 // pred_check_branch
      %55 = sbr.rel (0) target = $region21
    $region20: #{tpu_custom_call.1} parent=1 // pred_region
      %57 = dma.done [#allocation6], 11648
    $region21: #{tpu_custom_call.1} parent=1 // pred_fallthru
      _
    // Predicated region
    $region22: #{tpu_custom_call.1} parent=1 // pred_check
      _
    $region23: #{tpu_custom_call.1} parent=1 // pred_check_branch
      %59 = sbr.rel (0) target = $region25
    $region24: #{tpu_custom_call.1} parent=1 // pred_region
      %61 = dma.done [#allocation6], 18432
    $region25: #{tpu_custom_call.1} parent=1 // pred_fallthru
      _
    %v63 = vld [vmem:[#allocation2] sm:$0xf]
    %v64 = vld [vmem:[#allocation2 + $0x4] sm:$0xf]
    %v65 = vld [vmem:[#allocation2 + $0x8] sm:$0xf]
    %v66 = vld [vmem:[#allocation2 + $0xc] sm:$0xf]
    %v67 = vld [vmem:[#allocation2 + $0x10] sm:$0xf]
    %v68 = vld [vmem:[#allocation2 + $0x14] sm:$0xf]
    %v69 = vld [vmem:[#allocation5] sm:$0xf]
    %v70 = vld [vmem:[#allocation5 + $0x4] sm:$0xf]
    %v71 = vld [vmem:[#allocation5 + $0x8] sm:$0xf]
    %v72 = vld [vmem:[#allocation5 + $0xc] sm:$0xf]
    %v73 = vld [vmem:[#allocation5 + $0x10] sm:$0xf]
    %v74 = vld [vmem:[#allocation5 + $0x14] sm:$0xf]
    %v75 = vld [vmem:[#allocation5 + $0x18] sm:$0xf]
    %v76 = vld [vmem:[#allocation5 + $0x1c] sm:$0xf]
    %v77 = vld [vmem:[#allocation5 + $0x20] sm:$0xf]
    %v78 = vld [vmem:[#allocation5 + $0x24] sm:$0xf]
    %v79 = vld [vmem:[#allocation5 + $0x28] sm:$0xf]
    %v80 = vld [vmem:[#allocation5 + $0x2c] sm:$0xf]
    %v81 = vld [vmem:[#allocation5 + $0x30] sm:$0xf]
    %v82 = vld [vmem:[#allocation5 + $0x34] sm:$0xf]
    %v83 = vld [vmem:[#allocation5 + $0x38] sm:$0xf]
    %v84 = vld [vmem:[#allocation5 + $0x3c] sm:$0xf]
    %v85 = vld [vmem:[#allocation5 + $0x40] sm:$0xf]
    %v86 = vld [vmem:[#allocation5 + $0x44] sm:$0xf]
    %v87 = vld [vmem:[#allocation5 + $0x48] sm:$0xf]
    %v88 = vld [vmem:[#allocation5 + $0x4c] sm:$0xf]
    %v89 = vld [vmem:[#allocation5 + $0x50] sm:$0xf]
    %v90 = vld [vmem:[#allocation5 + $0x54] sm:$0xf]
    %v91 = vunpack.c.l.bf16 %v85
    %v92 = vunpack.c.l.bf16 %v86
    %v93 = vunpack.c.l.bf16 %v87
    %v94 = vunpack.c.l.bf16 %v88
    %v95 = vunpack.c.l.bf16 %v89
    %v96 = vunpack.c.l.bf16 %v90
    %v103 = vunpack.c.l.b16 %v63
    %v104 = vunpack.c.l.b16 %v64
    %v105 = vunpack.c.l.b16 %v65
    %v106 = vunpack.c.l.b16 %v66
    %v107 = vunpack.c.l.b16 %v67
    %v108 = vunpack.c.l.b16 %v68
    %v109 = vpack.c.b16 %v104, %v103
    %v110 = vpack.c.b16 %v106, %v105
    %v111 = vpack.c.b16 %v108, %v107
    %v131 = vunpack.c.l.b16 %v69
    %v132 = vunpack.c.l.b16 %v70
    %v133 = vunpack.c.l.b16 %v71
    %v134 = vunpack.c.l.b16 %v72
    %v135 = vunpack.c.l.b16 %v73
    %v136 = vunpack.c.l.b16 %v74
    %v137 = vunpack.c.l.b16 %v75
    %v138 = vunpack.c.l.b16 %v76
    %v139 = vunpack.c.l.b16 %v77
    %v140 = vunpack.c.l.b16 %v78
    %v141 = vunpack.c.l.b16 %v79
    %v142 = vunpack.c.l.b16 %v80
    %v143 = vunpack.c.l.b16 %v81
    %v144 = vunpack.c.l.b16 %v82
    %v145 = vunpack.c.l.b16 %v83
    %v146 = vunpack.c.l.b16 %v84
    %v147 = vpack.c.b16 %v132, %v131
    %v148 = vpack.c.b16 %v134, %v133
    %v149 = vpack.c.b16 %v136, %v135
    %v150 = vpack.c.b16 %v138, %v137
    %v151 = vpack.c.b16 %v140, %v139
    %v152 = vpack.c.b16 %v142, %v141
    %v153 = vpack.c.b16 %v144, %v143
    %v154 = vpack.c.b16 %v146, %v145
    %163 = vmatpush.bf16.msra.mxu0 %v154
    %164 = vmatpush.bf16.msra.mxu0 %v153
    %165 = vmatpush.bf16.msra.mxu0 %v152
    %166 = vmatpush.bf16.msra.mxu0 %v151
    %167 = vmatpush.bf16.msra.mxu0 %v150
    %168 = vmatpush.bf16.msra.mxu0 %v149
    %169 = vmatpush.bf16.msra.mxu0 %v148
    %170 = vmatpush.bf16.msra.mxu0 %v147
    %171 = vmatmul.bf16.gmra.mxu0 %v109
    %v172 = vpop.f32.mrf.mxu0
    %v173 = vadd.f32 %v91, %v172
    %v174 = vpop.f32.mrf.mxu0
    %v175 = vadd.f32 %v92, %v174
    %176 = vmatmul.bf16.gmra.mxu0 %v110
    %v177 = vpop.f32.mrf.mxu0
    %v178 = vadd.f32 %v93, %v177
    %v179 = vpop.f32.mrf.mxu0
    %v180 = vadd.f32 %v94, %v179
    %181 = vmatmul.bf16.gmra.mxu0 %v111
    %v182 = vpop.f32.mrf.mxu0
    %v183 = vadd.f32 %v95, %v182
    %v184 = vpop.f32.mrf.mxu0
    %v185 = vadd.f32 %v96, %v184
    %186 = vdwg.mxu0
    %v187 = vlaneseq
    %v188 = vand.u32 %v187, 127
    %vm189 = vcmp.lt.s32.totalorder %v188, 17
    %v190 = vld [vmem:[#allocation5 + $0x68] sm:$0x1]
    %v191 = vld [vmem:[#allocation5 + $0x70] sm:$0x1]
    %192 = vadd.xlane.f32.xlu0 %v173
    %v193 = vpop.xlane.xlu0 %192
    %194 = vadd.xlane.f32.xlu0 %v175
    %v195 = vpop.xlane.xlu0 %194
    %196 = vadd.xlane.f32.xlu0 %v178
    %v197 = vpop.xlane.xlu0 %196
    %198 = vadd.xlane.f32.xlu0 %v180
    %v199 = vpop.xlane.xlu0 %198
    %200 = vadd.xlane.f32.xlu0 %v183
    %v201 = vpop.xlane.xlu0 %200
    %202 = vadd.xlane.f32.xlu0 %v185
    %v203 = vpop.xlane.xlu0 %202
    %v204 = vrcp.pop 128.0
    %v205 = vmul.f32 128.0, %v204
    %v206 = vsub.f32 1.0, %v205
    %v207 = vmul.f32 %v204, %v206
    %v208 = vadd.f32 %v204, %v207
    %vm209 = vweird.f32 %v204
    %v210 = vsel %vm209, %v204, %v208
    %v211 = vmul.f32 %v193, %v210
    %v212 = vmul.f32 %v195, %v210
    %v213 = vmul.f32 %v197, %v210
    %v214 = vmul.f32 %v199, %v210
    %v215 = vmul.f32 %v201, %v210
    %v216 = vmul.f32 %v203, %v210
    %v217 = vsub.f32 %v173, %v211
    %v218 = vsub.f32 %v175, %v212
    %v219 = vsub.f32 %v178, %v213
    %v220 = vsub.f32 %v180, %v214
    %v221 = vsub.f32 %v183, %v215
    %v222 = vsub.f32 %v185, %v216
    %v223 = vmul.f32 %v217, %v217
    %v224 = vmul.f32 %v218, %v218
    %v225 = vmul.f32 %v219, %v219
    %v226 = vmul.f32 %v220, %v220
    %v227 = vmul.f32 %v221, %v221
    %v228 = vmul.f32 %v222, %v222
    %229 = vadd.xlane.f32.xlu0 %v223
    %v230 = vpop.xlane.xlu0 %229
    %231 = vadd.xlane.f32.xlu0 %v224
    %v232 = vpop.xlane.xlu0 %231
    %233 = vadd.xlane.f32.xlu0 %v225
    %v234 = vpop.xlane.xlu0 %233
    %235 = vadd.xlane.f32.xlu0 %v226
    %v236 = vpop.xlane.xlu0 %235
    %237 = vadd.xlane.f32.xlu0 %v227
    %v238 = vpop.xlane.xlu0 %237
    %239 = vadd.xlane.f32.xlu0 %v228
    %v240 = vpop.xlane.xlu0 %239
    %v241 = vmul.f32 %v230, %v210
    %v242 = vmul.f32 %v232, %v210
    %v243 = vmul.f32 %v234, %v210
    %v244 = vmul.f32 %v236, %v210
    %v245 = vmul.f32 %v238, %v210
    %v246 = vmul.f32 %v240, %v210
    %v247 = vadd.f32 %v241, 1e-06
    %v248 = vadd.f32 %v242, 1e-06
    %v249 = vadd.f32 %v243, 1e-06
    %v250 = vadd.f32 %v244, 1e-06
    %v251 = vadd.f32 %v245, 1e-06
    %v252 = vadd.f32 %v246, 1e-06
    %v253 = vrsqrt.pop %v247
    %v254 = vmul.f32 %v253, %v247
    %v255 = vmul.f32 %v254, %v253
    %v256 = vmul.f32 0.5, %v255
    %v257 = vsub.f32 1.5, %v256
    %v258 = vmul.f32 %v253, %v257
    %vm259 = vweird.f32 %v247
    %vm260 = vweird.f32 %v253
    %vm261 = vmor %vm259, %vm260
    %v262 = vsel %vm261, %v253, %v258
    %v263 = vrsqrt.pop %v248
    %v264 = vmul.f32 %v263, %v248
    %v265 = vmul.f32 %v264, %v263
    %v266 = vmul.f32 0.5, %v265
    %v267 = vsub.f32 1.5, %v266
    %v268 = vmul.f32 %v263, %v267
    %vm269 = vweird.f32 %v248
    %vm270 = vweird.f32 %v263
    %vm271 = vmor %vm269, %vm270
    %v272 = vsel %vm271, %v263, %v268
    %v273 = vrsqrt.pop %v249
    %v274 = vmul.f32 %v273, %v249
    %v275 = vmul.f32 %v274, %v273
    %v276 = vmul.f32 0.5, %v275
    %v277 = vsub.f32 1.5, %v276
    %v278 = vmul.f32 %v273, %v277
    %vm279 = vweird.f32 %v249
    %vm280 = vweird.f32 %v273
    %vm281 = vmor %vm279, %vm280
    %v282 = vsel %vm281, %v273, %v278
    %v283 = vrsqrt.pop %v250
    %v284 = vmul.f32 %v283, %v250
    %v285 = vmul.f32 %v284, %v283
    %v286 = vmul.f32 0.5, %v285
    %v287 = vsub.f32 1.5, %v286
    %v288 = vmul.f32 %v283, %v287
    %vm289 = vweird.f32 %v250
    %vm290 = vweird.f32 %v283
    %vm291 = vmor %vm289, %vm290
    %v292 = vsel %vm291, %v283, %v288
    %v293 = vrsqrt.pop %v251
    %v294 = vmul.f32 %v293, %v251
    %v295 = vmul.f32 %v294, %v293
    %v296 = vmul.f32 0.5, %v295
    %v297 = vsub.f32 1.5, %v296
    %v298 = vmul.f32 %v293, %v297
    %vm299 = vweird.f32 %v251
    %vm300 = vweird.f32 %v293
    %vm301 = vmor %vm299, %vm300
    %v302 = vsel %vm301, %v293, %v298
    %v303 = vrsqrt.pop %v252
    %v304 = vmul.f32 %v303, %v252
    %v305 = vmul.f32 %v304, %v303
    %v306 = vmul.f32 0.5, %v305
    %v307 = vsub.f32 1.5, %v306
    %v308 = vmul.f32 %v303, %v307
    %vm309 = vweird.f32 %v252
    %vm310 = vweird.f32 %v303
    %vm311 = vmor %vm309, %vm310
    %v312 = vsel %vm311, %v303, %v308
    %v313 = vmul.f32 %v217, %v262
    %v314 = vmul.f32 %v218, %v272
    %v315 = vmul.f32 %v219, %v282
    %v316 = vmul.f32 %v220, %v292
    %v317 = vmul.f32 %v221, %v302
    %v318 = vmul.f32 %v222, %v312
    %v319 = vunpack.c.l.bf16 %v190
    %v320 = vperm.slane %v319, 0
    %v321 = vmul.f32 %v313, %v320
    %v322 = vmul.f32 %v314, %v320
    %v323 = vmul.f32 %v315, %v320
    %v324 = vmul.f32 %v316, %v320
    %v325 = vmul.f32 %v317, %v320
    %v326 = vmul.f32 %v318, %v320
    %v327 = vunpack.c.l.bf16 %v191
    %v328 = vperm.slane %v327, 0
    %v329 = vadd.f32 %v321, %v328
    %v330 = vadd.f32 %v322, %v328
    %v331 = vadd.f32 %v323, %v328
    %v332 = vadd.f32 %v324, %v328
    %v333 = vadd.f32 %v325, %v328
    %v334 = vadd.f32 %v326, %v328
    %v335 = vpack.c.bf16 %v330, %v329
    %v336 = vpack.c.bf16 %v332, %v331
    %v337 = vpack.c.bf16 %v334, %v333
    %v338 = vld [vmem:[#allocation7] sm:$0xff]
    %v339 = vld [vmem:[#allocation7 + $0x8] sm:$0xff]
    %v340 = vld [vmem:[#allocation7 + $0x10] sm:$0xff]
    %v341 = vld [vmem:[#allocation7 + $0x18] sm:$0xff]
    %v342 = vld [vmem:[#allocation7 + $0x20] sm:$0xff]
    %v343 = vld [vmem:[#allocation7 + $0x28] sm:$0xff]
    %v344 = vld [vmem:[#allocation7 + $0x30] sm:$0xff]
    %v345 = vld [vmem:[#allocation7 + $0x38] sm:$0xff]
    %v346 = vld [vmem:[#allocation7 + $0x40] sm:$0xff]
    %v347 = vld [vmem:[#allocation7 + $0x48] sm:$0xff]
    %v348 = vld [vmem:[#allocation7 + $0x50] sm:$0xff]
    %v349 = vld [vmem:[#allocation7 + $0x58] sm:$0xff]
    %v350 = vld [vmem:[#allocation7 + $0x60] sm:$0xff]
    %v351 = vld [vmem:[#allocation7 + $0x68] sm:$0xff]
    %v352 = vld [vmem:[#allocation7 + $0x70] sm:$0xff]
    %v353 = vld [vmem:[#allocation7 + $0x78] sm:$0xff]
    %v354 = vld [vmem:[#allocation7 + $0x80] sm:$0xff]
    %v355 = vld [vmem:[#allocation7 + $0x88] sm:$0xff]
    %v356 = vld [vmem:[#allocation7 + $0x90] sm:$0xff]
    %v357 = vld [vmem:[#allocation7 + $0x98] sm:$0xff]
    %v358 = vld [vmem:[#allocation7 + $0xa0] sm:$0xff]
    %v359 = vld [vmem:[#allocation7 + $0xa8] sm:$0xff]
    %v360 = vld [vmem:[#allocation7 + $0xb0] sm:$0xff]
    %v361 = vld [vmem:[#allocation7 + $0xb8] sm:$0xff]
    %v362 = vld [vmem:[#allocation7 + $0xc0] sm:$0xff]
    %v363 = vld [vmem:[#allocation7 + $0xc8] sm:$0xff]
    %v364 = vld [vmem:[#allocation7 + $0xd0] sm:$0xff]
    %v365 = vld [vmem:[#allocation7 + $0xd8] sm:$0xff]
    %v366 = vld [vmem:[#allocation7 + $0xe0] sm:$0xff]
    %v367 = vld [vmem:[#allocation7 + $0xe8] sm:$0xff]
    %v368 = vld [vmem:[#allocation7 + $0xf0] sm:$0xff]
    %v369 = vld [vmem:[#allocation7 + $0xf8] sm:$0xff]
    %v370 = vld [vmem:[#allocation7 + $0x100] sm:$0x11]
    %v371 = vld [vmem:[#allocation7 + $0x108] sm:$0x11]
    %v372 = vunpack.c.l.bf16 %v370
    %v373 = vunpack.c.h.bf16 %v370
    %v374 = vunpack.c.l.bf16 %v371
    %v375 = vunpack.c.h.bf16 %v371
    %v376 = vperm.slane %v372, 0
    %v377 = vperm.slane %v373, 0
    %v378 = vperm.slane %v374, 0
    %v379 = vperm.slane %v375, 0
    %v412 = vunpack.c.l.b16 %v338
    %v413 = vunpack.c.h.b16 %v338
    %v414 = vunpack.c.l.b16 %v339
    %v415 = vunpack.c.h.b16 %v339
    %v416 = vunpack.c.l.b16 %v340
    %v417 = vunpack.c.h.b16 %v340
    %v418 = vunpack.c.l.b16 %v341
    %v419 = vunpack.c.h.b16 %v341
    %v420 = vunpack.c.l.b16 %v342
    %v421 = vunpack.c.h.b16 %v342
    %v422 = vunpack.c.l.b16 %v343
    %v423 = vunpack.c.h.b16 %v343
    %v424 = vunpack.c.l.b16 %v344
    %v425 = vunpack.c.h.b16 %v344
    %v426 = vunpack.c.l.b16 %v345
    %v427 = vunpack.c.h.b16 %v345
    %v428 = vunpack.c.l.b16 %v346
    %v429 = vunpack.c.h.b16 %v346
    %v430 = vunpack.c.l.b16 %v347
    %v431 = vunpack.c.h.b16 %v347
    %v432 = vunpack.c.l.b16 %v348
    %v433 = vunpack.c.h.b16 %v348
    %v434 = vunpack.c.l.b16 %v349
    %v435 = vunpack.c.h.b16 %v349
    %v436 = vunpack.c.l.b16 %v350
    %v437 = vunpack.c.h.b16 %v350
    %v438 = vunpack.c.l.b16 %v351
    %v439 = vunpack.c.h.b16 %v351
    %v440 = vunpack.c.l.b16 %v352
    %v441 = vunpack.c.h.b16 %v352
    %v442 = vunpack.c.l.b16 %v353
    %v443 = vunpack.c.h.b16 %v353
    %v444 = vunpack.c.l.b16 %v354
    %v445 = vunpack.c.h.b16 %v354
    %v446 = vunpack.c.l.b16 %v355
    %v447 = vunpack.c.h.b16 %v355
    %v448 = vunpack.c.l.b16 %v356
    %v449 = vunpack.c.h.b16 %v356
    %v450 = vunpack.c.l.b16 %v357
    %v451 = vunpack.c.h.b16 %v357
    %v452 = vunpack.c.l.b16 %v358
    %v453 = vunpack.c.h.b16 %v358
    %v454 = vunpack.c.l.b16 %v359
    %v455 = vunpack.c.h.b16 %v359
    %v456 = vunpack.c.l.b16 %v360
    %v457 = vunpack.c.h.b16 %v360
    %v458 = vunpack.c.l.b16 %v361
    %v459 = vunpack.c.h.b16 %v361
    %v460 = vunpack.c.l.b16 %v362
    %v461 = vunpack.c.h.b16 %v362
    %v462 = vunpack.c.l.b16 %v363
    %v463 = vunpack.c.h.b16 %v363
    %v464 = vunpack.c.l.b16 %v364
    %v465 = vunpack.c.h.b16 %v364
    %v466 = vunpack.c.l.b16 %v365
    %v467 = vunpack.c.h.b16 %v365
    %v468 = vunpack.c.l.b16 %v366
    %v469 = vunpack.c.h.b16 %v366
    %v470 = vunpack.c.l.b16 %v367
    %v471 = vunpack.c.h.b16 %v367
    %v472 = vunpack.c.l.b16 %v368
    %v473 = vunpack.c.h.b16 %v368
    %v474 = vunpack.c.l.b16 %v369
    %v475 = vunpack.c.h.b16 %v369
    %v476 = vpack.c.b16 %v416, %v412
    %v477 = vpack.c.b16 %v417, %v413
    %v478 = vpack.c.b16 %v418, %v414
    %v479 = vpack.c.b16 %v419, %v415
    %v480 = vpack.c.b16 %v424, %v420
    %v481 = vpack.c.b16 %v425, %v421
    %v482 = vpack.c.b16 %v426, %v422
    %v483 = vpack.c.b16 %v427, %v423
    %v484 = vpack.c.b16 %v432, %v428
    %v485 = vpack.c.b16 %v433, %v429
    %v486 = vpack.c.b16 %v434, %v430
    %v487 = vpack.c.b16 %v435, %v431
    %v488 = vpack.c.b16 %v440, %v436
    %v489 = vpack.c.b16 %v441, %v437
    %v490 = vpack.c.b16 %v442, %v438
    %v491 = vpack.c.b16 %v443, %v439
    %v492 = vpack.c.b16 %v448, %v444
    %v493 = vpack.c.b16 %v449, %v445
    %v494 = vpack.c.b16 %v450, %v446
    %v495 = vpack.c.b16 %v451, %v447
    %v496 = vpack.c.b16 %v456, %v452
    %v497 = vpack.c.b16 %v457, %v453
    %v498 = vpack.c.b16 %v458, %v454
    %v499 = vpack.c.b16 %v459, %v455
    %v500 = vpack.c.b16 %v464, %v460
    %v501 = vpack.c.b16 %v465, %v461
    %v502 = vpack.c.b16 %v466, %v462
    %v503 = vpack.c.b16 %v467, %v463
    %v504 = vpack.c.b16 %v472, %v468
    %v505 = vpack.c.b16 %v473, %v469
    %v506 = vpack.c.b16 %v474, %v470
    %v507 = vpack.c.b16 %v475, %v471
    %540 = vmatpush.bf16.msra.mxu0 %v504
    %541 = vmatpush.bf16.msra.mxu0 %v500
    %542 = vmatpush.bf16.msra.mxu0 %v496
    %543 = vmatpush.bf16.msra.mxu0 %v492
    %544 = vmatpush.bf16.msra.mxu0 %v488
    %545 = vmatpush.bf16.msra.mxu0 %v484
    %546 = vmatpush.bf16.msra.mxu0 %v480
    %547 = vmatpush.bf16.msra.mxu0 %v476
    %548 = vmatmul.bf16.gmra.mxu0 %v335
    %v549 = vpop.f32.mrf.mxu0
    %v550 = vadd.f32 %v376, %v549
    %v551 = vpop.f32.mrf.mxu0
    %v552 = vadd.f32 %v376, %v551
    %553 = vmatmul.bf16.gmra.mxu0 %v336
    %v554 = vpop.f32.mrf.mxu0
    %v555 = vadd.f32 %v376, %v554
    %v556 = vpop.f32.mrf.mxu0
    %v557 = vadd.f32 %v376, %v556
    %558 = vmatmul.bf16.gmra.mxu0 %v337
    %v559 = vpop.f32.mrf.mxu0
    %v560 = vadd.f32 %v376, %v559
    %v561 = vpop.f32.mrf.mxu0
    %v562 = vadd.f32 %v376, %v561
    %563 = vdwg.mxu0
    %564 = vmatpush.bf16.msra.mxu0 %v505
    %565 = vmatpush.bf16.msra.mxu0 %v501
    %566 = vmatpush.bf16.msra.mxu0 %v497
    %567 = vmatpush.bf16.msra.mxu0 %v493
    %568 = vmatpush.bf16.msra.mxu0 %v489
    %569 = vmatpush.bf16.msra.mxu0 %v485
    %570 = vmatpush.bf16.msra.mxu0 %v481
    %571 = vmatpush.bf16.msra.mxu0 %v477
    %572 = vmatmul.bf16.gmra.mxu0 %v335
    %v573 = vpop.f32.mrf.mxu0
    %v574 = vadd.f32 %v377, %v573
    %v575 = vpop.f32.mrf.mxu0
    %v576 = vadd.f32 %v377, %v575
    %577 = vmatmul.bf16.gmra.mxu0 %v336
    %v578 = vpop.f32.mrf.mxu0
    %v579 = vadd.f32 %v377, %v578
    %v580 = vpop.f32.mrf.mxu0
    %v581 = vadd.f32 %v377, %v580
    %582 = vmatmul.bf16.gmra.mxu0 %v337
    %v583 = vpop.f32.mrf.mxu0
    %v584 = vadd.f32 %v377, %v583
    %v585 = vpop.f32.mrf.mxu0
    %v586 = vadd.f32 %v377, %v585
    %587 = vdwg.mxu0
    %588 = vmatpush.bf16.msra.mxu0 %v506
    %589 = vmatpush.bf16.msra.mxu0 %v502
    %590 = vmatpush.bf16.msra.mxu0 %v498
    %591 = vmatpush.bf16.msra.mxu0 %v494
    %592 = vmatpush.bf16.msra.mxu0 %v490
    %593 = vmatpush.bf16.msra.mxu0 %v486
    %594 = vmatpush.bf16.msra.mxu0 %v482
    %595 = vmatpush.bf16.msra.mxu0 %v478
    %596 = vmatmul.bf16.gmra.mxu0 %v335
    %v597 = vpop.f32.mrf.mxu0
    %v598 = vadd.f32 %v378, %v597
    %v599 = vpop.f32.mrf.mxu0
    %v600 = vadd.f32 %v378, %v599
    %601 = vmatmul.bf16.gmra.mxu0 %v336
    %v602 = vpop.f32.mrf.mxu0
    %v603 = vadd.f32 %v378, %v602
    %v604 = vpop.f32.mrf.mxu0
    %v605 = vadd.f32 %v378, %v604
    %606 = vmatmul.bf16.gmra.mxu0 %v337
    %v607 = vpop.f32.mrf.mxu0
    %v608 = vadd.f32 %v378, %v607
    %v609 = vpop.f32.mrf.mxu0
    %v610 = vadd.f32 %v378, %v609
    %611 = vdwg.mxu0
    %612 = vmatpush.bf16.msra.mxu0 %v507
    %613 = vmatpush.bf16.msra.mxu0 %v503
    %614 = vmatpush.bf16.msra.mxu0 %v499
    %615 = vmatpush.bf16.msra.mxu0 %v495
    %616 = vmatpush.bf16.msra.mxu0 %v491
    %617 = vmatpush.bf16.msra.mxu0 %v487
    %618 = vmatpush.bf16.msra.mxu0 %v483
    %619 = vmatpush.bf16.msra.mxu0 %v479
    %620 = vmatmul.bf16.gmra.mxu0 %v335
    %v621 = vpop.f32.mrf.mxu0
    %v622 = vadd.f32 %v379, %v621
    %v623 = vpop.f32.mrf.mxu0
    %v624 = vadd.f32 %v379, %v623
    %625 = vmatmul.bf16.gmra.mxu0 %v336
    %v626 = vpop.f32.mrf.mxu0
    %v627 = vadd.f32 %v379, %v626
    %v628 = vpop.f32.mrf.mxu0
    %v629 = vadd.f32 %v379, %v628
    %630 = vmatmul.bf16.gmra.mxu0 %v337
    %v631 = vpop.f32.mrf.mxu0
    %v632 = vadd.f32 %v379, %v631
    %v633 = vpop.f32.mrf.mxu0
    %v634 = vadd.f32 %v379, %v633
    %635 = vdwg.mxu0
    %v636 = vld [vmem:[#allocation5 + $0x78] sm:$0xf]
    %v637 = vld [vmem:[#allocation5 + $0x7c] sm:$0xf]
    %v638 = vld [vmem:[#allocation5 + $0x80] sm:$0xf]
    %v639 = vld [vmem:[#allocation5 + $0x84] sm:$0xf]
    %v640 = vld [vmem:[#allocation5 + $0x88] sm:$0xf]
    %v641 = vld [vmem:[#allocation5 + $0x8c] sm:$0xf]
    %v642 = vld [vmem:[#allocation5 + $0x90] sm:$0xf]
    %v643 = vld [vmem:[#allocation5 + $0x94] sm:$0xf]
    %v644 = vld [vmem:[#allocation5 + $0x98] sm:$0xf]
    %v645 = vld [vmem:[#allocation5 + $0x9c] sm:$0xf]
    %v646 = vld [vmem:[#allocation5 + $0xa0] sm:$0xf]
    %v647 = vld [vmem:[#allocation5 + $0xa4] sm:$0xf]
    %v648 = vld [vmem:[#allocation5 + $0xa8] sm:$0xf]
    %v649 = vld [vmem:[#allocation5 + $0xac] sm:$0xf]
    %v650 = vld [vmem:[#allocation5 + $0xb0] sm:$0xf]
    %v651 = vld [vmem:[#allocation5 + $0xb4] sm:$0xf]
    %v652 = vld [vmem:[#allocation5 + $0xb8] sm:$0x1]
    %v653 = vunpack.c.l.bf16 %v652
    %v654 = vperm.slane %v653, 0
    %v671 = vunpack.c.l.b16 %v636
    %v672 = vunpack.c.l.b16 %v637
    %v673 = vunpack.c.l.b16 %v638
    %v674 = vunpack.c.l.b16 %v639
    %v675 = vunpack.c.l.b16 %v640
    %v676 = vunpack.c.l.b16 %v641
    %v677 = vunpack.c.l.b16 %v642
    %v678 = vunpack.c.l.b16 %v643
    %v679 = vunpack.c.l.b16 %v644
    %v680 = vunpack.c.l.b16 %v645
    %v681 = vunpack.c.l.b16 %v646
    %v682 = vunpack.c.l.b16 %v647
    %v683 = vunpack.c.l.b16 %v648
    %v684 = vunpack.c.l.b16 %v649
    %v685 = vunpack.c.l.b16 %v650
    %v686 = vunpack.c.l.b16 %v651
    %v687 = vpack.c.b16 %v672, %v671
    %v688 = vpack.c.b16 %v674, %v673
    %v689 = vpack.c.b16 %v676, %v675
    %v690 = vpack.c.b16 %v678, %v677
    %v691 = vpack.c.b16 %v680, %v679
    %v692 = vpack.c.b16 %v682, %v681
    %v693 = vpack.c.b16 %v684, %v683
    %v694 = vpack.c.b16 %v686, %v685
    %703 = vmatpush.bf16.msra.mxu0 %v694
    %704 = vmatpush.bf16.msra.mxu0 %v693
    %705 = vmatpush.bf16.msra.mxu0 %v692
    %706 = vmatpush.bf16.msra.mxu0 %v691
    %707 = vmatpush.bf16.msra.mxu0 %v690
    %708 = vmatpush.bf16.msra.mxu0 %v689
    %709 = vmatpush.bf16.msra.mxu0 %v688
    %710 = vmatpush.bf16.msra.mxu0 %v687
    %711 = vmatmul.bf16.gmra.mxu0 %v335
    %v712 = vpop.f32.mrf.mxu0
    %v713 = vadd.f32 %v654, %v712
    %v714 = vpop.f32.mrf.mxu0
    %v715 = vadd.f32 %v654, %v714
    %716 = vmatmul.bf16.gmra.mxu0 %v336
    %v717 = vpop.f32.mrf.mxu0
    %v718 = vadd.f32 %v654, %v717
    %v719 = vpop.f32.mrf.mxu0
    %v720 = vadd.f32 %v654, %v719
    %721 = vmatmul.bf16.gmra.mxu0 %v337
    %v722 = vpop.f32.mrf.mxu0
    %v723 = vadd.f32 %v654, %v722
    %v724 = vpop.f32.mrf.mxu0
    %v725 = vadd.f32 %v654, %v724
    %726 = vdwg.mxu0
    %v727 = vpack.c.bf16 %v715, %v713
    %v728 = vpack.c.bf16 %v718, %v718
    %v729 = vpack.c.bf16 %v552, %v550
    %v730 = vpack.c.bf16 %v555, %v555
    %v731 = vpack.c.bf16 %v600, %v598
    %v732 = vpack.c.bf16 %v603, %v603
    %733 = vmatpush.bf16.xpose.msra.mxu0 0
    %734 = vmatpush.bf16.xpose.msra.mxu0 0
    %735 = vmatpush.bf16.xpose.msra.mxu0 0
    %736 = vmatpush.bf16.xpose.msra.mxu0 0
    %737 = vmatpush.bf16.xpose.msra.mxu0 0
    %738 = vmatpush.bf16.xpose.msra.mxu0 0
    %739 = vmatpush.bf16.xpose.msra.mxu0 %v732
    %740 = vmatpush.bf16.xpose.msra.mxu0 %v731
    %741 = vmatmul.bf16.gmra.mxu0 %v729
    %v742 = vpop.f32.mrf.mxu0
    %v743 = vadd.f32 0.0, %v742
    %v744 = vpop.f32.mrf.mxu0
    %v745 = vadd.f32 0.0, %v744
    %746 = vmatmul.bf16.gmra.mxu0 %v730
    %v747 = vpop.f32.mrf.mxu0
    %v748 = vadd.f32 0.0, %v747
    %v749 = vpop.f32.mrf.mxu0
    %750 = vdwg.mxu0
    %v751 = vsel %vm189, %v743, -1e+09
    %v752 = vsel %vm189, %v745, -1e+09
    %v753 = vsel %vm189, %v748, -1e+09
    %vm754 = vcmask 195584
    %v755 = vsel %vm754, %v751, -inf
    %756 = vmax.xlane.f32.xlu0 %v755
    %v757 = vpop.xlane.xlu0 %756
    %v758 = vsel %vm754, %v752, -inf
    %759 = vmax.xlane.f32.xlu0 %v758
    %v760 = vpop.xlane.xlu0 %759
    %v761 = vsel %vm754, %v753, -inf
    %762 = vmax.xlane.f32.xlu0 %v761
    %v763 = vpop.xlane.xlu0 %762
    %v764 = vsub.f32 %v751, %v757
    %v765 = vsub.f32 %v752, %v760
    %v766 = vsub.f32 %v753, %v763
    %v767 = vmul.f32 %v764, 1.442695
    %v768 = vpow.pop %v767
    %v769 = vmul.f32 %v765, 1.442695
    %v770 = vpow.pop %v769
    %v771 = vmul.f32 %v766, 1.442695
    %v772 = vpow.pop %v771
    %v773 = vsel %vm754, %v768, 0.0
    %774 = vadd.xlane.f32.xlu0 %v773
    %v775 = vpop.xlane.xlu0 %774
    %v776 = vsel %vm754, %v770, 0.0
    %777 = vadd.xlane.f32.xlu0 %v776
    %v778 = vpop.xlane.xlu0 %777
    %v779 = vsel %vm754, %v772, 0.0
    %780 = vadd.xlane.f32.xlu0 %v779
    %v781 = vpop.xlane.xlu0 %780
    %v782 = vrcp.pop %v775
    %v783 = vrcp.pop %v778
    %v784 = vrcp.pop %v781
    %v785 = vmul.f32 %v768, %v782
    %v786 = vmul.f32 %v770, %v783
    %v787 = vmul.f32 %v772, %v784
    %v788 = vpack.c.bf16 %v786, %v785
    %v789 = vpack.c.bf16 %v787, %v787
    %v791 = vsel %vm754, %v788, 0
    %v794 = vsel %vm754, %v789, 0
    %vm796 = vcmask 1043456
    %v798 = vsel %vm796, %v728, 0
    %800 = vmatpush.bf16.msra.mxu0 0
    %801 = vmatpush.bf16.msra.mxu0 0
    %802 = vmatpush.bf16.msra.mxu0 0
    %803 = vmatpush.bf16.msra.mxu0 0
    %804 = vmatpush.bf16.msra.mxu0 0
    %805 = vmatpush.bf16.msra.mxu0 0
    %806 = vmatpush.bf16.msra.mxu0 %v798
    %807 = vmatpush.bf16.msra.mxu0 %v727
    %808 = vmatmul.bf16.gmra.mxu0 %v791
    %v809 = vpop.f32.mrf.mxu0
    %v810 = vadd.f32 0.0, %v809
    %v811 = vpop.f32.mrf.mxu0
    %v812 = vadd.f32 0.0, %v811
    %813 = vmatmul.bf16.gmra.mxu0 %v794
    %v814 = vpop.f32.mrf.mxu0
    %v815 = vadd.f32 0.0, %v814
    %v816 = vpop.f32.mrf.mxu0
    %817 = vdwg.mxu0
    %v818 = vpack.c.bf16 %v576, %v574
    %v819 = vpack.c.bf16 %v579, %v579
    %v820 = vpack.c.bf16 %v624, %v622
    %v821 = vpack.c.bf16 %v627, %v627
    %822 = vmatpush.bf16.xpose.msra.mxu0 0
    %823 = vmatpush.bf16.xpose.msra.mxu0 0
    %824 = vmatpush.bf16.xpose.msra.mxu0 0
    %825 = vmatpush.bf16.xpose.msra.mxu0 0
    %826 = vmatpush.bf16.xpose.msra.mxu0 0
    %827 = vmatpush.bf16.xpose.msra.mxu0 0
    %828 = vmatpush.bf16.xpose.msra.mxu0 %v821
    %829 = vmatpush.bf16.xpose.msra.mxu0 %v820
    %830 = vmatmul.bf16.gmra.mxu0 %v818
    %v831 = vpop.f32.mrf.mxu0
    %v832 = vadd.f32 0.0, %v831
    %v833 = vpop.f32.mrf.mxu0
    %v834 = vadd.f32 0.0, %v833
    %835 = vmatmul.bf16.gmra.mxu0 %v819
    %v836 = vpop.f32.mrf.mxu0
    %v837 = vadd.f32 0.0, %v836
    %v838 = vpop.f32.mrf.mxu0
    %839 = vdwg.mxu0
    %v840 = vsel %vm189, %v832, -1e+09
    %v841 = vsel %vm189, %v834, -1e+09
    %v842 = vsel %vm189, %v837, -1e+09
    %v843 = vsel %vm754, %v840, -inf
    %844 = vmax.xlane.f32.xlu0 %v843
    %v845 = vpop.xlane.xlu0 %844
    %v846 = vsel %vm754, %v841, -inf
    %847 = vmax.xlane.f32.xlu0 %v846
    %v848 = vpop.xlane.xlu0 %847
    %v849 = vsel %vm754, %v842, -inf
    %850 = vmax.xlane.f32.xlu0 %v849
    %v851 = vpop.xlane.xlu0 %850
    %v852 = vsub.f32 %v840, %v845
    %v853 = vsub.f32 %v841, %v848
    %v854 = vsub.f32 %v842, %v851
    %v855 = vmul.f32 %v852, 1.442695
    %v856 = vpow.pop %v855
    %v857 = vmul.f32 %v853, 1.442695
    %v858 = vpow.pop %v857
    %v859 = vmul.f32 %v854, 1.442695
    %v860 = vpow.pop %v859
    %v861 = vsel %vm754, %v856, 0.0
    %862 = vadd.xlane.f32.xlu0 %v861
    %v863 = vpop.xlane.xlu0 %862
    %v864 = vsel %vm754, %v858, 0.0
    %865 = vadd.xlane.f32.xlu0 %v864
    %v866 = vpop.xlane.xlu0 %865
    %v867 = vsel %vm754, %v860, 0.0
    %868 = vadd.xlane.f32.xlu0 %v867
    %v869 = vpop.xlane.xlu0 %868
    %v870 = vrcp.pop %v863
    %v871 = vrcp.pop %v866
    %v872 = vrcp.pop %v869
    %v873 = vmul.f32 %v856, %v870
    %v874 = vmul.f32 %v858, %v871
    %v875 = vmul.f32 %v860, %v872
    %v876 = vpack.c.bf16 %v874, %v873
    %v877 = vpack.c.bf16 %v875, %v875
    %v879 = vsel %vm754, %v876, 0
    %v882 = vsel %vm754, %v877, 0
    %884 = vmatpush.bf16.msra.mxu0 0
    %885 = vmatpush.bf16.msra.mxu0 0
    %886 = vmatpush.bf16.msra.mxu0 0
    %887 = vmatpush.bf16.msra.mxu0 0
    %888 = vmatpush.bf16.msra.mxu0 0
    %889 = vmatpush.bf16.msra.mxu0 0
    %890 = vmatpush.bf16.msra.mxu0 %v798
    %891 = vmatpush.bf16.msra.mxu0 %v727
    %892 = vmatmul.bf16.gmra.mxu0 %v879
    %v893 = vpop.f32.mrf.mxu0
    %v894 = vadd.f32 0.0, %v893
    %v895 = vpop.f32.mrf.mxu0
    %v896 = vadd.f32 0.0, %v895
    %897 = vmatmul.bf16.gmra.mxu0 %v882
    %v898 = vpop.f32.mrf.mxu0
    %v899 = vadd.f32 0.0, %v898
    %v900 = vpop.f32.mrf.mxu0
    %901 = vdwg.mxu0
    %vm902 = vcmp.lt.s32.totalorder %v188, 64
    %v903 = vsel %vm902, %v810, %v894
    %v904 = vsel %vm902, %v812, %v896
    %v905 = vsel %vm902, %v815, %v899
    %v906 = vpack.c.bf16 %v904, %v903
    %v907 = vpack.c.bf16 %v905, %v905
    %v908 = vld [vmem:[#allocation5 + $0xc0] sm:$0xf]
    %v909 = vld [vmem:[#allocation5 + $0xc4] sm:$0xf]
    %v910 = vld [vmem:[#allocation5 + $0xc8] sm:$0xf]
    %v911 = vld [vmem:[#allocation5 + $0xcc] sm:$0xf]
    %v912 = vld [vmem:[#allocation5 + $0xd0] sm:$0xf]
    %v913 = vld [vmem:[#allocation5 + $0xd4] sm:$0xf]
    %v914 = vld [vmem:[#allocation5 + $0xd8] sm:$0xf]
    %v915 = vld [vmem:[#allocation5 + $0xdc] sm:$0xf]
    %v916 = vld [vmem:[#allocation5 + $0xe0] sm:$0xf]
    %v917 = vld [vmem:[#allocation5 + $0xe4] sm:$0xf]
    %v918 = vld [vmem:[#allocation5 + $0xe8] sm:$0xf]
    %v919 = vld [vmem:[#allocation5 + $0xec] sm:$0xf]
    %v920 = vld [vmem:[#allocation5 + $0xf0] sm:$0xf]
    %v921 = vld [vmem:[#allocation5 + $0xf4] sm:$0xf]
    %v922 = vld [vmem:[#allocation5 + $0xf8] sm:$0xf]
    %v923 = vld [vmem:[#allocation5 + $0xfc] sm:$0xf]
    %v940 = vunpack.c.l.b16 %v908
    %v941 = vunpack.c.l.b16 %v909
    %v942 = vunpack.c.l.b16 %v910
    %v943 = vunpack.c.l.b16 %v911
    %v944 = vunpack.c.l.b16 %v912
    %v945 = vunpack.c.l.b16 %v913
    %v946 = vunpack.c.l.b16 %v914
    %v947 = vunpack.c.l.b16 %v915
    %v948 = vunpack.c.l.b16 %v916
    %v949 = vunpack.c.l.b16 %v917
    %v950 = vunpack.c.l.b16 %v918
    %v951 = vunpack.c.l.b16 %v919
    %v952 = vunpack.c.l.b16 %v920
    %v953 = vunpack.c.l.b16 %v921
    %v954 = vunpack.c.l.b16 %v922
    %v955 = vunpack.c.l.b16 %v923
    %v956 = vpack.c.b16 %v941, %v940
    %v957 = vpack.c.b16 %v943, %v942
    %v958 = vpack.c.b16 %v945, %v944
    %v959 = vpack.c.b16 %v947, %v946
    %v960 = vpack.c.b16 %v949, %v948
    %v961 = vpack.c.b16 %v951, %v950
    %v962 = vpack.c.b16 %v953, %v952
    %v963 = vpack.c.b16 %v955, %v954
    %972 = vmatpush.bf16.msra.mxu0 %v963
    %973 = vmatpush.bf16.msra.mxu0 %v962
    %974 = vmatpush.bf16.msra.mxu0 %v961
    %975 = vmatpush.bf16.msra.mxu0 %v960
    %976 = vmatpush.bf16.msra.mxu0 %v959
    %977 = vmatpush.bf16.msra.mxu0 %v958
    %978 = vmatpush.bf16.msra.mxu0 %v957
    %979 = vmatpush.bf16.msra.mxu0 %v956
    %980 = vmatmul.bf16.gmra.mxu0 %v906
    %v981 = vpop.f32.mrf.mxu0
    %v982 = vadd.f32 0.0, %v981
    %v983 = vpop.f32.mrf.mxu0
    %v984 = vadd.f32 0.0, %v983
    %985 = vmatmul.bf16.gmra.mxu0 %v907
    %v986 = vpop.f32.mrf.mxu0
    %v987 = vadd.f32 0.0, %v986
    %v988 = vpop.f32.mrf.mxu0
    %989 = vdwg.mxu0
    %v990 = vpack.c.bf16 %v723, %v720
    %v991 = vpack.c.bf16 %v725, %v725
    %v992 = vpack.c.bf16 %v560, %v557
    %v993 = vpack.c.bf16 %v562, %v562
    %v994 = vpack.c.bf16 %v608, %v605
    %v995 = vpack.c.bf16 %v610, %v610
    %996 = vmatpush.bf16.xpose.msra.mxu0 0
    %997 = vmatpush.bf16.xpose.msra.mxu0 0
    %998 = vmatpush.bf16.xpose.msra.mxu0 0
    %999 = vmatpush.bf16.xpose.msra.mxu0 0
    %1000 = vmatpush.bf16.xpose.msra.mxu0 0
    %1001 = vmatpush.bf16.xpose.msra.mxu0 0
    %1002 = vmatpush.bf16.xpose.msra.mxu0 %v995
    %1003 = vmatpush.bf16.xpose.msra.mxu0 %v994
    %1004 = vmatmul.bf16.gmra.mxu0 %v992
    %v1005 = vpop.f32.mrf.mxu0
    %v1006 = vadd.f32 0.0, %v1005
    %v1007 = vpop.f32.mrf.mxu0
    %v1008 = vadd.f32 0.0, %v1007
    %1009 = vmatmul.bf16.gmra.mxu0 %v993
    %v1010 = vpop.f32.mrf.mxu0
    %v1011 = vadd.f32 0.0, %v1010
    %v1012 = vpop.f32.mrf.mxu0
    %1013 = vdwg.mxu0
    %v1014 = vsel %vm189, %v1006, -1e+09
    %v1015 = vsel %vm189, %v1008, -1e+09
    %v1016 = vsel %vm189, %v1011, -1e+09
    %v1017 = vsel %vm754, %v1014, -inf
    %1018 = vmax.xlane.f32.xlu0 %v1017
    %v1019 = vpop.xlane.xlu0 %1018
    %v1020 = vsel %vm754, %v1015, -inf
    %1021 = vmax.xlane.f32.xlu0 %v1020
    %v1022 = vpop.xlane.xlu0 %1021
    %v1023 = vsel %vm754, %v1016, -inf
    %1024 = vmax.xlane.f32.xlu0 %v1023
    %v1025 = vpop.xlane.xlu0 %1024
    %v1026 = vsub.f32 %v1014, %v1019
    %v1027 = vsub.f32 %v1015, %v1022
    %v1028 = vsub.f32 %v1016, %v1025
    %v1029 = vmul.f32 %v1026, 1.442695
    %v1030 = vpow.pop %v1029
    %v1031 = vmul.f32 %v1027, 1.442695
    %v1032 = vpow.pop %v1031
    %v1033 = vmul.f32 %v1028, 1.442695
    %v1034 = vpow.pop %v1033
    %v1035 = vsel %vm754, %v1030, 0.0
    %1036 = vadd.xlane.f32.xlu0 %v1035
    %v1037 = vpop.xlane.xlu0 %1036
    %v1038 = vsel %vm754, %v1032, 0.0
    %1039 = vadd.xlane.f32.xlu0 %v1038
    %v1040 = vpop.xlane.xlu0 %1039
    %v1041 = vsel %vm754, %v1034, 0.0
    %1042 = vadd.xlane.f32.xlu0 %v1041
    %v1043 = vpop.xlane.xlu0 %1042
    %v1044 = vrcp.pop %v1037
    %v1045 = vrcp.pop %v1040
    %v1046 = vrcp.pop %v1043
    %v1047 = vmul.f32 %v1030, %v1044
    %v1048 = vmul.f32 %v1032, %v1045
    %v1049 = vmul.f32 %v1034, %v1046
    %v1050 = vpack.c.bf16 %v1048, %v1047
    %v1051 = vpack.c.bf16 %v1049, %v1049
    %v1053 = vsel %vm754, %v1050, 0
    %v1056 = vsel %vm754, %v1051, 0
    %v1059 = vsel %vm796, %v991, 0
    %1061 = vmatpush.bf16.msra.mxu0 0
    %1062 = vmatpush.bf16.msra.mxu0 0
    %1063 = vmatpush.bf16.msra.mxu0 0
    %1064 = vmatpush.bf16.msra.mxu0 0
    %1065 = vmatpush.bf16.msra.mxu0 0
    %1066 = vmatpush.bf16.msra.mxu0 0
    %1067 = vmatpush.bf16.msra.mxu0 %v1059
    %1068 = vmatpush.bf16.msra.mxu0 %v990
    %1069 = vmatmul.bf16.gmra.mxu0 %v1053
    %v1070 = vpop.f32.mrf.mxu0
    %v1071 = vadd.f32 0.0, %v1070
    %v1072 = vpop.f32.mrf.mxu0
    %v1073 = vadd.f32 0.0, %v1072
    %1074 = vmatmul.bf16.gmra.mxu0 %v1056
    %v1075 = vpop.f32.mrf.mxu0
    %v1076 = vadd.f32 0.0, %v1075
    %v1077 = vpop.f32.mrf.mxu0
    %1078 = vdwg.mxu0
    %v1079 = vpack.c.bf16 %v584, %v581
    %v1080 = vpack.c.bf16 %v586, %v586
    %v1081 = vpack.c.bf16 %v632, %v629
    %v1082 = vpack.c.bf16 %v634, %v634
    %1083 = vmatpush.bf16.xpose.msra.mxu0 0
    %1084 = vmatpush.bf16.xpose.msra.mxu0 0
    %1085 = vmatpush.bf16.xpose.msra.mxu0 0
    %1086 = vmatpush.bf16.xpose.msra.mxu0 0
    %1087 = vmatpush.bf16.xpose.msra.mxu0 0
    %1088 = vmatpush.bf16.xpose.msra.mxu0 0
    %1089 = vmatpush.bf16.xpose.msra.mxu0 %v1082
    %1090 = vmatpush.bf16.xpose.msra.mxu0 %v1081
    %1091 = vmatmul.bf16.gmra.mxu0 %v1079
    %v1092 = vpop.f32.mrf.mxu0
    %v1093 = vadd.f32 0.0, %v1092
    %v1094 = vpop.f32.mrf.mxu0
    %v1095 = vadd.f32 0.0, %v1094
    %1096 = vmatmul.bf16.gmra.mxu0 %v1080
    %v1097 = vpop.f32.mrf.mxu0
    %v1098 = vadd.f32 0.0, %v1097
    %v1099 = vpop.f32.mrf.mxu0
    %1100 = vdwg.mxu0
    %v1101 = vsel %vm189, %v1093, -1e+09
    %v1102 = vsel %vm189, %v1095, -1e+09
    %v1103 = vsel %vm189, %v1098, -1e+09
    %v1104 = vsel %vm754, %v1101, -inf
    %1105 = vmax.xlane.f32.xlu0 %v1104
    %v1106 = vpop.xlane.xlu0 %1105
    %v1107 = vsel %vm754, %v1102, -inf
    %1108 = vmax.xlane.f32.xlu0 %v1107
    %v1109 = vpop.xlane.xlu0 %1108
    %v1110 = vsel %vm754, %v1103, -inf
    %1111 = vmax.xlane.f32.xlu0 %v1110
    %v1112 = vpop.xlane.xlu0 %1111
    %v1113 = vsub.f32 %v1101, %v1106
    %v1114 = vsub.f32 %v1102, %v1109
    %v1115 = vsub.f32 %v1103, %v1112
    %v1116 = vmul.f32 %v1113, 1.442695
    %v1117 = vpow.pop %v1116
    %v1118 = vmul.f32 %v1114, 1.442695
    %v1119 = vpow.pop %v1118
    %v1120 = vmul.f32 %v1115, 1.442695
    %v1121 = vpow.pop %v1120
    %v1122 = vsel %vm754, %v1117, 0.0
    %1123 = vadd.xlane.f32.xlu0 %v1122
    %v1124 = vpop.xlane.xlu0 %1123
    %v1125 = vsel %vm754, %v1119, 0.0
    %1126 = vadd.xlane.f32.xlu0 %v1125
    %v1127 = vpop.xlane.xlu0 %1126
    %v1128 = vsel %vm754, %v1121, 0.0
    %1129 = vadd.xlane.f32.xlu0 %v1128
    %v1130 = vpop.xlane.xlu0 %1129
    %v1131 = vrcp.pop %v1124
    %v1132 = vrcp.pop %v1127
    %v1133 = vrcp.pop %v1130
    %v1134 = vmul.f32 %v1117, %v1131
    %v1135 = vmul.f32 %v1119, %v1132
    %v1136 = vmul.f32 %v1121, %v1133
    %v1137 = vpack.c.bf16 %v1135, %v1134
    %v1138 = vpack.c.bf16 %v1136, %v1136
    %v1140 = vsel %vm754, %v1137, 0
    %v1143 = vsel %vm754, %v1138, 0
    %1145 = vmatpush.bf16.msra.mxu0 0
    %1146 = vmatpush.bf16.msra.mxu0 0
    %1147 = vmatpush.bf16.msra.mxu0 0
    %1148 = vmatpush.bf16.msra.mxu0 0
    %1149 = vmatpush.bf16.msra.mxu0 0
    %1150 = vmatpush.bf16.msra.mxu0 0
    %1151 = vmatpush.bf16.msra.mxu0 %v1059
    %1152 = vmatpush.bf16.msra.mxu0 %v990
    %1153 = vmatmul.bf16.gmra.mxu0 %v1140
    %v1154 = vpop.f32.mrf.mxu0
    %v1155 = vadd.f32 0.0, %v1154
    %v1156 = vpop.f32.mrf.mxu0
    %v1157 = vadd.f32 0.0, %v1156
    %1158 = vmatmul.bf16.gmra.mxu0 %v1143
    %v1159 = vpop.f32.mrf.mxu0
    %v1160 = vadd.f32 0.0, %v1159
    %v1161 = vpop.f32.mrf.mxu0
    %1162 = vdwg.mxu0
    %v1163 = vsel %vm902, %v1071, %v1155
    %v1164 = vsel %vm902, %v1073, %v1157
    %v1165 = vsel %vm902, %v1076, %v1160
    %v1166 = vpack.c.bf16 %v1164, %v1163
    %v1167 = vpack.c.bf16 %v1165, %v1165
    %1168 = vmatpush.bf16.msra.mxu0 %v963
    %1169 = vmatpush.bf16.msra.mxu0 %v962
    %1170 = vmatpush.bf16.msra.mxu0 %v961
    %1171 = vmatpush.bf16.msra.mxu0 %v960
    %1172 = vmatpush.bf16.msra.mxu0 %v959
    %1173 = vmatpush.bf16.msra.mxu0 %v958
    %1174 = vmatpush.bf16.msra.mxu0 %v957
    %1175 = vmatpush.bf16.msra.mxu0 %v956
    %1176 = vmatmul.bf16.gmra.mxu0 %v1166
    %v1177 = vpop.f32.mrf.mxu0
    %v1178 = vadd.f32 0.0, %v1177
    %v1179 = vpop.f32.mrf.mxu0
    %v1180 = vadd.f32 0.0, %v1179
    %1181 = vmatmul.bf16.gmra.mxu0 %v1167
    %v1182 = vpop.f32.mrf.mxu0
    %v1183 = vadd.f32 0.0, %v1182
    %v1184 = vpop.f32.mrf.mxu0
    %1185 = vdwg.mxu0
    %v1186 = vadd.f32 %v173, %v982
    %v1187 = vadd.f32 %v175, %v984
    %v1188 = vadd.f32 %v178, %v987
    %v1189 = vadd.f32 %v180, %v1178
    %v1190 = vadd.f32 %v183, %v1180
    %v1191 = vadd.f32 %v185, %v1183
    %v1192 = vld [vmem:[#allocation5 + $0x100] sm:$0x1]
    %v1193 = vunpack.c.l.bf16 %v1192
    %v1194 = vperm.slane %v1193, 0
    %v1195 = vadd.f32 %v1186, %v1194
    %v1196 = vadd.f32 %v1187, %v1194
    %v1197 = vadd.f32 %v1188, %v1194
    %v1198 = vadd.f32 %v1189, %v1194
    %v1199 = vadd.f32 %v1190, %v1194
    %v1200 = vadd.f32 %v1191, %v1194
    %v1201 = vld [vmem:[#allocation5 + $0x108] sm:$0x1]
    %v1202 = vld [vmem:[#allocation5 + $0x110] sm:$0x1]
    %1203 = vadd.xlane.f32.xlu0 %v1195
    %v1204 = vpop.xlane.xlu0 %1203
    %1205 = vadd.xlane.f32.xlu0 %v1196
    %v1206 = vpop.xlane.xlu0 %1205
    %1207 = vadd.xlane.f32.xlu0 %v1197
    %v1208 = vpop.xlane.xlu0 %1207
    %1209 = vadd.xlane.f32.xlu0 %v1198
    %v1210 = vpop.xlane.xlu0 %1209
    %1211 = vadd.xlane.f32.xlu0 %v1199
    %v1212 = vpop.xlane.xlu0 %1211
    %1213 = vadd.xlane.f32.xlu0 %v1200
    %v1214 = vpop.xlane.xlu0 %1213
    %v1215 = vmul.f32 %v1204, %v210
    %v1216 = vmul.f32 %v1206, %v210
    %v1217 = vmul.f32 %v1208, %v210
    %v1218 = vmul.f32 %v1210, %v210
    %v1219 = vmul.f32 %v1212, %v210
    %v1220 = vmul.f32 %v1214, %v210
    %v1221 = vsub.f32 %v1195, %v1215
    %v1222 = vsub.f32 %v1196, %v1216
    %v1223 = vsub.f32 %v1197, %v1217
    %v1224 = vsub.f32 %v1198, %v1218
    %v1225 = vsub.f32 %v1199, %v1219
    %v1226 = vsub.f32 %v1200, %v1220
    %v1227 = vmul.f32 %v1221, %v1221
    %v1228 = vmul.f32 %v1222, %v1222
    %v1229 = vmul.f32 %v1223, %v1223
    %v1230 = vmul.f32 %v1224, %v1224
    %v1231 = vmul.f32 %v1225, %v1225
    %v1232 = vmul.f32 %v1226, %v1226
    %1233 = vadd.xlane.f32.xlu0 %v1227
    %v1234 = vpop.xlane.xlu0 %1233
    %1235 = vadd.xlane.f32.xlu0 %v1228
    %v1236 = vpop.xlane.xlu0 %1235
    %1237 = vadd.xlane.f32.xlu0 %v1229
    %v1238 = vpop.xlane.xlu0 %1237
    %1239 = vadd.xlane.f32.xlu0 %v1230
    %v1240 = vpop.xlane.xlu0 %1239
    %1241 = vadd.xlane.f32.xlu0 %v1231
    %v1242 = vpop.xlane.xlu0 %1241
    %1243 = vadd.xlane.f32.xlu0 %v1232
    %v1244 = vpop.xlane.xlu0 %1243
    %v1245 = vmul.f32 %v1234, %v210
    %v1246 = vmul.f32 %v1236, %v210
    %v1247 = vmul.f32 %v1238, %v210
    %v1248 = vmul.f32 %v1240, %v210
    %v1249 = vmul.f32 %v1242, %v210
    %v1250 = vmul.f32 %v1244, %v210
    %v1251 = vadd.f32 %v1245, 1e-06
    %v1252 = vadd.f32 %v1246, 1e-06
    %v1253 = vadd.f32 %v1247, 1e-06
    %v1254 = vadd.f32 %v1248, 1e-06
    %v1255 = vadd.f32 %v1249, 1e-06
    %v1256 = vadd.f32 %v1250, 1e-06
    %v1257 = vrsqrt.pop %v1251
    %v1258 = vmul.f32 %v1257, %v1251
    %v1259 = vmul.f32 %v1258, %v1257
    %v1260 = vmul.f32 0.5, %v1259
    %v1261 = vsub.f32 1.5, %v1260
    %v1262 = vmul.f32 %v1257, %v1261
    %vm1263 = vweird.f32 %v1251
    %vm1264 = vweird.f32 %v1257
    %vm1265 = vmor %vm1263, %vm1264
    %v1266 = vsel %vm1265, %v1257, %v1262
    %v1267 = vrsqrt.pop %v1252
    %v1268 = vmul.f32 %v1267, %v1252
    %v1269 = vmul.f32 %v1268, %v1267
    %v1270 = vmul.f32 0.5, %v1269
    %v1271 = vsub.f32 1.5, %v1270
    %v1272 = vmul.f32 %v1267, %v1271
    %vm1273 = vweird.f32 %v1252
    %vm1274 = vweird.f32 %v1267
    %vm1275 = vmor %vm1273, %vm1274
    %v1276 = vsel %vm1275, %v1267, %v1272
    %v1277 = vrsqrt.pop %v1253
    %v1278 = vmul.f32 %v1277, %v1253
    %v1279 = vmul.f32 %v1278, %v1277
    %v1280 = vmul.f32 0.5, %v1279
    %v1281 = vsub.f32 1.5, %v1280
    %v1282 = vmul.f32 %v1277, %v1281
    %vm1283 = vweird.f32 %v1253
    %vm1284 = vweird.f32 %v1277
    %vm1285 = vmor %vm1283, %vm1284
    %v1286 = vsel %vm1285, %v1277, %v1282
    %v1287 = vrsqrt.pop %v1254
    %v1288 = vmul.f32 %v1287, %v1254
    %v1289 = vmul.f32 %v1288, %v1287
    %v1290 = vmul.f32 0.5, %v1289
    %v1291 = vsub.f32 1.5, %v1290
    %v1292 = vmul.f32 %v1287, %v1291
    %vm1293 = vweird.f32 %v1254
    %vm1294 = vweird.f32 %v1287
    %vm1295 = vmor %vm1293, %vm1294
    %v1296 = vsel %vm1295, %v1287, %v1292
    %v1297 = vrsqrt.pop %v1255
    %v1298 = vmul.f32 %v1297, %v1255
    %v1299 = vmul.f32 %v1298, %v1297
    %v1300 = vmul.f32 0.5, %v1299
    %v1301 = vsub.f32 1.5, %v1300
    %v1302 = vmul.f32 %v1297, %v1301
    %vm1303 = vweird.f32 %v1255
    %vm1304 = vweird.f32 %v1297
    %vm1305 = vmor %vm1303, %vm1304
    %v1306 = vsel %vm1305, %v1297, %v1302
    %v1307 = vrsqrt.pop %v1256
    %v1308 = vmul.f32 %v1307, %v1256
    %v1309 = vmul.f32 %v1308, %v1307
    %v1310 = vmul.f32 0.5, %v1309
    %v1311 = vsub.f32 1.5, %v1310
    %v1312 = vmul.f32 %v1307, %v1311
    %vm1313 = vweird.f32 %v1256
    %vm1314 = vweird.f32 %v1307
    %vm1315 = vmor %vm1313, %vm1314
    %v1316 = vsel %vm1315, %v1307, %v1312
    %v1317 = vmul.f32 %v1221, %v1266
    %v1318 = vmul.f32 %v1222, %v1276
    %v1319 = vmul.f32 %v1223, %v1286
    %v1320 = vmul.f32 %v1224, %v1296
    %v1321 = vmul.f32 %v1225, %v1306
    %v1322 = vmul.f32 %v1226, %v1316
    %v1323 = vunpack.c.l.bf16 %v1201
    %v1324 = vperm.slane %v1323, 0
    %v1325 = vmul.f32 %v1317, %v1324
    %v1326 = vmul.f32 %v1318, %v1324
    %v1327 = vmul.f32 %v1319, %v1324
    %v1328 = vmul.f32 %v1320, %v1324
    %v1329 = vmul.f32 %v1321, %v1324
    %v1330 = vmul.f32 %v1322, %v1324
    %v1331 = vunpack.c.l.bf16 %v1202
    %v1332 = vperm.slane %v1331, 0
    %v1333 = vadd.f32 %v1325, %v1332
    %v1334 = vadd.f32 %v1326, %v1332
    %v1335 = vadd.f32 %v1327, %v1332
    %v1336 = vadd.f32 %v1328, %v1332
    %v1337 = vadd.f32 %v1329, %v1332
    %v1338 = vadd.f32 %v1330, %v1332
    %v1339 = vpack.c.bf16 %v1334, %v1333
    %v1340 = vpack.c.bf16 %v1336, %v1335
    %v1341 = vpack.c.bf16 %v1338, %v1337
    %v1342 = vld [vmem:[#allocation7 + $0x120] sm:$0xff]
    %v1343 = vld [vmem:[#allocation7 + $0x130] sm:$0xff]
    %v1344 = vld [vmem:[#allocation7 + $0x140] sm:$0xff]
    %v1345 = vld [vmem:[#allocation7 + $0x150] sm:$0xff]
    %v1346 = vld [vmem:[#allocation7 + $0x160] sm:$0xff]
    %v1347 = vld [vmem:[#allocation7 + $0x170] sm:$0xff]
    %v1348 = vld [vmem:[#allocation7 + $0x180] sm:$0xff]
    %v1349 = vld [vmem:[#allocation7 + $0x190] sm:$0xff]
    %v1350 = vld [vmem:[#allocation7 + $0x1a0] sm:$0xff]
    %v1351 = vld [vmem:[#allocation7 + $0x1b0] sm:$0xff]
    %v1352 = vld [vmem:[#allocation7 + $0x1c0] sm:$0xff]
    %v1353 = vld [vmem:[#allocation7 + $0x1d0] sm:$0xff]
    %v1354 = vld [vmem:[#allocation7 + $0x1e0] sm:$0xff]
    %v1355 = vld [vmem:[#allocation7 + $0x1f0] sm:$0xff]
    %v1356 = vld [vmem:[#allocation7 + $0x200] sm:$0xff]
    %v1357 = vld [vmem:[#allocation7 + $0x210] sm:$0xff]
    %v1358 = vld [vmem:[#allocation7 + $0x220] sm:$0x11]
    %v1359 = vunpack.c.l.bf16 %v1358
    %v1360 = vunpack.c.h.bf16 %v1358
    %v1361 = vperm.slane %v1359, 0
    %v1362 = vperm.slane %v1360, 0
    %v1379 = vunpack.c.l.b16 %v1342
    %v1380 = vunpack.c.h.b16 %v1342
    %v1381 = vunpack.c.l.b16 %v1343
    %v1382 = vunpack.c.h.b16 %v1343
    %v1383 = vunpack.c.l.b16 %v1344
    %v1384 = vunpack.c.h.b16 %v1344
    %v1385 = vunpack.c.l.b16 %v1345
    %v1386 = vunpack.c.h.b16 %v1345
    %v1387 = vunpack.c.l.b16 %v1346
    %v1388 = vunpack.c.h.b16 %v1346
    %v1389 = vunpack.c.l.b16 %v1347
    %v1390 = vunpack.c.h.b16 %v1347
    %v1391 = vunpack.c.l.b16 %v1348
    %v1392 = vunpack.c.h.b16 %v1348
    %v1393 = vunpack.c.l.b16 %v1349
    %v1394 = vunpack.c.h.b16 %v1349
    %v1395 = vunpack.c.l.b16 %v1350
    %v1396 = vunpack.c.h.b16 %v1350
    %v1397 = vunpack.c.l.b16 %v1351
    %v1398 = vunpack.c.h.b16 %v1351
    %v1399 = vunpack.c.l.b16 %v1352
    %v1400 = vunpack.c.h.b16 %v1352
    %v1401 = vunpack.c.l.b16 %v1353
    %v1402 = vunpack.c.h.b16 %v1353
    %v1403 = vunpack.c.l.b16 %v1354
    %v1404 = vunpack.c.h.b16 %v1354
    %v1405 = vunpack.c.l.b16 %v1355
    %v1406 = vunpack.c.h.b16 %v1355
    %v1407 = vunpack.c.l.b16 %v1356
    %v1408 = vunpack.c.h.b16 %v1356
    %v1409 = vunpack.c.l.b16 %v1357
    %v1410 = vunpack.c.h.b16 %v1357
    %v1411 = vpack.c.b16 %v1381, %v1379
    %v1412 = vpack.c.b16 %v1382, %v1380
    %v1413 = vpack.c.b16 %v1385, %v1383
    %v1414 = vpack.c.b16 %v1386, %v1384
    %v1415 = vpack.c.b16 %v1389, %v1387
    %v1416 = vpack.c.b16 %v1390, %v1388
    %v1417 = vpack.c.b16 %v1393, %v1391
    %v1418 = vpack.c.b16 %v1394, %v1392
    %v1419 = vpack.c.b16 %v1397, %v1395
    %v1420 = vpack.c.b16 %v1398, %v1396
    %v1421 = vpack.c.b16 %v1401, %v1399
    %v1422 = vpack.c.b16 %v1402, %v1400
    %v1423 = vpack.c.b16 %v1405, %v1403
    %v1424 = vpack.c.b16 %v1406, %v1404
    %v1425 = vpack.c.b16 %v1409, %v1407
    %v1426 = vpack.c.b16 %v1410, %v1408
    %1443 = vmatpush.bf16.msra.mxu0 %v1425
    %1444 = vmatpush.bf16.msra.mxu0 %v1423
    %1445 = vmatpush.bf16.msra.mxu0 %v1421
    %1446 = vmatpush.bf16.msra.mxu0 %v1419
    %1447 = vmatpush.bf16.msra.mxu0 %v1417
    %1448 = vmatpush.bf16.msra.mxu0 %v1415
    %1449 = vmatpush.bf16.msra.mxu0 %v1413
    %1450 = vmatpush.bf16.msra.mxu0 %v1411
    %1451 = vmatmul.bf16.gmra.mxu0 %v1339
    %v1452 = vpop.f32.mrf.mxu0
    %v1453 = vadd.f32 %v1361, %v1452
    %v1454 = vpop.f32.mrf.mxu0
    %v1455 = vadd.f32 %v1361, %v1454
    %1456 = vmatmul.bf16.gmra.mxu0 %v1340
    %v1457 = vpop.f32.mrf.mxu0
    %v1458 = vadd.f32 %v1361, %v1457
    %v1459 = vpop.f32.mrf.mxu0
    %v1460 = vadd.f32 %v1361, %v1459
    %1461 = vmatmul.bf16.gmra.mxu0 %v1341
    %v1462 = vpop.f32.mrf.mxu0
    %v1463 = vadd.f32 %v1361, %v1462
    %v1464 = vpop.f32.mrf.mxu0
    %v1465 = vadd.f32 %v1361, %v1464
    %1466 = vdwg.mxu0
    %1467 = vmatpush.bf16.msra.mxu0 %v1426
    %1468 = vmatpush.bf16.msra.mxu0 %v1424
    %1469 = vmatpush.bf16.msra.mxu0 %v1422
    %1470 = vmatpush.bf16.msra.mxu0 %v1420
    %1471 = vmatpush.bf16.msra.mxu0 %v1418
    %1472 = vmatpush.bf16.msra.mxu0 %v1416
    %1473 = vmatpush.bf16.msra.mxu0 %v1414
    %1474 = vmatpush.bf16.msra.mxu0 %v1412
    %1475 = vmatmul.bf16.gmra.mxu0 %v1339
    %v1476 = vpop.f32.mrf.mxu0
    %v1477 = vadd.f32 %v1362, %v1476
    %v1478 = vpop.f32.mrf.mxu0
    %v1479 = vadd.f32 %v1362, %v1478
    %1480 = vmatmul.bf16.gmra.mxu0 %v1340
    %v1481 = vpop.f32.mrf.mxu0
    %v1482 = vadd.f32 %v1362, %v1481
    %v1483 = vpop.f32.mrf.mxu0
    %v1484 = vadd.f32 %v1362, %v1483
    %1485 = vmatmul.bf16.gmra.mxu0 %v1341
    %v1486 = vpop.f32.mrf.mxu0
    %v1487 = vadd.f32 %v1362, %v1486
    %v1488 = vpop.f32.mrf.mxu0
    %v1489 = vadd.f32 %v1362, %v1488
    %1490 = vdwg.mxu0
    %v1491 = vmul.f32 %v1453, 0.5
    %v1492 = vmul.f32 %v1477, 0.5
    %v1493 = vmul.f32 %v1455, 0.5
    %v1494 = vmul.f32 %v1479, 0.5
    %v1495 = vmul.f32 %v1458, 0.5
    %v1496 = vmul.f32 %v1482, 0.5
    %v1497 = vmul.f32 %v1460, 0.5
    %v1498 = vmul.f32 %v1484, 0.5
    %v1499 = vmul.f32 %v1463, 0.5
    %v1500 = vmul.f32 %v1487, 0.5
    %v1501 = vmul.f32 %v1465, 0.5
    %v1502 = vmul.f32 %v1489, 0.5
    %v1503 = vmul.f32 %v1453, 0.70710677
    %v1504 = vmul.f32 %v1477, 0.70710677
    %v1505 = vmul.f32 %v1455, 0.70710677
    %v1506 = vmul.f32 %v1479, 0.70710677
    %v1507 = vmul.f32 %v1458, 0.70710677
    %v1508 = vmul.f32 %v1482, 0.70710677
    %v1509 = vmul.f32 %v1460, 0.70710677
    %v1510 = vmul.f32 %v1484, 0.70710677
    %v1511 = vmul.f32 %v1463, 0.70710677
    %v1512 = vmul.f32 %v1487, 0.70710677
    %v1513 = vmul.f32 %v1465, 0.70710677
    %v1514 = vmul.f32 %v1489, 0.70710677
    %v1515 = vmul.f32 %v1503, %v1503
    %v1516 = vmin.f32 16.0, %v1515
    %v1517 = vmul.f32 %v1516, 2.1237322e-06
    %v1518 = vadd.f32 %v1517, 0.00028619796
    %v1519 = vmul.f32 %v1516, %v1518
    %v1520 = vadd.f32 %v1519, 0.0036580483
    %v1521 = vmul.f32 %v1516, %v1520
    %v1522 = vadd.f32 %v1521, 0.05243302
    %v1523 = vmul.f32 %v1516, %v1522
    %v1524 = vadd.f32 %v1523, 0.18741608
    %v1525 = vmul.f32 %v1516, %v1524
    %v1526 = vadd.f32 %v1525, 1.1283791
    %v1527 = vmul.f32 %v1503, %v1526
    %v1528 = vmul.f32 %v1516, 3.8918573e-05
    %v1529 = vadd.f32 %v1528, 0.001143296
    %v1530 = vmul.f32 %v1516, %v1529
    %v1531 = vadd.f32 %v1530, 0.014752088
    %v1532 = vmul.f32 %v1516, %v1531
    %v1533 = vadd.f32 %v1532, 0.112945676
    %v1534 = vmul.f32 %v1516, %v1533
    %v1535 = vadd.f32 %v1534, 0.4994258
    %v1536 = vmul.f32 %v1516, %v1535
    %v1537 = vadd.f32 %v1536, 1.0
    %v1538 = vrcp.pop %v1537
    %v1539 = vmul.f32 %v1537, %v1538
    %v1540 = vsub.f32 1.0, %v1539
    %v1541 = vmul.f32 %v1538, %v1540
    %v1542 = vadd.f32 %v1538, %v1541
    %vm1543 = vweird.f32 %v1537
    %vm1544 = vweird.f32 %v1538
    %vm1545 = vmor %vm1543, %vm1544
    %v1546 = vsel %vm1545, %v1538, %v1542
    %v1547 = vand.u32 2147483647, %v1537
    %vm1548 = vcmp.eq.f32.partialorder %v1547, 8.507059e+37
    %v1549 = vand.u32 %v1537, 2147483648
    %v1550 = vor.u32 1.1754944e-38, %v1549
    %v1551 = vsel %vm1548, %v1550, %v1546
    %v1552 = vmul.f32 %v1527, %v1551
    %v1553 = vmin.f32 %v1552, 1.0
    %v1554 = vmax.f32 %v1553, -1.0
    %v1555 = vmul.f32 %v1504, %v1504
    %v1556 = vmin.f32 16.0, %v1555
    %v1557 = vmul.f32 %v1556, 2.1237322e-06
    %v1558 = vadd.f32 %v1557, 0.00028619796
    %v1559 = vmul.f32 %v1556, %v1558
    %v1560 = vadd.f32 %v1559, 0.0036580483
    %v1561 = vmul.f32 %v1556, %v1560
    %v1562 = vadd.f32 %v1561, 0.05243302
    %v1563 = vmul.f32 %v1556, %v1562
    %v1564 = vadd.f32 %v1563, 0.18741608
    %v1565 = vmul.f32 %v1556, %v1564
    %v1566 = vadd.f32 %v1565, 1.1283791
    %v1567 = vmul.f32 %v1504, %v1566
    %v1568 = vmul.f32 %v1556, 3.8918573e-05
    %v1569 = vadd.f32 %v1568, 0.001143296
    %v1570 = vmul.f32 %v1556, %v1569
    %v1571 = vadd.f32 %v1570, 0.014752088
    %v1572 = vmul.f32 %v1556, %v1571
    %v1573 = vadd.f32 %v1572, 0.112945676
    %v1574 = vmul.f32 %v1556, %v1573
    %v1575 = vadd.f32 %v1574, 0.4994258
    %v1576 = vmul.f32 %v1556, %v1575
    %v1577 = vadd.f32 %v1576, 1.0
    %v1578 = vrcp.pop %v1577
    %v1579 = vmul.f32 %v1577, %v1578
    %v1580 = vsub.f32 1.0, %v1579
    %v1581 = vmul.f32 %v1578, %v1580
    %v1582 = vadd.f32 %v1578, %v1581
    %vm1583 = vweird.f32 %v1577
    %vm1584 = vweird.f32 %v1578
    %vm1585 = vmor %vm1583, %vm1584
    %v1586 = vsel %vm1585, %v1578, %v1582
    %v1587 = vand.u32 2147483647, %v1577
    %vm1588 = vcmp.eq.f32.partialorder %v1587, 8.507059e+37
    %v1589 = vand.u32 %v1577, 2147483648
    %v1590 = vor.u32 1.1754944e-38, %v1589
    %v1591 = vsel %vm1588, %v1590, %v1586
    %v1592 = vmul.f32 %v1567, %v1591
    %v1593 = vmin.f32 %v1592, 1.0
    %v1594 = vmax.f32 %v1593, -1.0
    %v1595 = vmul.f32 %v1505, %v1505
    %v1596 = vmin.f32 16.0, %v1595
    %v1597 = vmul.f32 %v1596, 2.1237322e-06
    %v1598 = vadd.f32 %v1597, 0.00028619796
    %v1599 = vmul.f32 %v1596, %v1598
    %v1600 = vadd.f32 %v1599, 0.0036580483
    %v1601 = vmul.f32 %v1596, %v1600
    %v1602 = vadd.f32 %v1601, 0.05243302
    %v1603 = vmul.f32 %v1596, %v1602
    %v1604 = vadd.f32 %v1603, 0.18741608
    %v1605 = vmul.f32 %v1596, %v1604
    %v1606 = vadd.f32 %v1605, 1.1283791
    %v1607 = vmul.f32 %v1505, %v1606
    %v1608 = vmul.f32 %v1596, 3.8918573e-05
    %v1609 = vadd.f32 %v1608, 0.001143296
    %v1610 = vmul.f32 %v1596, %v1609
    %v1611 = vadd.f32 %v1610, 0.014752088
    %v1612 = vmul.f32 %v1596, %v1611
    %v1613 = vadd.f32 %v1612, 0.112945676
    %v1614 = vmul.f32 %v1596, %v1613
    %v1615 = vadd.f32 %v1614, 0.4994258
    %v1616 = vmul.f32 %v1596, %v1615
    %v1617 = vadd.f32 %v1616, 1.0
    %v1618 = vrcp.pop %v1617
    %v1619 = vmul.f32 %v1617, %v1618
    %v1620 = vsub.f32 1.0, %v1619
    %v1621 = vmul.f32 %v1618, %v1620
    %v1622 = vadd.f32 %v1618, %v1621
    %vm1623 = vweird.f32 %v1617
    %vm1624 = vweird.f32 %v1618
    %vm1625 = vmor %vm1623, %vm1624
    %v1626 = vsel %vm1625, %v1618, %v1622
    %v1627 = vand.u32 2147483647, %v1617
    %vm1628 = vcmp.eq.f32.partialorder %v1627, 8.507059e+37
    %v1629 = vand.u32 %v1617, 2147483648
    %v1630 = vor.u32 1.1754944e-38, %v1629
    %v1631 = vsel %vm1628, %v1630, %v1626
    %v1632 = vmul.f32 %v1607, %v1631
    %v1633 = vmin.f32 %v1632, 1.0
    %v1634 = vmax.f32 %v1633, -1.0
    %v1635 = vmul.f32 %v1506, %v1506
    %v1636 = vmin.f32 16.0, %v1635
    %v1637 = vmul.f32 %v1636, 2.1237322e-06
    %v1638 = vadd.f32 %v1637, 0.00028619796
    %v1639 = vmul.f32 %v1636, %v1638
    %v1640 = vadd.f32 %v1639, 0.0036580483
    %v1641 = vmul.f32 %v1636, %v1640
    %v1642 = vadd.f32 %v1641, 0.05243302
    %v1643 = vmul.f32 %v1636, %v1642
    %v1644 = vadd.f32 %v1643, 0.18741608
    %v1645 = vmul.f32 %v1636, %v1644
    %v1646 = vadd.f32 %v1645, 1.1283791
    %v1647 = vmul.f32 %v1506, %v1646
    %v1648 = vmul.f32 %v1636, 3.8918573e-05
    %v1649 = vadd.f32 %v1648, 0.001143296
    %v1650 = vmul.f32 %v1636, %v1649
    %v1651 = vadd.f32 %v1650, 0.014752088
    %v1652 = vmul.f32 %v1636, %v1651
    %v1653 = vadd.f32 %v1652, 0.112945676
    %v1654 = vmul.f32 %v1636, %v1653
    %v1655 = vadd.f32 %v1654, 0.4994258
    %v1656 = vmul.f32 %v1636, %v1655
    %v1657 = vadd.f32 %v1656, 1.0
    %v1658 = vrcp.pop %v1657
    %v1659 = vmul.f32 %v1657, %v1658
    %v1660 = vsub.f32 1.0, %v1659
    %v1661 = vmul.f32 %v1658, %v1660
    %v1662 = vadd.f32 %v1658, %v1661
    %vm1663 = vweird.f32 %v1657
    %vm1664 = vweird.f32 %v1658
    %vm1665 = vmor %vm1663, %vm1664
    %v1666 = vsel %vm1665, %v1658, %v1662
    %v1667 = vand.u32 2147483647, %v1657
    %vm1668 = vcmp.eq.f32.partialorder %v1667, 8.507059e+37
    %v1669 = vand.u32 %v1657, 2147483648
    %v1670 = vor.u32 1.1754944e-38, %v1669
    %v1671 = vsel %vm1668, %v1670, %v1666
    %v1672 = vmul.f32 %v1647, %v1671
    %v1673 = vmin.f32 %v1672, 1.0
    %v1674 = vmax.f32 %v1673, -1.0
    %v1675 = vmul.f32 %v1507, %v1507
    %v1676 = vmin.f32 16.0, %v1675
    %v1677 = vmul.f32 %v1676, 2.1237322e-06
    %v1678 = vadd.f32 %v1677, 0.00028619796
    %v1679 = vmul.f32 %v1676, %v1678
    %v1680 = vadd.f32 %v1679, 0.0036580483
    %v1681 = vmul.f32 %v1676, %v1680
    %v1682 = vadd.f32 %v1681, 0.05243302
    %v1683 = vmul.f32 %v1676, %v1682
    %v1684 = vadd.f32 %v1683, 0.18741608
    %v1685 = vmul.f32 %v1676, %v1684
    %v1686 = vadd.f32 %v1685, 1.1283791
    %v1687 = vmul.f32 %v1507, %v1686
    %v1688 = vmul.f32 %v1676, 3.8918573e-05
    %v1689 = vadd.f32 %v1688, 0.001143296
    %v1690 = vmul.f32 %v1676, %v1689
    %v1691 = vadd.f32 %v1690, 0.014752088
    %v1692 = vmul.f32 %v1676, %v1691
    %v1693 = vadd.f32 %v1692, 0.112945676
    %v1694 = vmul.f32 %v1676, %v1693
    %v1695 = vadd.f32 %v1694, 0.4994258
    %v1696 = vmul.f32 %v1676, %v1695
    %v1697 = vadd.f32 %v1696, 1.0
    %v1698 = vrcp.pop %v1697
    %v1699 = vmul.f32 %v1697, %v1698
    %v1700 = vsub.f32 1.0, %v1699
    %v1701 = vmul.f32 %v1698, %v1700
    %v1702 = vadd.f32 %v1698, %v1701
    %vm1703 = vweird.f32 %v1697
    %vm1704 = vweird.f32 %v1698
    %vm1705 = vmor %vm1703, %vm1704
    %v1706 = vsel %vm1705, %v1698, %v1702
    %v1707 = vand.u32 2147483647, %v1697
    %vm1708 = vcmp.eq.f32.partialorder %v1707, 8.507059e+37
    %v1709 = vand.u32 %v1697, 2147483648
    %v1710 = vor.u32 1.1754944e-38, %v1709
    %v1711 = vsel %vm1708, %v1710, %v1706
    %v1712 = vmul.f32 %v1687, %v1711
    %v1713 = vmin.f32 %v1712, 1.0
    %v1714 = vmax.f32 %v1713, -1.0
    %v1715 = vmul.f32 %v1508, %v1508
    %v1716 = vmin.f32 16.0, %v1715
    %v1717 = vmul.f32 %v1716, 2.1237322e-06
    %v1718 = vadd.f32 %v1717, 0.00028619796
    %v1719 = vmul.f32 %v1716, %v1718
    %v1720 = vadd.f32 %v1719, 0.0036580483
    %v1721 = vmul.f32 %v1716, %v1720
    %v1722 = vadd.f32 %v1721, 0.05243302
    %v1723 = vmul.f32 %v1716, %v1722
    %v1724 = vadd.f32 %v1723, 0.18741608
    %v1725 = vmul.f32 %v1716, %v1724
    %v1726 = vadd.f32 %v1725, 1.1283791
    %v1727 = vmul.f32 %v1508, %v1726
    %v1728 = vmul.f32 %v1716, 3.8918573e-05
    %v1729 = vadd.f32 %v1728, 0.001143296
    %v1730 = vmul.f32 %v1716, %v1729
    %v1731 = vadd.f32 %v1730, 0.014752088
    %v1732 = vmul.f32 %v1716, %v1731
    %v1733 = vadd.f32 %v1732, 0.112945676
    %v1734 = vmul.f32 %v1716, %v1733
    %v1735 = vadd.f32 %v1734, 0.4994258
    %v1736 = vmul.f32 %v1716, %v1735
    %v1737 = vadd.f32 %v1736, 1.0
    %v1738 = vrcp.pop %v1737
    %v1739 = vmul.f32 %v1737, %v1738
    %v1740 = vsub.f32 1.0, %v1739
    %v1741 = vmul.f32 %v1738, %v1740
    %v1742 = vadd.f32 %v1738, %v1741
    %vm1743 = vweird.f32 %v1737
    %vm1744 = vweird.f32 %v1738
    %vm1745 = vmor %vm1743, %vm1744
    %v1746 = vsel %vm1745, %v1738, %v1742
    %v1747 = vand.u32 2147483647, %v1737
    %vm1748 = vcmp.eq.f32.partialorder %v1747, 8.507059e+37
    %v1749 = vand.u32 %v1737, 2147483648
    %v1750 = vor.u32 1.1754944e-38, %v1749
    %v1751 = vsel %vm1748, %v1750, %v1746
    %v1752 = vmul.f32 %v1727, %v1751
    %v1753 = vmin.f32 %v1752, 1.0
    %v1754 = vmax.f32 %v1753, -1.0
    %v1755 = vmul.f32 %v1509, %v1509
    %v1756 = vmin.f32 16.0, %v1755
    %v1757 = vmul.f32 %v1756, 2.1237322e-06
    %v1758 = vadd.f32 %v1757, 0.00028619796
    %v1759 = vmul.f32 %v1756, %v1758
    %v1760 = vadd.f32 %v1759, 0.0036580483
    %v1761 = vmul.f32 %v1756, %v1760
    %v1762 = vadd.f32 %v1761, 0.05243302
    %v1763 = vmul.f32 %v1756, %v1762
    %v1764 = vadd.f32 %v1763, 0.18741608
    %v1765 = vmul.f32 %v1756, %v1764
    %v1766 = vadd.f32 %v1765, 1.1283791
    %v1767 = vmul.f32 %v1509, %v1766
    %v1768 = vmul.f32 %v1756, 3.8918573e-05
    %v1769 = vadd.f32 %v1768, 0.001143296
    %v1770 = vmul.f32 %v1756, %v1769
    %v1771 = vadd.f32 %v1770, 0.014752088
    %v1772 = vmul.f32 %v1756, %v1771
    %v1773 = vadd.f32 %v1772, 0.112945676
    %v1774 = vmul.f32 %v1756, %v1773
    %v1775 = vadd.f32 %v1774, 0.4994258
    %v1776 = vmul.f32 %v1756, %v1775
    %v1777 = vadd.f32 %v1776, 1.0
    %v1778 = vrcp.pop %v1777
    %v1779 = vmul.f32 %v1777, %v1778
    %v1780 = vsub.f32 1.0, %v1779
    %v1781 = vmul.f32 %v1778, %v1780
    %v1782 = vadd.f32 %v1778, %v1781
    %vm1783 = vweird.f32 %v1777
    %vm1784 = vweird.f32 %v1778
    %vm1785 = vmor %vm1783, %vm1784
    %v1786 = vsel %vm1785, %v1778, %v1782
    %v1787 = vand.u32 2147483647, %v1777
    %vm1788 = vcmp.eq.f32.partialorder %v1787, 8.507059e+37
    %v1789 = vand.u32 %v1777, 2147483648
    %v1790 = vor.u32 1.1754944e-38, %v1789
    %v1791 = vsel %vm1788, %v1790, %v1786
    %v1792 = vmul.f32 %v1767, %v1791
    %v1793 = vmin.f32 %v1792, 1.0
    %v1794 = vmax.f32 %v1793, -1.0
    %v1795 = vmul.f32 %v1510, %v1510
    %v1796 = vmin.f32 16.0, %v1795
    %v1797 = vmul.f32 %v1796, 2.1237322e-06
    %v1798 = vadd.f32 %v1797, 0.00028619796
    %v1799 = vmul.f32 %v1796, %v1798
    %v1800 = vadd.f32 %v1799, 0.0036580483
    %v1801 = vmul.f32 %v1796, %v1800
    %v1802 = vadd.f32 %v1801, 0.05243302
    %v1803 = vmul.f32 %v1796, %v1802
    %v1804 = vadd.f32 %v1803, 0.18741608
    %v1805 = vmul.f32 %v1796, %v1804
    %v1806 = vadd.f32 %v1805, 1.1283791
    %v1807 = vmul.f32 %v1510, %v1806
    %v1808 = vmul.f32 %v1796, 3.8918573e-05
    %v1809 = vadd.f32 %v1808, 0.001143296
    %v1810 = vmul.f32 %v1796, %v1809
    %v1811 = vadd.f32 %v1810, 0.014752088
    %v1812 = vmul.f32 %v1796, %v1811
    %v1813 = vadd.f32 %v1812, 0.112945676
    %v1814 = vmul.f32 %v1796, %v1813
    %v1815 = vadd.f32 %v1814, 0.4994258
    %v1816 = vmul.f32 %v1796, %v1815
    %v1817 = vadd.f32 %v1816, 1.0
    %v1818 = vrcp.pop %v1817
    %v1819 = vmul.f32 %v1817, %v1818
    %v1820 = vsub.f32 1.0, %v1819
    %v1821 = vmul.f32 %v1818, %v1820
    %v1822 = vadd.f32 %v1818, %v1821
    %vm1823 = vweird.f32 %v1817
    %vm1824 = vweird.f32 %v1818
    %vm1825 = vmor %vm1823, %vm1824
    %v1826 = vsel %vm1825, %v1818, %v1822
    %v1827 = vand.u32 2147483647, %v1817
    %vm1828 = vcmp.eq.f32.partialorder %v1827, 8.507059e+37
    %v1829 = vand.u32 %v1817, 2147483648
    %v1830 = vor.u32 1.1754944e-38, %v1829
    %v1831 = vsel %vm1828, %v1830, %v1826
    %v1832 = vmul.f32 %v1807, %v1831
    %v1833 = vmin.f32 %v1832, 1.0
    %v1834 = vmax.f32 %v1833, -1.0
    %v1835 = vmul.f32 %v1511, %v1511
    %v1836 = vmin.f32 16.0, %v1835
    %v1837 = vmul.f32 %v1836, 2.1237322e-06
    %v1838 = vadd.f32 %v1837, 0.00028619796
    %v1839 = vmul.f32 %v1836, %v1838
    %v1840 = vadd.f32 %v1839, 0.0036580483
    %v1841 = vmul.f32 %v1836, %v1840
    %v1842 = vadd.f32 %v1841, 0.05243302
    %v1843 = vmul.f32 %v1836, %v1842
    %v1844 = vadd.f32 %v1843, 0.18741608
    %v1845 = vmul.f32 %v1836, %v1844
    %v1846 = vadd.f32 %v1845, 1.1283791
    %v1847 = vmul.f32 %v1511, %v1846
    %v1848 = vmul.f32 %v1836, 3.8918573e-05
    %v1849 = vadd.f32 %v1848, 0.001143296
    %v1850 = vmul.f32 %v1836, %v1849
    %v1851 = vadd.f32 %v1850, 0.014752088
    %v1852 = vmul.f32 %v1836, %v1851
    %v1853 = vadd.f32 %v1852, 0.112945676
    %v1854 = vmul.f32 %v1836, %v1853
    %v1855 = vadd.f32 %v1854, 0.4994258
    %v1856 = vmul.f32 %v1836, %v1855
    %v1857 = vadd.f32 %v1856, 1.0
    %v1858 = vrcp.pop %v1857
    %v1859 = vmul.f32 %v1857, %v1858
    %v1860 = vsub.f32 1.0, %v1859
    %v1861 = vmul.f32 %v1858, %v1860
    %v1862 = vadd.f32 %v1858, %v1861
    %vm1863 = vweird.f32 %v1857
    %vm1864 = vweird.f32 %v1858
    %vm1865 = vmor %vm1863, %vm1864
    %v1866 = vsel %vm1865, %v1858, %v1862
    %v1867 = vand.u32 2147483647, %v1857
    %vm1868 = vcmp.eq.f32.partialorder %v1867, 8.507059e+37
    %v1869 = vand.u32 %v1857, 2147483648
    %v1870 = vor.u32 1.1754944e-38, %v1869
    %v1871 = vsel %vm1868, %v1870, %v1866
    %v1872 = vmul.f32 %v1847, %v1871
    %v1873 = vmin.f32 %v1872, 1.0
    %v1874 = vmax.f32 %v1873, -1.0
    %v1875 = vmul.f32 %v1512, %v1512
    %v1876 = vmin.f32 16.0, %v1875
    %v1877 = vmul.f32 %v1876, 2.1237322e-06
    %v1878 = vadd.f32 %v1877, 0.00028619796
    %v1879 = vmul.f32 %v1876, %v1878
    %v1880 = vadd.f32 %v1879, 0.0036580483
    %v1881 = vmul.f32 %v1876, %v1880
    %v1882 = vadd.f32 %v1881, 0.05243302
    %v1883 = vmul.f32 %v1876, %v1882
    %v1884 = vadd.f32 %v1883, 0.18741608
    %v1885 = vmul.f32 %v1876, %v1884
    %v1886 = vadd.f32 %v1885, 1.1283791
    %v1887 = vmul.f32 %v1512, %v1886
    %v1888 = vmul.f32 %v1876, 3.8918573e-05
    %v1889 = vadd.f32 %v1888, 0.001143296
    %v1890 = vmul.f32 %v1876, %v1889
    %v1891 = vadd.f32 %v1890, 0.014752088
    %v1892 = vmul.f32 %v1876, %v1891
    %v1893 = vadd.f32 %v1892, 0.112945676
    %v1894 = vmul.f32 %v1876, %v1893
    %v1895 = vadd.f32 %v1894, 0.4994258
    %v1896 = vmul.f32 %v1876, %v1895
    %v1897 = vadd.f32 %v1896, 1.0
    %v1898 = vrcp.pop %v1897
    %v1899 = vmul.f32 %v1897, %v1898
    %v1900 = vsub.f32 1.0, %v1899
    %v1901 = vmul.f32 %v1898, %v1900
    %v1902 = vadd.f32 %v1898, %v1901
    %vm1903 = vweird.f32 %v1897
    %vm1904 = vweird.f32 %v1898
    %vm1905 = vmor %vm1903, %vm1904
    %v1906 = vsel %vm1905, %v1898, %v1902
    %v1907 = vand.u32 2147483647, %v1897
    %vm1908 = vcmp.eq.f32.partialorder %v1907, 8.507059e+37
    %v1909 = vand.u32 %v1897, 2147483648
    %v1910 = vor.u32 1.1754944e-38, %v1909
    %v1911 = vsel %vm1908, %v1910, %v1906
    %v1912 = vmul.f32 %v1887, %v1911
    %v1913 = vmin.f32 %v1912, 1.0
    %v1914 = vmax.f32 %v1913, -1.0
    %v1915 = vmul.f32 %v1513, %v1513
    %v1916 = vmin.f32 16.0, %v1915
    %v1917 = vmul.f32 %v1916, 2.1237322e-06
    %v1918 = vadd.f32 %v1917, 0.00028619796
    %v1919 = vmul.f32 %v1916, %v1918
    %v1920 = vadd.f32 %v1919, 0.0036580483
    %v1921 = vmul.f32 %v1916, %v1920
    %v1922 = vadd.f32 %v1921, 0.05243302
    %v1923 = vmul.f32 %v1916, %v1922
    %v1924 = vadd.f32 %v1923, 0.18741608
    %v1925 = vmul.f32 %v1916, %v1924
    %v1926 = vadd.f32 %v1925, 1.1283791
    %v1927 = vmul.f32 %v1513, %v1926
    %v1928 = vmul.f32 %v1916, 3.8918573e-05
    %v1929 = vadd.f32 %v1928, 0.001143296
    %v1930 = vmul.f32 %v1916, %v1929
    %v1931 = vadd.f32 %v1930, 0.014752088
    %v1932 = vmul.f32 %v1916, %v1931
    %v1933 = vadd.f32 %v1932, 0.112945676
    %v1934 = vmul.f32 %v1916, %v1933
    %v1935 = vadd.f32 %v1934, 0.4994258
    %v1936 = vmul.f32 %v1916, %v1935
    %v1937 = vadd.f32 %v1936, 1.0
    %v1938 = vrcp.pop %v1937
    %v1939 = vmul.f32 %v1937, %v1938
    %v1940 = vsub.f32 1.0, %v1939
    %v1941 = vmul.f32 %v1938, %v1940
    %v1942 = vadd.f32 %v1938, %v1941
    %vm1943 = vweird.f32 %v1937
    %vm1944 = vweird.f32 %v1938
    %vm1945 = vmor %vm1943, %vm1944
    %v1946 = vsel %vm1945, %v1938, %v1942
    %v1947 = vand.u32 2147483647, %v1937
    %vm1948 = vcmp.eq.f32.partialorder %v1947, 8.507059e+37
    %v1949 = vand.u32 %v1937, 2147483648
    %v1950 = vor.u32 1.1754944e-38, %v1949
    %v1951 = vsel %vm1948, %v1950, %v1946
    %v1952 = vmul.f32 %v1927, %v1951
    %v1953 = vmin.f32 %v1952, 1.0
    %v1954 = vmax.f32 %v1953, -1.0
    %v1955 = vmul.f32 %v1514, %v1514
    %v1956 = vmin.f32 16.0, %v1955
    %v1957 = vmul.f32 %v1956, 2.1237322e-06
    %v1958 = vadd.f32 %v1957, 0.00028619796
    %v1959 = vmul.f32 %v1956, %v1958
    %v1960 = vadd.f32 %v1959, 0.0036580483
    %v1961 = vmul.f32 %v1956, %v1960
    %v1962 = vadd.f32 %v1961, 0.05243302
    %v1963 = vmul.f32 %v1956, %v1962
    %v1964 = vadd.f32 %v1963, 0.18741608
    %v1965 = vmul.f32 %v1956, %v1964
    %v1966 = vadd.f32 %v1965, 1.1283791
    %v1967 = vmul.f32 %v1514, %v1966
    %v1968 = vmul.f32 %v1956, 3.8918573e-05
    %v1969 = vadd.f32 %v1968, 0.001143296
    %v1970 = vmul.f32 %v1956, %v1969
    %v1971 = vadd.f32 %v1970, 0.014752088
    %v1972 = vmul.f32 %v1956, %v1971
    %v1973 = vadd.f32 %v1972, 0.112945676
    %v1974 = vmul.f32 %v1956, %v1973
    %v1975 = vadd.f32 %v1974, 0.4994258
    %v1976 = vmul.f32 %v1956, %v1975
    %v1977 = vadd.f32 %v1976, 1.0
    %v1978 = vrcp.pop %v1977
    %v1979 = vmul.f32 %v1977, %v1978
    %v1980 = vsub.f32 1.0, %v1979
    %v1981 = vmul.f32 %v1978, %v1980
    %v1982 = vadd.f32 %v1978, %v1981
    %vm1983 = vweird.f32 %v1977
    %vm1984 = vweird.f32 %v1978
    %vm1985 = vmor %vm1983, %vm1984
    %v1986 = vsel %vm1985, %v1978, %v1982
    %v1987 = vand.u32 2147483647, %v1977
    %vm1988 = vcmp.eq.f32.partialorder %v1987, 8.507059e+37
    %v1989 = vand.u32 %v1977, 2147483648
    %v1990 = vor.u32 1.1754944e-38, %v1989
    %v1991 = vsel %vm1988, %v1990, %v1986
    %v1992 = vmul.f32 %v1967, %v1991
    %v1993 = vmin.f32 %v1992, 1.0
    %v1994 = vmax.f32 %v1993, -1.0
    %v1995 = vadd.f32 %v1554, 1.0
    %v1996 = vadd.f32 %v1594, 1.0
    %v1997 = vadd.f32 %v1634, 1.0
    %v1998 = vadd.f32 %v1674, 1.0
    %v1999 = vadd.f32 %v1714, 1.0
    %v2000 = vadd.f32 %v1754, 1.0
    %v2001 = vadd.f32 %v1794, 1.0
    %v2002 = vadd.f32 %v1834, 1.0
    %v2003 = vadd.f32 %v1874, 1.0
    %v2004 = vadd.f32 %v1914, 1.0
    %v2005 = vadd.f32 %v1954, 1.0
    %v2006 = vadd.f32 %v1994, 1.0
    %v2007 = vmul.f32 %v1491, %v1995
    %v2008 = vmul.f32 %v1492, %v1996
    %v2009 = vmul.f32 %v1493, %v1997
    %v2010 = vmul.f32 %v1494, %v1998
    %v2011 = vmul.f32 %v1495, %v1999
    %v2012 = vmul.f32 %v1496, %v2000
    %v2013 = vmul.f32 %v1497, %v2001
    %v2014 = vmul.f32 %v1498, %v2002
    %v2015 = vmul.f32 %v1499, %v2003
    %v2016 = vmul.f32 %v1500, %v2004
    %v2017 = vmul.f32 %v1501, %v2005
    %v2018 = vmul.f32 %v1502, %v2006
    %v2019 = vpack.c.bf16 %v2009, %v2007
    %v2020 = vpack.c.bf16 %v2010, %v2008
    %v2021 = vpack.c.bf16 %v2013, %v2011
    %v2022 = vpack.c.bf16 %v2014, %v2012
    %v2023 = vpack.c.bf16 %v2017, %v2015
    %v2024 = vpack.c.bf16 %v2018, %v2016
    %v2025 = vld [vmem:[#allocation5 + $0x118] sm:$0xf]
    %v2026 = vld [vmem:[#allocation5 + $0x11c] sm:$0xf]
    %v2027 = vld [vmem:[#allocation5 + $0x120] sm:$0xf]
    %v2028 = vld [vmem:[#allocation5 + $0x124] sm:$0xf]
    %v2029 = vld [vmem:[#allocation5 + $0x128] sm:$0xf]
    %v2030 = vld [vmem:[#allocation5 + $0x12c] sm:$0xf]
    %v2031 = vld [vmem:[#allocation5 + $0x130] sm:$0xf]
    %v2032 = vld [vmem:[#allocation5 + $0x134] sm:$0xf]
    %v2033 = vld [vmem:[#allocation5 + $0x138] sm:$0xf]
    %v2034 = vld [vmem:[#allocation5 + $0x13c] sm:$0xf]
    %v2035 = vld [vmem:[#allocation5 + $0x140] sm:$0xf]
    %v2036 = vld [vmem:[#allocation5 + $0x144] sm:$0xf]
    %v2037 = vld [vmem:[#allocation5 + $0x148] sm:$0xf]
    %v2038 = vld [vmem:[#allocation5 + $0x14c] sm:$0xf]
    %v2039 = vld [vmem:[#allocation5 + $0x150] sm:$0xf]
    %v2040 = vld [vmem:[#allocation5 + $0x154] sm:$0xf]
    %v2041 = vld [vmem:[#allocation5 + $0x158] sm:$0xf]
    %v2042 = vld [vmem:[#allocation5 + $0x15c] sm:$0xf]
    %v2043 = vld [vmem:[#allocation5 + $0x160] sm:$0xf]
    %v2044 = vld [vmem:[#allocation5 + $0x164] sm:$0xf]
    %v2045 = vld [vmem:[#allocation5 + $0x168] sm:$0xf]
    %v2046 = vld [vmem:[#allocation5 + $0x16c] sm:$0xf]
    %v2047 = vld [vmem:[#allocation5 + $0x170] sm:$0xf]
    %v2048 = vld [vmem:[#allocation5 + $0x174] sm:$0xf]
    %v2049 = vld [vmem:[#allocation5 + $0x178] sm:$0xf]
    %v2050 = vld [vmem:[#allocation5 + $0x17c] sm:$0xf]
    %v2051 = vld [vmem:[#allocation5 + $0x180] sm:$0xf]
    %v2052 = vld [vmem:[#allocation5 + $0x184] sm:$0xf]
    %v2053 = vld [vmem:[#allocation5 + $0x188] sm:$0xf]
    %v2054 = vld [vmem:[#allocation5 + $0x18c] sm:$0xf]
    %v2055 = vld [vmem:[#allocation5 + $0x190] sm:$0xf]
    %v2056 = vld [vmem:[#allocation5 + $0x194] sm:$0xf]
    %v2089 = vunpack.c.l.b16 %v2025
    %v2090 = vunpack.c.l.b16 %v2026
    %v2091 = vunpack.c.l.b16 %v2027
    %v2092 = vunpack.c.l.b16 %v2028
    %v2093 = vunpack.c.l.b16 %v2029
    %v2094 = vunpack.c.l.b16 %v2030
    %v2095 = vunpack.c.l.b16 %v2031
    %v2096 = vunpack.c.l.b16 %v2032
    %v2097 = vunpack.c.l.b16 %v2033
    %v2098 = vunpack.c.l.b16 %v2034
    %v2099 = vunpack.c.l.b16 %v2035
    %v2100 = vunpack.c.l.b16 %v2036
    %v2101 = vunpack.c.l.b16 %v2037
    %v2102 = vunpack.c.l.b16 %v2038
    %v2103 = vunpack.c.l.b16 %v2039
    %v2104 = vunpack.c.l.b16 %v2040
    %v2105 = vunpack.c.l.b16 %v2041
    %v2106 = vunpack.c.l.b16 %v2042
    %v2107 = vunpack.c.l.b16 %v2043
    %v2108 = vunpack.c.l.b16 %v2044
    %v2109 = vunpack.c.l.b16 %v2045
    %v2110 = vunpack.c.l.b16 %v2046
    %v2111 = vunpack.c.l.b16 %v2047
    %v2112 = vunpack.c.l.b16 %v2048
    %v2113 = vunpack.c.l.b16 %v2049
    %v2114 = vunpack.c.l.b16 %v2050
    %v2115 = vunpack.c.l.b16 %v2051
    %v2116 = vunpack.c.l.b16 %v2052
    %v2117 = vunpack.c.l.b16 %v2053
    %v2118 = vunpack.c.l.b16 %v2054
    %v2119 = vunpack.c.l.b16 %v2055
    %v2120 = vunpack.c.l.b16 %v2056
    %v2121 = vpack.c.b16 %v2090, %v2089
    %v2122 = vpack.c.b16 %v2092, %v2091
    %v2123 = vpack.c.b16 %v2094, %v2093
    %v2124 = vpack.c.b16 %v2096, %v2095
    %v2125 = vpack.c.b16 %v2098, %v2097
    %v2126 = vpack.c.b16 %v2100, %v2099
    %v2127 = vpack.c.b16 %v2102, %v2101
    %v2128 = vpack.c.b16 %v2104, %v2103
    %v2129 = vpack.c.b16 %v2106, %v2105
    %v2130 = vpack.c.b16 %v2108, %v2107
    %v2131 = vpack.c.b16 %v2110, %v2109
    %v2132 = vpack.c.b16 %v2112, %v2111
    %v2133 = vpack.c.b16 %v2114, %v2113
    %v2134 = vpack.c.b16 %v2116, %v2115
    %v2135 = vpack.c.b16 %v2118, %v2117
    %v2136 = vpack.c.b16 %v2120, %v2119
    %2153 = vmatpush.bf16.msra.mxu0 %v2128
    %2154 = vmatpush.bf16.msra.mxu0 %v2127
    %2155 = vmatpush.bf16.msra.mxu0 %v2126
    %2156 = vmatpush.bf16.msra.mxu0 %v2125
    %2157 = vmatpush.bf16.msra.mxu0 %v2124
    %2158 = vmatpush.bf16.msra.mxu0 %v2123
    %2159 = vmatpush.bf16.msra.mxu0 %v2122
    %2160 = vmatpush.bf16.msra.mxu0 %v2121
    %2161 = vmatmul.bf16.gmra.mxu0 %v2019
    %v2162 = vpop.f32.mrf.mxu0
    %v2163 = vadd.f32 0.0, %v2162
    %v2164 = vpop.f32.mrf.mxu0
    %v2165 = vadd.f32 0.0, %v2164
    %2166 = vmatmul.bf16.gmra.mxu0 %v2021
    %v2167 = vpop.f32.mrf.mxu0
    %v2168 = vadd.f32 0.0, %v2167
    %v2169 = vpop.f32.mrf.mxu0
    %v2170 = vadd.f32 0.0, %v2169
    %2171 = vmatmul.bf16.gmra.mxu0 %v2023
    %v2172 = vpop.f32.mrf.mxu0
    %v2173 = vadd.f32 0.0, %v2172
    %v2174 = vpop.f32.mrf.mxu0
    %v2175 = vadd.f32 0.0, %v2174
    %2176 = vdwg.mxu0
    %2177 = vmatpush.bf16.msra.mxu0 %v2136
    %2178 = vmatpush.bf16.msra.mxu0 %v2135
    %2179 = vmatpush.bf16.msra.mxu0 %v2134
    %2180 = vmatpush.bf16.msra.mxu0 %v2133
    %2181 = vmatpush.bf16.msra.mxu0 %v2132
    %2182 = vmatpush.bf16.msra.mxu0 %v2131
    %2183 = vmatpush.bf16.msra.mxu0 %v2130
    %2184 = vmatpush.bf16.msra.mxu0 %v2129
    %2185 = vmatmul.bf16.gmra.mxu0 %v2020
    %v2186 = vpop.f32.mrf.mxu0
    %v2187 = vadd.f32 %v2163, %v2186
    %v2188 = vpop.f32.mrf.mxu0
    %v2189 = vadd.f32 %v2165, %v2188
    %2190 = vmatmul.bf16.gmra.mxu0 %v2022
    %v2191 = vpop.f32.mrf.mxu0
    %v2192 = vadd.f32 %v2168, %v2191
    %v2193 = vpop.f32.mrf.mxu0
    %v2194 = vadd.f32 %v2170, %v2193
    %2195 = vmatmul.bf16.gmra.mxu0 %v2024
    %v2196 = vpop.f32.mrf.mxu0
    %v2197 = vadd.f32 %v2173, %v2196
    %v2198 = vpop.f32.mrf.mxu0
    %v2199 = vadd.f32 %v2175, %v2198
    %2200 = vdwg.mxu0
    %v2201 = vadd.f32 %v1195, %v2187
    %v2202 = vadd.f32 %v1196, %v2189
    %v2203 = vadd.f32 %v1197, %v2192
    %v2204 = vadd.f32 %v1198, %v2194
    %v2205 = vadd.f32 %v1199, %v2197
    %v2206 = vadd.f32 %v1200, %v2199
    %v2207 = vld [vmem:[#allocation5 + $0x198] sm:$0x1]
    %v2208 = vunpack.c.l.bf16 %v2207
    %v2209 = vperm.slane %v2208, 0
    %v2210 = vadd.f32 %v2201, %v2209
    %v2211 = vadd.f32 %v2202, %v2209
    %v2212 = vadd.f32 %v2203, %v2209
    %v2213 = vadd.f32 %v2204, %v2209
    %v2214 = vadd.f32 %v2205, %v2209
    %v2215 = vadd.f32 %v2206, %v2209
    %v2216 = vld [vmem:[#allocation5 + $0x1a0] sm:$0x1]
    %v2217 = vld [vmem:[#allocation5 + $0x1a8] sm:$0x1]
    %2218 = vadd.xlane.f32.xlu0 %v2210
    %v2219 = vpop.xlane.xlu0 %2218
    %2220 = vadd.xlane.f32.xlu0 %v2211
    %v2221 = vpop.xlane.xlu0 %2220
    %2222 = vadd.xlane.f32.xlu0 %v2212
    %v2223 = vpop.xlane.xlu0 %2222
    %2224 = vadd.xlane.f32.xlu0 %v2213
    %v2225 = vpop.xlane.xlu0 %2224
    %2226 = vadd.xlane.f32.xlu0 %v2214
    %v2227 = vpop.xlane.xlu0 %2226
    %2228 = vadd.xlane.f32.xlu0 %v2215
    %v2229 = vpop.xlane.xlu0 %2228
    %v2230 = vmul.f32 %v2219, %v210
    %v2231 = vmul.f32 %v2221, %v210
    %v2232 = vmul.f32 %v2223, %v210
    %v2233 = vmul.f32 %v2225, %v210
    %v2234 = vmul.f32 %v2227, %v210
    %v2235 = vmul.f32 %v2229, %v210
    %v2236 = vsub.f32 %v2210, %v2230
    %v2237 = vsub.f32 %v2211, %v2231
    %v2238 = vsub.f32 %v2212, %v2232
    %v2239 = vsub.f32 %v2213, %v2233
    %v2240 = vsub.f32 %v2214, %v2234
    %v2241 = vsub.f32 %v2215, %v2235
    %v2242 = vmul.f32 %v2236, %v2236
    %v2243 = vmul.f32 %v2237, %v2237
    %v2244 = vmul.f32 %v2238, %v2238
    %v2245 = vmul.f32 %v2239, %v2239
    %v2246 = vmul.f32 %v2240, %v2240
    %v2247 = vmul.f32 %v2241, %v2241
    %2248 = vadd.xlane.f32.xlu0 %v2242
    %v2249 = vpop.xlane.xlu0 %2248
    %2250 = vadd.xlane.f32.xlu0 %v2243
    %v2251 = vpop.xlane.xlu0 %2250
    %2252 = vadd.xlane.f32.xlu0 %v2244
    %v2253 = vpop.xlane.xlu0 %2252
    %2254 = vadd.xlane.f32.xlu0 %v2245
    %v2255 = vpop.xlane.xlu0 %2254
    %2256 = vadd.xlane.f32.xlu0 %v2246
    %v2257 = vpop.xlane.xlu0 %2256
    %2258 = vadd.xlane.f32.xlu0 %v2247
    %v2259 = vpop.xlane.xlu0 %2258
    %v2260 = vmul.f32 %v2249, %v210
    %v2261 = vmul.f32 %v2251, %v210
    %v2262 = vmul.f32 %v2253, %v210
    %v2263 = vmul.f32 %v2255, %v210
    %v2264 = vmul.f32 %v2257, %v210
    %v2265 = vmul.f32 %v2259, %v210
    %v2266 = vadd.f32 %v2260, 1e-06
    %v2267 = vadd.f32 %v2261, 1e-06
    %v2268 = vadd.f32 %v2262, 1e-06
    %v2269 = vadd.f32 %v2263, 1e-06
    %v2270 = vadd.f32 %v2264, 1e-06
    %v2271 = vadd.f32 %v2265, 1e-06
    %v2272 = vrsqrt.pop %v2266
    %v2273 = vmul.f32 %v2272, %v2266
    %v2274 = vmul.f32 %v2273, %v2272
    %v2275 = vmul.f32 0.5, %v2274
    %v2276 = vsub.f32 1.5, %v2275
    %v2277 = vmul.f32 %v2272, %v2276
    %vm2278 = vweird.f32 %v2266
    %vm2279 = vweird.f32 %v2272
    %vm2280 = vmor %vm2278, %vm2279
    %v2281 = vsel %vm2280, %v2272, %v2277
    %v2282 = vrsqrt.pop %v2267
    %v2283 = vmul.f32 %v2282, %v2267
    %v2284 = vmul.f32 %v2283, %v2282
    %v2285 = vmul.f32 0.5, %v2284
    %v2286 = vsub.f32 1.5, %v2285
    %v2287 = vmul.f32 %v2282, %v2286
    %vm2288 = vweird.f32 %v2267
    %vm2289 = vweird.f32 %v2282
    %vm2290 = vmor %vm2288, %vm2289
    %v2291 = vsel %vm2290, %v2282, %v2287
    %v2292 = vrsqrt.pop %v2268
    %v2293 = vmul.f32 %v2292, %v2268
    %v2294 = vmul.f32 %v2293, %v2292
    %v2295 = vmul.f32 0.5, %v2294
    %v2296 = vsub.f32 1.5, %v2295
    %v2297 = vmul.f32 %v2292, %v2296
    %vm2298 = vweird.f32 %v2268
    %vm2299 = vweird.f32 %v2292
    %vm2300 = vmor %vm2298, %vm2299
    %v2301 = vsel %vm2300, %v2292, %v2297
    %v2302 = vrsqrt.pop %v2269
    %v2303 = vmul.f32 %v2302, %v2269
    %v2304 = vmul.f32 %v2303, %v2302
    %v2305 = vmul.f32 0.5, %v2304
    %v2306 = vsub.f32 1.5, %v2305
    %v2307 = vmul.f32 %v2302, %v2306
    %vm2308 = vweird.f32 %v2269
    %vm2309 = vweird.f32 %v2302
    %vm2310 = vmor %vm2308, %vm2309
    %v2311 = vsel %vm2310, %v2302, %v2307
    %v2312 = vrsqrt.pop %v2270
    %v2313 = vmul.f32 %v2312, %v2270
    %v2314 = vmul.f32 %v2313, %v2312
    %v2315 = vmul.f32 0.5, %v2314
    %v2316 = vsub.f32 1.5, %v2315
    %v2317 = vmul.f32 %v2312, %v2316
    %vm2318 = vweird.f32 %v2270
    %vm2319 = vweird.f32 %v2312
    %vm2320 = vmor %vm2318, %vm2319
    %v2321 = vsel %vm2320, %v2312, %v2317
    %v2322 = vrsqrt.pop %v2271
    %v2323 = vmul.f32 %v2322, %v2271
    %v2324 = vmul.f32 %v2323, %v2322
    %v2325 = vmul.f32 0.5, %v2324
    %v2326 = vsub.f32 1.5, %v2325
    %v2327 = vmul.f32 %v2322, %v2326
    %vm2328 = vweird.f32 %v2271
    %vm2329 = vweird.f32 %v2322
    %vm2330 = vmor %vm2328, %vm2329
    %v2331 = vsel %vm2330, %v2322, %v2327
    %v2332 = vmul.f32 %v2236, %v2281
    %v2333 = vmul.f32 %v2237, %v2291
    %v2334 = vmul.f32 %v2238, %v2301
    %v2335 = vmul.f32 %v2239, %v2311
    %v2336 = vmul.f32 %v2240, %v2321
    %v2337 = vmul.f32 %v2241, %v2331
    %v2338 = vunpack.c.l.bf16 %v2216
    %v2339 = vperm.slane %v2338, 0
    %v2340 = vmul.f32 %v2332, %v2339
    %v2341 = vmul.f32 %v2333, %v2339
    %v2342 = vmul.f32 %v2334, %v2339
    %v2343 = vmul.f32 %v2335, %v2339
    %v2344 = vmul.f32 %v2336, %v2339
    %v2345 = vmul.f32 %v2337, %v2339
    %v2346 = vunpack.c.l.bf16 %v2217
    %v2347 = vperm.slane %v2346, 0
    %v2348 = vadd.f32 %v2340, %v2347
    %v2349 = vadd.f32 %v2341, %v2347
    %v2350 = vadd.f32 %v2342, %v2347
    %v2351 = vadd.f32 %v2343, %v2347
    %v2352 = vadd.f32 %v2344, %v2347
    %v2353 = vadd.f32 %v2345, %v2347
    %v2354 = vpack.c.bf16 %v2349, %v2348
    %v2355 = vpack.c.bf16 %v2351, %v2350
    %v2356 = vpack.c.bf16 %v2353, %v2352
    %v2357 = vld [vmem:[#allocation7 + $0x240] sm:$0xff]
    %v2358 = vld [vmem:[#allocation7 + $0x248] sm:$0xff]
    %v2359 = vld [vmem:[#allocation7 + $0x250] sm:$0xff]
    %v2360 = vld [vmem:[#allocation7 + $0x258] sm:$0xff]
    %v2361 = vld [vmem:[#allocation7 + $0x260] sm:$0xff]
    %v2362 = vld [vmem:[#allocation7 + $0x268] sm:$0xff]
    %v2363 = vld [vmem:[#allocation7 + $0x270] sm:$0xff]
    %v2364 = vld [vmem:[#allocation7 + $0x278] sm:$0xff]
    %v2365 = vld [vmem:[#allocation7 + $0x280] sm:$0xff]
    %v2366 = vld [vmem:[#allocation7 + $0x288] sm:$0xff]
    %v2367 = vld [vmem:[#allocation7 + $0x290] sm:$0xff]
    %v2368 = vld [vmem:[#allocation7 + $0x298] sm:$0xff]
    %v2369 = vld [vmem:[#allocation7 + $0x2a0] sm:$0xff]
    %v2370 = vld [vmem:[#allocation7 + $0x2a8] sm:$0xff]
    %v2371 = vld [vmem:[#allocation7 + $0x2b0] sm:$0xff]
    %v2372 = vld [vmem:[#allocation7 + $0x2b8] sm:$0xff]
    %v2373 = vld [vmem:[#allocation7 + $0x2c0] sm:$0xff]
    %v2374 = vld [vmem:[#allocation7 + $0x2c8] sm:$0xff]
    %v2375 = vld [vmem:[#allocation7 + $0x2d0] sm:$0xff]
    %v2376 = vld [vmem:[#allocation7 + $0x2d8] sm:$0xff]
    %v2377 = vld [vmem:[#allocation7 + $0x2e0] sm:$0xff]
    %v2378 = vld [vmem:[#allocation7 + $0x2e8] sm:$0xff]
    %v2379 = vld [vmem:[#allocation7 + $0x2f0] sm:$0xff]
    %v2380 = vld [vmem:[#allocation7 + $0x2f8] sm:$0xff]
    %v2381 = vld [vmem:[#allocation7 + $0x300] sm:$0xff]
    %v2382 = vld [vmem:[#allocation7 + $0x308] sm:$0xff]
    %v2383 = vld [vmem:[#allocation7 + $0x310] sm:$0xff]
    %v2384 = vld [vmem:[#allocation7 + $0x318] sm:$0xff]
    %v2385 = vld [vmem:[#allocation7 + $0x320] sm:$0xff]
    %v2386 = vld [vmem:[#allocation7 + $0x328] sm:$0xff]
    %v2387 = vld [vmem:[#allocation7 + $0x330] sm:$0xff]
    %v2388 = vld [vmem:[#allocation7 + $0x338] sm:$0xff]
    %v2389 = vld [vmem:[#allocation7 + $0x340] sm:$0x11]
    %v2390 = vld [vmem:[#allocation7 + $0x348] sm:$0x11]
    %v2391 = vunpack.c.l.bf16 %v2389
    %v2392 = vunpack.c.h.bf16 %v2389
    %v2393 = vunpack.c.l.bf16 %v2390
    %v2394 = vunpack.c.h.bf16 %v2390
    %v2395 = vperm.slane %v2391, 0
    %v2396 = vperm.slane %v2392, 0
    %v2397 = vperm.slane %v2393, 0
    %v2398 = vperm.slane %v2394, 0
    %v2431 = vunpack.c.l.b16 %v2357
    %v2432 = vunpack.c.h.b16 %v2357
    %v2433 = vunpack.c.l.b16 %v2358
    %v2434 = vunpack.c.h.b16 %v2358
    %v2435 = vunpack.c.l.b16 %v2359
    %v2436 = vunpack.c.h.b16 %v2359
    %v2437 = vunpack.c.l.b16 %v2360
    %v2438 = vunpack.c.h.b16 %v2360
    %v2439 = vunpack.c.l.b16 %v2361
    %v2440 = vunpack.c.h.b16 %v2361
    %v2441 = vunpack.c.l.b16 %v2362
    %v2442 = vunpack.c.h.b16 %v2362
    %v2443 = vunpack.c.l.b16 %v2363
    %v2444 = vunpack.c.h.b16 %v2363
    %v2445 = vunpack.c.l.b16 %v2364
    %v2446 = vunpack.c.h.b16 %v2364
    %v2447 = vunpack.c.l.b16 %v2365
    %v2448 = vunpack.c.h.b16 %v2365
    %v2449 = vunpack.c.l.b16 %v2366
    %v2450 = vunpack.c.h.b16 %v2366
    %v2451 = vunpack.c.l.b16 %v2367
    %v2452 = vunpack.c.h.b16 %v2367
    %v2453 = vunpack.c.l.b16 %v2368
    %v2454 = vunpack.c.h.b16 %v2368
    %v2455 = vunpack.c.l.b16 %v2369
    %v2456 = vunpack.c.h.b16 %v2369
    %v2457 = vunpack.c.l.b16 %v2370
    %v2458 = vunpack.c.h.b16 %v2370
    %v2459 = vunpack.c.l.b16 %v2371
    %v2460 = vunpack.c.h.b16 %v2371
    %v2461 = vunpack.c.l.b16 %v2372
    %v2462 = vunpack.c.h.b16 %v2372
    %v2463 = vunpack.c.l.b16 %v2373
    %v2464 = vunpack.c.h.b16 %v2373
    %v2465 = vunpack.c.l.b16 %v2374
    %v2466 = vunpack.c.h.b16 %v2374
    %v2467 = vunpack.c.l.b16 %v2375
    %v2468 = vunpack.c.h.b16 %v2375
    %v2469 = vunpack.c.l.b16 %v2376
    %v2470 = vunpack.c.h.b16 %v2376
    %v2471 = vunpack.c.l.b16 %v2377
    %v2472 = vunpack.c.h.b16 %v2377
    %v2473 = vunpack.c.l.b16 %v2378
    %v2474 = vunpack.c.h.b16 %v2378
    %v2475 = vunpack.c.l.b16 %v2379
    %v2476 = vunpack.c.h.b16 %v2379
    %v2477 = vunpack.c.l.b16 %v2380
    %v2478 = vunpack.c.h.b16 %v2380
    %v2479 = vunpack.c.l.b16 %v2381
    %v2480 = vunpack.c.h.b16 %v2381
    %v2481 = vunpack.c.l.b16 %v2382
    %v2482 = vunpack.c.h.b16 %v2382
    %v2483 = vunpack.c.l.b16 %v2383
    %v2484 = vunpack.c.h.b16 %v2383
    %v2485 = vunpack.c.l.b16 %v2384
    %v2486 = vunpack.c.h.b16 %v2384
    %v2487 = vunpack.c.l.b16 %v2385
    %v2488 = vunpack.c.h.b16 %v2385
    %v2489 = vunpack.c.l.b16 %v2386
    %v2490 = vunpack.c.h.b16 %v2386
    %v2491 = vunpack.c.l.b16 %v2387
    %v2492 = vunpack.c.h.b16 %v2387
    %v2493 = vunpack.c.l.b16 %v2388
    %v2494 = vunpack.c.h.b16 %v2388
    %v2495 = vpack.c.b16 %v2435, %v2431
    %v2496 = vpack.c.b16 %v2436, %v2432
    %v2497 = vpack.c.b16 %v2437, %v2433
    %v2498 = vpack.c.b16 %v2438, %v2434
    %v2499 = vpack.c.b16 %v2443, %v2439
    %v2500 = vpack.c.b16 %v2444, %v2440
    %v2501 = vpack.c.b16 %v2445, %v2441
    %v2502 = vpack.c.b16 %v2446, %v2442
    %v2503 = vpack.c.b16 %v2451, %v2447
    %v2504 = vpack.c.b16 %v2452, %v2448
    %v2505 = vpack.c.b16 %v2453, %v2449
    %v2506 = vpack.c.b16 %v2454, %v2450
    %v2507 = vpack.c.b16 %v2459, %v2455
    %v2508 = vpack.c.b16 %v2460, %v2456
    %v2509 = vpack.c.b16 %v2461, %v2457
    %v2510 = vpack.c.b16 %v2462, %v2458
    %v2511 = vpack.c.b16 %v2467, %v2463
    %v2512 = vpack.c.b16 %v2468, %v2464
    %v2513 = vpack.c.b16 %v2469, %v2465
    %v2514 = vpack.c.b16 %v2470, %v2466
    %v2515 = vpack.c.b16 %v2475, %v2471
    %v2516 = vpack.c.b16 %v2476, %v2472
    %v2517 = vpack.c.b16 %v2477, %v2473
    %v2518 = vpack.c.b16 %v2478, %v2474
    %v2519 = vpack.c.b16 %v2483, %v2479
    %v2520 = vpack.c.b16 %v2484, %v2480
    %v2521 = vpack.c.b16 %v2485, %v2481
    %v2522 = vpack.c.b16 %v2486, %v2482
    %v2523 = vpack.c.b16 %v2491, %v2487
    %v2524 = vpack.c.b16 %v2492, %v2488
    %v2525 = vpack.c.b16 %v2493, %v2489
    %v2526 = vpack.c.b16 %v2494, %v2490
    %2559 = vmatpush.bf16.msra.mxu0 %v2523
    %2560 = vmatpush.bf16.msra.mxu0 %v2519
    %2561 = vmatpush.bf16.msra.mxu0 %v2515
    %2562 = vmatpush.bf16.msra.mxu0 %v2511
    %2563 = vmatpush.bf16.msra.mxu0 %v2507
    %2564 = vmatpush.bf16.msra.mxu0 %v2503
    %2565 = vmatpush.bf16.msra.mxu0 %v2499
    %2566 = vmatpush.bf16.msra.mxu0 %v2495
    %2567 = vmatmul.bf16.gmra.mxu0 %v2354
    %v2568 = vpop.f32.mrf.mxu0
    %v2569 = vadd.f32 %v2395, %v2568
    %v2570 = vpop.f32.mrf.mxu0
    %v2571 = vadd.f32 %v2395, %v2570
    %2572 = vmatmul.bf16.gmra.mxu0 %v2355
    %v2573 = vpop.f32.mrf.mxu0
    %v2574 = vadd.f32 %v2395, %v2573
    %v2575 = vpop.f32.mrf.mxu0
    %v2576 = vadd.f32 %v2395, %v2575
    %2577 = vmatmul.bf16.gmra.mxu0 %v2356
    %v2578 = vpop.f32.mrf.mxu0
    %v2579 = vadd.f32 %v2395, %v2578
    %v2580 = vpop.f32.mrf.mxu0
    %v2581 = vadd.f32 %v2395, %v2580
    %2582 = vdwg.mxu0
    %2583 = vmatpush.bf16.msra.mxu0 %v2524
    %2584 = vmatpush.bf16.msra.mxu0 %v2520
    %2585 = vmatpush.bf16.msra.mxu0 %v2516
    %2586 = vmatpush.bf16.msra.mxu0 %v2512
    %2587 = vmatpush.bf16.msra.mxu0 %v2508
    %2588 = vmatpush.bf16.msra.mxu0 %v2504
    %2589 = vmatpush.bf16.msra.mxu0 %v2500
    %2590 = vmatpush.bf16.msra.mxu0 %v2496
    %2591 = vmatmul.bf16.gmra.mxu0 %v2354
    %v2592 = vpop.f32.mrf.mxu0
    %v2593 = vadd.f32 %v2396, %v2592
    %v2594 = vpop.f32.mrf.mxu0
    %v2595 = vadd.f32 %v2396, %v2594
    %2596 = vmatmul.bf16.gmra.mxu0 %v2355
    %v2597 = vpop.f32.mrf.mxu0
    %v2598 = vadd.f32 %v2396, %v2597
    %v2599 = vpop.f32.mrf.mxu0
    %v2600 = vadd.f32 %v2396, %v2599
    %2601 = vmatmul.bf16.gmra.mxu0 %v2356
    %v2602 = vpop.f32.mrf.mxu0
    %v2603 = vadd.f32 %v2396, %v2602
    %v2604 = vpop.f32.mrf.mxu0
    %v2605 = vadd.f32 %v2396, %v2604
    %2606 = vdwg.mxu0
    %2607 = vmatpush.bf16.msra.mxu0 %v2525
    %2608 = vmatpush.bf16.msra.mxu0 %v2521
    %2609 = vmatpush.bf16.msra.mxu0 %v2517
    %2610 = vmatpush.bf16.msra.mxu0 %v2513
    %2611 = vmatpush.bf16.msra.mxu0 %v2509
    %2612 = vmatpush.bf16.msra.mxu0 %v2505
    %2613 = vmatpush.bf16.msra.mxu0 %v2501
    %2614 = vmatpush.bf16.msra.mxu0 %v2497
    %2615 = vmatmul.bf16.gmra.mxu0 %v2354
    %v2616 = vpop.f32.mrf.mxu0
    %v2617 = vadd.f32 %v2397, %v2616
    %v2618 = vpop.f32.mrf.mxu0
    %v2619 = vadd.f32 %v2397, %v2618
    %2620 = vmatmul.bf16.gmra.mxu0 %v2355
    %v2621 = vpop.f32.mrf.mxu0
    %v2622 = vadd.f32 %v2397, %v2621
    %v2623 = vpop.f32.mrf.mxu0
    %v2624 = vadd.f32 %v2397, %v2623
    %2625 = vmatmul.bf16.gmra.mxu0 %v2356
    %v2626 = vpop.f32.mrf.mxu0
    %v2627 = vadd.f32 %v2397, %v2626
    %v2628 = vpop.f32.mrf.mxu0
    %v2629 = vadd.f32 %v2397, %v2628
    %2630 = vdwg.mxu0
    %2631 = vmatpush.bf16.msra.mxu0 %v2526
    %2632 = vmatpush.bf16.msra.mxu0 %v2522
    %2633 = vmatpush.bf16.msra.mxu0 %v2518
    %2634 = vmatpush.bf16.msra.mxu0 %v2514
    %2635 = vmatpush.bf16.msra.mxu0 %v2510
    %2636 = vmatpush.bf16.msra.mxu0 %v2506
    %2637 = vmatpush.bf16.msra.mxu0 %v2502
    %2638 = vmatpush.bf16.msra.mxu0 %v2498
    %2639 = vmatmul.bf16.gmra.mxu0 %v2354
    %v2640 = vpop.f32.mrf.mxu0
    %v2641 = vadd.f32 %v2398, %v2640
    %v2642 = vpop.f32.mrf.mxu0
    %v2643 = vadd.f32 %v2398, %v2642
    %2644 = vmatmul.bf16.gmra.mxu0 %v2355
    %v2645 = vpop.f32.mrf.mxu0
    %v2646 = vadd.f32 %v2398, %v2645
    %v2647 = vpop.f32.mrf.mxu0
    %v2648 = vadd.f32 %v2398, %v2647
    %2649 = vmatmul.bf16.gmra.mxu0 %v2356
    %v2650 = vpop.f32.mrf.mxu0
    %v2651 = vadd.f32 %v2398, %v2650
    %v2652 = vpop.f32.mrf.mxu0
    %v2653 = vadd.f32 %v2398, %v2652
    %2654 = vdwg.mxu0
    %v2655 = vld [vmem:[#allocation5 + $0x1b0] sm:$0xf]
    %v2656 = vld [vmem:[#allocation5 + $0x1b4] sm:$0xf]
    %v2657 = vld [vmem:[#allocation5 + $0x1b8] sm:$0xf]
    %v2658 = vld [vmem:[#allocation5 + $0x1bc] sm:$0xf]
    %v2659 = vld [vmem:[#allocation5 + $0x1c0] sm:$0xf]
    %v2660 = vld [vmem:[#allocation5 + $0x1c4] sm:$0xf]
    %v2661 = vld [vmem:[#allocation5 + $0x1c8] sm:$0xf]
    %v2662 = vld [vmem:[#allocation5 + $0x1cc] sm:$0xf]
    %v2663 = vld [vmem:[#allocation5 + $0x1d0] sm:$0xf]
    %v2664 = vld [vmem:[#allocation5 + $0x1d4] sm:$0xf]
    %v2665 = vld [vmem:[#allocation5 + $0x1d8] sm:$0xf]
    %v2666 = vld [vmem:[#allocation5 + $0x1dc] sm:$0xf]
    %v2667 = vld [vmem:[#allocation5 + $0x1e0] sm:$0xf]
    %v2668 = vld [vmem:[#allocation5 + $0x1e4] sm:$0xf]
    %v2669 = vld [vmem:[#allocation5 + $0x1e8] sm:$0xf]
    %v2670 = vld [vmem:[#allocation5 + $0x1ec] sm:$0xf]
    %v2671 = vld [vmem:[#allocation5 + $0x1f0] sm:$0x1]
    %v2672 = vunpack.c.l.bf16 %v2671
    %v2673 = vperm.slane %v2672, 0
    %v2690 = vunpack.c.l.b16 %v2655
    %v2691 = vunpack.c.l.b16 %v2656
    %v2692 = vunpack.c.l.b16 %v2657
    %v2693 = vunpack.c.l.b16 %v2658
    %v2694 = vunpack.c.l.b16 %v2659
    %v2695 = vunpack.c.l.b16 %v2660
    %v2696 = vunpack.c.l.b16 %v2661
    %v2697 = vunpack.c.l.b16 %v2662
    %v2698 = vunpack.c.l.b16 %v2663
    %v2699 = vunpack.c.l.b16 %v2664
    %v2700 = vunpack.c.l.b16 %v2665
    %v2701 = vunpack.c.l.b16 %v2666
    %v2702 = vunpack.c.l.b16 %v2667
    %v2703 = vunpack.c.l.b16 %v2668
    %v2704 = vunpack.c.l.b16 %v2669
    %v2705 = vunpack.c.l.b16 %v2670
    %v2706 = vpack.c.b16 %v2691, %v2690
    %v2707 = vpack.c.b16 %v2693, %v2692
    %v2708 = vpack.c.b16 %v2695, %v2694
    %v2709 = vpack.c.b16 %v2697, %v2696
    %v2710 = vpack.c.b16 %v2699, %v2698
    %v2711 = vpack.c.b16 %v2701, %v2700
    %v2712 = vpack.c.b16 %v2703, %v2702
    %v2713 = vpack.c.b16 %v2705, %v2704
    %2722 = vmatpush.bf16.msra.mxu0 %v2713
    %2723 = vmatpush.bf16.msra.mxu0 %v2712
    %2724 = vmatpush.bf16.msra.mxu0 %v2711
    %2725 = vmatpush.bf16.msra.mxu0 %v2710
    %2726 = vmatpush.bf16.msra.mxu0 %v2709
    %2727 = vmatpush.bf16.msra.mxu0 %v2708
    %2728 = vmatpush.bf16.msra.mxu0 %v2707
    %2729 = vmatpush.bf16.msra.mxu0 %v2706
    %2730 = vmatmul.bf16.gmra.mxu0 %v2354
    %v2731 = vpop.f32.mrf.mxu0
    %v2732 = vadd.f32 %v2673, %v2731
    %v2733 = vpop.f32.mrf.mxu0
    %v2734 = vadd.f32 %v2673, %v2733
    %2735 = vmatmul.bf16.gmra.mxu0 %v2355
    %v2736 = vpop.f32.mrf.mxu0
    %v2737 = vadd.f32 %v2673, %v2736
    %v2738 = vpop.f32.mrf.mxu0
    %v2739 = vadd.f32 %v2673, %v2738
    %2740 = vmatmul.bf16.gmra.mxu0 %v2356
    %v2741 = vpop.f32.mrf.mxu0
    %v2742 = vadd.f32 %v2673, %v2741
    %v2743 = vpop.f32.mrf.mxu0
    %v2744 = vadd.f32 %v2673, %v2743
    %2745 = vdwg.mxu0
    %v2746 = vpack.c.bf16 %v2734, %v2732
    %v2747 = vpack.c.bf16 %v2737, %v2737
    %v2748 = vpack.c.bf16 %v2571, %v2569
    %v2749 = vpack.c.bf16 %v2574, %v2574
    %v2750 = vpack.c.bf16 %v2619, %v2617
    %v2751 = vpack.c.bf16 %v2622, %v2622
    %2752 = vmatpush.bf16.xpose.msra.mxu0 0
    %2753 = vmatpush.bf16.xpose.msra.mxu0 0
    %2754 = vmatpush.bf16.xpose.msra.mxu0 0
    %2755 = vmatpush.bf16.xpose.msra.mxu0 0
    %2756 = vmatpush.bf16.xpose.msra.mxu0 0
    %2757 = vmatpush.bf16.xpose.msra.mxu0 0
    %2758 = vmatpush.bf16.xpose.msra.mxu0 %v2751
    %2759 = vmatpush.bf16.xpose.msra.mxu0 %v2750
    %2760 = vmatmul.bf16.gmra.mxu0 %v2748
    %v2761 = vpop.f32.mrf.mxu0
    %v2762 = vadd.f32 0.0, %v2761
    %v2763 = vpop.f32.mrf.mxu0
    %v2764 = vadd.f32 0.0, %v2763
    %2765 = vmatmul.bf16.gmra.mxu0 %v2749
    %v2766 = vpop.f32.mrf.mxu0
    %v2767 = vadd.f32 0.0, %v2766
    %v2768 = vpop.f32.mrf.mxu0
    %2769 = vdwg.mxu0
    %v2770 = vsel %vm189, %v2762, -1e+09
    %v2771 = vsel %vm189, %v2764, -1e+09
    %v2772 = vsel %vm189, %v2767, -1e+09
    %v2773 = vsel %vm754, %v2770, -inf
    %2774 = vmax.xlane.f32.xlu0 %v2773
    %v2775 = vpop.xlane.xlu0 %2774
    %v2776 = vsel %vm754, %v2771, -inf
    %2777 = vmax.xlane.f32.xlu0 %v2776
    %v2778 = vpop.xlane.xlu0 %2777
    %v2779 = vsel %vm754, %v2772, -inf
    %2780 = vmax.xlane.f32.xlu0 %v2779
    %v2781 = vpop.xlane.xlu0 %2780
    %v2782 = vsub.f32 %v2770, %v2775
    %v2783 = vsub.f32 %v2771, %v2778
    %v2784 = vsub.f32 %v2772, %v2781
    %v2785 = vmul.f32 %v2782, 1.442695
    %v2786 = vpow.pop %v2785
    %v2787 = vmul.f32 %v2783, 1.442695
    %v2788 = vpow.pop %v2787
    %v2789 = vmul.f32 %v2784, 1.442695
    %v2790 = vpow.pop %v2789
    %v2791 = vsel %vm754, %v2786, 0.0
    %2792 = vadd.xlane.f32.xlu0 %v2791
    %v2793 = vpop.xlane.xlu0 %2792
    %v2794 = vsel %vm754, %v2788, 0.0
    %2795 = vadd.xlane.f32.xlu0 %v2794
    %v2796 = vpop.xlane.xlu0 %2795
    %v2797 = vsel %vm754, %v2790, 0.0
    %2798 = vadd.xlane.f32.xlu0 %v2797
    %v2799 = vpop.xlane.xlu0 %2798
    %v2800 = vrcp.pop %v2793
    %v2801 = vrcp.pop %v2796
    %v2802 = vrcp.pop %v2799
    %v2803 = vmul.f32 %v2786, %v2800
    %v2804 = vmul.f32 %v2788, %v2801
    %v2805 = vmul.f32 %v2790, %v2802
    %v2806 = vpack.c.bf16 %v2804, %v2803
    %v2807 = vpack.c.bf16 %v2805, %v2805
    %v2809 = vsel %vm754, %v2806, 0
    %v2812 = vsel %vm754, %v2807, 0
    %v2815 = vsel %vm796, %v2747, 0
    %2817 = vmatpush.bf16.msra.mxu0 0
    %2818 = vmatpush.bf16.msra.mxu0 0
    %2819 = vmatpush.bf16.msra.mxu0 0
    %2820 = vmatpush.bf16.msra.mxu0 0
    %2821 = vmatpush.bf16.msra.mxu0 0
    %2822 = vmatpush.bf16.msra.mxu0 0
    %2823 = vmatpush.bf16.msra.mxu0 %v2815
    %2824 = vmatpush.bf16.msra.mxu0 %v2746
    %2825 = vmatmul.bf16.gmra.mxu0 %v2809
    %v2826 = vpop.f32.mrf.mxu0
    %v2827 = vadd.f32 0.0, %v2826
    %v2828 = vpop.f32.mrf.mxu0
    %v2829 = vadd.f32 0.0, %v2828
    %2830 = vmatmul.bf16.gmra.mxu0 %v2812
    %v2831 = vpop.f32.mrf.mxu0
    %v2832 = vadd.f32 0.0, %v2831
    %v2833 = vpop.f32.mrf.mxu0
    %2834 = vdwg.mxu0
    %v2835 = vpack.c.bf16 %v2595, %v2593
    %v2836 = vpack.c.bf16 %v2598, %v2598
    %v2837 = vpack.c.bf16 %v2643, %v2641
    %v2838 = vpack.c.bf16 %v2646, %v2646
    %2839 = vmatpush.bf16.xpose.msra.mxu0 0
    %2840 = vmatpush.bf16.xpose.msra.mxu0 0
    %2841 = vmatpush.bf16.xpose.msra.mxu0 0
    %2842 = vmatpush.bf16.xpose.msra.mxu0 0
    %2843 = vmatpush.bf16.xpose.msra.mxu0 0
    %2844 = vmatpush.bf16.xpose.msra.mxu0 0
    %2845 = vmatpush.bf16.xpose.msra.mxu0 %v2838
    %2846 = vmatpush.bf16.xpose.msra.mxu0 %v2837
    %2847 = vmatmul.bf16.gmra.mxu0 %v2835
    %v2848 = vpop.f32.mrf.mxu0
    %v2849 = vadd.f32 0.0, %v2848
    %v2850 = vpop.f32.mrf.mxu0
    %v2851 = vadd.f32 0.0, %v2850
    %2852 = vmatmul.bf16.gmra.mxu0 %v2836
    %v2853 = vpop.f32.mrf.mxu0
    %v2854 = vadd.f32 0.0, %v2853
    %v2855 = vpop.f32.mrf.mxu0
    %2856 = vdwg.mxu0
    %v2857 = vsel %vm189, %v2849, -1e+09
    %v2858 = vsel %vm189, %v2851, -1e+09
    %v2859 = vsel %vm189, %v2854, -1e+09
    %v2860 = vsel %vm754, %v2857, -inf
    %2861 = vmax.xlane.f32.xlu0 %v2860
    %v2862 = vpop.xlane.xlu0 %2861
    %v2863 = vsel %vm754, %v2858, -inf
    %2864 = vmax.xlane.f32.xlu0 %v2863
    %v2865 = vpop.xlane.xlu0 %2864
    %v2866 = vsel %vm754, %v2859, -inf
    %2867 = vmax.xlane.f32.xlu0 %v2866
    %v2868 = vpop.xlane.xlu0 %2867
    %v2869 = vsub.f32 %v2857, %v2862
    %v2870 = vsub.f32 %v2858, %v2865
    %v2871 = vsub.f32 %v2859, %v2868
    %v2872 = vmul.f32 %v2869, 1.442695
    %v2873 = vpow.pop %v2872
    %v2874 = vmul.f32 %v2870, 1.442695
    %v2875 = vpow.pop %v2874
    %v2876 = vmul.f32 %v2871, 1.442695
    %v2877 = vpow.pop %v2876
    %v2878 = vsel %vm754, %v2873, 0.0
    %2879 = vadd.xlane.f32.xlu0 %v2878
    %v2880 = vpop.xlane.xlu0 %2879
    %v2881 = vsel %vm754, %v2875, 0.0
    %2882 = vadd.xlane.f32.xlu0 %v2881
    %v2883 = vpop.xlane.xlu0 %2882
    %v2884 = vsel %vm754, %v2877, 0.0
    %2885 = vadd.xlane.f32.xlu0 %v2884
    %v2886 = vpop.xlane.xlu0 %2885
    %v2887 = vrcp.pop %v2880
    %v2888 = vrcp.pop %v2883
    %v2889 = vrcp.pop %v2886
    %v2890 = vmul.f32 %v2873, %v2887
    %v2891 = vmul.f32 %v2875, %v2888
    %v2892 = vmul.f32 %v2877, %v2889
    %v2893 = vpack.c.bf16 %v2891, %v2890
    %v2894 = vpack.c.bf16 %v2892, %v2892
    %v2896 = vsel %vm754, %v2893, 0
    %v2899 = vsel %vm754, %v2894, 0
    %2901 = vmatpush.bf16.msra.mxu0 0
    %2902 = vmatpush.bf16.msra.mxu0 0
    %2903 = vmatpush.bf16.msra.mxu0 0
    %2904 = vmatpush.bf16.msra.mxu0 0
    %2905 = vmatpush.bf16.msra.mxu0 0
    %2906 = vmatpush.bf16.msra.mxu0 0
    %2907 = vmatpush.bf16.msra.mxu0 %v2815
    %2908 = vmatpush.bf16.msra.mxu0 %v2746
    %2909 = vmatmul.bf16.gmra.mxu0 %v2896
    %v2910 = vpop.f32.mrf.mxu0
    %v2911 = vadd.f32 0.0, %v2910
    %v2912 = vpop.f32.mrf.mxu0
    %v2913 = vadd.f32 0.0, %v2912
    %2914 = vmatmul.bf16.gmra.mxu0 %v2899
    %v2915 = vpop.f32.mrf.mxu0
    %v2916 = vadd.f32 0.0, %v2915
    %v2917 = vpop.f32.mrf.mxu0
    %2918 = vdwg.mxu0
    %v2919 = vsel %vm902, %v2827, %v2911
    %v2920 = vsel %vm902, %v2829, %v2913
    %v2921 = vsel %vm902, %v2832, %v2916
    %v2922 = vpack.c.bf16 %v2920, %v2919
    %v2923 = vpack.c.bf16 %v2921, %v2921
    %v2924 = vld [vmem:[#allocation5 + $0x1f8] sm:$0xf]
    %v2925 = vld [vmem:[#allocation5 + $0x1fc] sm:$0xf]
    %v2926 = vld [vmem:[#allocation5 + $0x200] sm:$0xf]
    %v2927 = vld [vmem:[#allocation5 + $0x204] sm:$0xf]
    %v2928 = vld [vmem:[#allocation5 + $0x208] sm:$0xf]
    %v2929 = vld [vmem:[#allocation5 + $0x20c] sm:$0xf]
    %v2930 = vld [vmem:[#allocation5 + $0x210] sm:$0xf]
    %v2931 = vld [vmem:[#allocation5 + $0x214] sm:$0xf]
    %v2932 = vld [vmem:[#allocation5 + $0x218] sm:$0xf]
    %v2933 = vld [vmem:[#allocation5 + $0x21c] sm:$0xf]
    %v2934 = vld [vmem:[#allocation5 + $0x220] sm:$0xf]
    %v2935 = vld [vmem:[#allocation5 + $0x224] sm:$0xf]
    %v2936 = vld [vmem:[#allocation5 + $0x228] sm:$0xf]
    %v2937 = vld [vmem:[#allocation5 + $0x22c] sm:$0xf]
    %v2938 = vld [vmem:[#allocation5 + $0x230] sm:$0xf]
    %v2939 = vld [vmem:[#allocation5 + $0x234] sm:$0xf]
    %v2956 = vunpack.c.l.b16 %v2924
    %v2957 = vunpack.c.l.b16 %v2925
    %v2958 = vunpack.c.l.b16 %v2926
    %v2959 = vunpack.c.l.b16 %v2927
    %v2960 = vunpack.c.l.b16 %v2928
    %v2961 = vunpack.c.l.b16 %v2929
    %v2962 = vunpack.c.l.b16 %v2930
    %v2963 = vunpack.c.l.b16 %v2931
    %v2964 = vunpack.c.l.b16 %v2932
    %v2965 = vunpack.c.l.b16 %v2933
    %v2966 = vunpack.c.l.b16 %v2934
    %v2967 = vunpack.c.l.b16 %v2935
    %v2968 = vunpack.c.l.b16 %v2936
    %v2969 = vunpack.c.l.b16 %v2937
    %v2970 = vunpack.c.l.b16 %v2938
    %v2971 = vunpack.c.l.b16 %v2939
    %v2972 = vpack.c.b16 %v2957, %v2956
    %v2973 = vpack.c.b16 %v2959, %v2958
    %v2974 = vpack.c.b16 %v2961, %v2960
    %v2975 = vpack.c.b16 %v2963, %v2962
    %v2976 = vpack.c.b16 %v2965, %v2964
    %v2977 = vpack.c.b16 %v2967, %v2966
    %v2978 = vpack.c.b16 %v2969, %v2968
    %v2979 = vpack.c.b16 %v2971, %v2970
    %2988 = vmatpush.bf16.msra.mxu0 %v2979
    %2989 = vmatpush.bf16.msra.mxu0 %v2978
    %2990 = vmatpush.bf16.msra.mxu0 %v2977
    %2991 = vmatpush.bf16.msra.mxu0 %v2976
    %2992 = vmatpush.bf16.msra.mxu0 %v2975
    %2993 = vmatpush.bf16.msra.mxu0 %v2974
    %2994 = vmatpush.bf16.msra.mxu0 %v2973
    %2995 = vmatpush.bf16.msra.mxu0 %v2972
    %2996 = vmatmul.bf16.gmra.mxu0 %v2922
    %v2997 = vpop.f32.mrf.mxu0
    %v2998 = vadd.f32 0.0, %v2997
    %v2999 = vpop.f32.mrf.mxu0
    %v3000 = vadd.f32 0.0, %v2999
    %3001 = vmatmul.bf16.gmra.mxu0 %v2923
    %v3002 = vpop.f32.mrf.mxu0
    %v3003 = vadd.f32 0.0, %v3002
    %v3004 = vpop.f32.mrf.mxu0
    %3005 = vdwg.mxu0
    %v3006 = vpack.c.bf16 %v2742, %v2739
    %v3007 = vpack.c.bf16 %v2744, %v2744
    %v3008 = vpack.c.bf16 %v2579, %v2576
    %v3009 = vpack.c.bf16 %v2581, %v2581
    %v3010 = vpack.c.bf16 %v2627, %v2624
    %v3011 = vpack.c.bf16 %v2629, %v2629
    %3012 = vmatpush.bf16.xpose.msra.mxu0 0
    %3013 = vmatpush.bf16.xpose.msra.mxu0 0
    %3014 = vmatpush.bf16.xpose.msra.mxu0 0
    %3015 = vmatpush.bf16.xpose.msra.mxu0 0
    %3016 = vmatpush.bf16.xpose.msra.mxu0 0
    %3017 = vmatpush.bf16.xpose.msra.mxu0 0
    %3018 = vmatpush.bf16.xpose.msra.mxu0 %v3011
    %3019 = vmatpush.bf16.xpose.msra.mxu0 %v3010
    %3020 = vmatmul.bf16.gmra.mxu0 %v3008
    %v3021 = vpop.f32.mrf.mxu0
    %v3022 = vadd.f32 0.0, %v3021
    %v3023 = vpop.f32.mrf.mxu0
    %v3024 = vadd.f32 0.0, %v3023
    %3025 = vmatmul.bf16.gmra.mxu0 %v3009
    %v3026 = vpop.f32.mrf.mxu0
    %v3027 = vadd.f32 0.0, %v3026
    %v3028 = vpop.f32.mrf.mxu0
    %3029 = vdwg.mxu0
    %v3030 = vsel %vm189, %v3022, -1e+09
    %v3031 = vsel %vm189, %v3024, -1e+09
    %v3032 = vsel %vm189, %v3027, -1e+09
    %v3033 = vsel %vm754, %v3030, -inf
    %3034 = vmax.xlane.f32.xlu0 %v3033
    %v3035 = vpop.xlane.xlu0 %3034
    %v3036 = vsel %vm754, %v3031, -inf
    %3037 = vmax.xlane.f32.xlu0 %v3036
    %v3038 = vpop.xlane.xlu0 %3037
    %v3039 = vsel %vm754, %v3032, -inf
    %3040 = vmax.xlane.f32.xlu0 %v3039
    %v3041 = vpop.xlane.xlu0 %3040
    %v3042 = vsub.f32 %v3030, %v3035
    %v3043 = vsub.f32 %v3031, %v3038
    %v3044 = vsub.f32 %v3032, %v3041
    %v3045 = vmul.f32 %v3042, 1.442695
    %v3046 = vpow.pop %v3045
    %v3047 = vmul.f32 %v3043, 1.442695
    %v3048 = vpow.pop %v3047
    %v3049 = vmul.f32 %v3044, 1.442695
    %v3050 = vpow.pop %v3049
    %v3051 = vsel %vm754, %v3046, 0.0
    %3052 = vadd.xlane.f32.xlu0 %v3051
    %v3053 = vpop.xlane.xlu0 %3052
    %v3054 = vsel %vm754, %v3048, 0.0
    %3055 = vadd.xlane.f32.xlu0 %v3054
    %v3056 = vpop.xlane.xlu0 %3055
    %v3057 = vsel %vm754, %v3050, 0.0
    %3058 = vadd.xlane.f32.xlu0 %v3057
    %v3059 = vpop.xlane.xlu0 %3058
    %v3060 = vrcp.pop %v3053
    %v3061 = vrcp.pop %v3056
    %v3062 = vrcp.pop %v3059
    %v3063 = vmul.f32 %v3046, %v3060
    %v3064 = vmul.f32 %v3048, %v3061
    %v3065 = vmul.f32 %v3050, %v3062
    %v3066 = vpack.c.bf16 %v3064, %v3063
    %v3067 = vpack.c.bf16 %v3065, %v3065
    %v3069 = vsel %vm754, %v3066, 0
    %v3072 = vsel %vm754, %v3067, 0
    %v3075 = vsel %vm796, %v3007, 0
    %3077 = vmatpush.bf16.msra.mxu0 0
    %3078 = vmatpush.bf16.msra.mxu0 0
    %3079 = vmatpush.bf16.msra.mxu0 0
    %3080 = vmatpush.bf16.msra.mxu0 0
    %3081 = vmatpush.bf16.msra.mxu0 0
    %3082 = vmatpush.bf16.msra.mxu0 0
    %3083 = vmatpush.bf16.msra.mxu0 %v3075
    %3084 = vmatpush.bf16.msra.mxu0 %v3006
    %3085 = vmatmul.bf16.gmra.mxu0 %v3069
    %v3086 = vpop.f32.mrf.mxu0
    %v3087 = vadd.f32 0.0, %v3086
    %v3088 = vpop.f32.mrf.mxu0
    %v3089 = vadd.f32 0.0, %v3088
    %3090 = vmatmul.bf16.gmra.mxu0 %v3072
    %v3091 = vpop.f32.mrf.mxu0
    %v3092 = vadd.f32 0.0, %v3091
    %v3093 = vpop.f32.mrf.mxu0
    %3094 = vdwg.mxu0
    %v3095 = vpack.c.bf16 %v2603, %v2600
    %v3096 = vpack.c.bf16 %v2605, %v2605
    %v3097 = vpack.c.bf16 %v2651, %v2648
    %v3098 = vpack.c.bf16 %v2653, %v2653
    %3099 = vmatpush.bf16.xpose.msra.mxu0 0
    %3100 = vmatpush.bf16.xpose.msra.mxu0 0
    %3101 = vmatpush.bf16.xpose.msra.mxu0 0
    %3102 = vmatpush.bf16.xpose.msra.mxu0 0
    %3103 = vmatpush.bf16.xpose.msra.mxu0 0
    %3104 = vmatpush.bf16.xpose.msra.mxu0 0
    %3105 = vmatpush.bf16.xpose.msra.mxu0 %v3098
    %3106 = vmatpush.bf16.xpose.msra.mxu0 %v3097
    %3107 = vmatmul.bf16.gmra.mxu0 %v3095
    %v3108 = vpop.f32.mrf.mxu0
    %v3109 = vadd.f32 0.0, %v3108
    %v3110 = vpop.f32.mrf.mxu0
    %v3111 = vadd.f32 0.0, %v3110
    %3112 = vmatmul.bf16.gmra.mxu0 %v3096
    %v3113 = vpop.f32.mrf.mxu0
    %v3114 = vadd.f32 0.0, %v3113
    %v3115 = vpop.f32.mrf.mxu0
    %3116 = vdwg.mxu0
    %v3117 = vsel %vm189, %v3109, -1e+09
    %v3118 = vsel %vm189, %v3111, -1e+09
    %v3119 = vsel %vm189, %v3114, -1e+09
    %v3120 = vsel %vm754, %v3117, -inf
    %3121 = vmax.xlane.f32.xlu0 %v3120
    %v3122 = vpop.xlane.xlu0 %3121
    %v3123 = vsel %vm754, %v3118, -inf
    %3124 = vmax.xlane.f32.xlu0 %v3123
    %v3125 = vpop.xlane.xlu0 %3124
    %v3126 = vsel %vm754, %v3119, -inf
    %3127 = vmax.xlane.f32.xlu0 %v3126
    %v3128 = vpop.xlane.xlu0 %3127
    %v3129 = vsub.f32 %v3117, %v3122
    %v3130 = vsub.f32 %v3118, %v3125
    %v3131 = vsub.f32 %v3119, %v3128
    %v3132 = vmul.f32 %v3129, 1.442695
    %v3133 = vpow.pop %v3132
    %v3134 = vmul.f32 %v3130, 1.442695
    %v3135 = vpow.pop %v3134
    %v3136 = vmul.f32 %v3131, 1.442695
    %v3137 = vpow.pop %v3136
    %v3138 = vsel %vm754, %v3133, 0.0
    %3139 = vadd.xlane.f32.xlu0 %v3138
    %v3140 = vpop.xlane.xlu0 %3139
    %v3141 = vsel %vm754, %v3135, 0.0
    %3142 = vadd.xlane.f32.xlu0 %v3141
    %v3143 = vpop.xlane.xlu0 %3142
    %v3144 = vsel %vm754, %v3137, 0.0
    %3145 = vadd.xlane.f32.xlu0 %v3144
    %v3146 = vpop.xlane.xlu0 %3145
    %v3147 = vrcp.pop %v3140
    %v3148 = vrcp.pop %v3143
    %v3149 = vrcp.pop %v3146
    %v3150 = vmul.f32 %v3133, %v3147
    %v3151 = vmul.f32 %v3135, %v3148
    %v3152 = vmul.f32 %v3137, %v3149
    %v3153 = vpack.c.bf16 %v3151, %v3150
    %v3154 = vpack.c.bf16 %v3152, %v3152
    %v3156 = vsel %vm754, %v3153, 0
    %v3159 = vsel %vm754, %v3154, 0
    %3161 = vmatpush.bf16.msra.mxu0 0
    %3162 = vmatpush.bf16.msra.mxu0 0
    %3163 = vmatpush.bf16.msra.mxu0 0
    %3164 = vmatpush.bf16.msra.mxu0 0
    %3165 = vmatpush.bf16.msra.mxu0 0
    %3166 = vmatpush.bf16.msra.mxu0 0
    %3167 = vmatpush.bf16.msra.mxu0 %v3075
    %3168 = vmatpush.bf16.msra.mxu0 %v3006
    %3169 = vmatmul.bf16.gmra.mxu0 %v3156
    %v3170 = vpop.f32.mrf.mxu0
    %v3171 = vadd.f32 0.0, %v3170
    %v3172 = vpop.f32.mrf.mxu0
    %v3173 = vadd.f32 0.0, %v3172
    %3174 = vmatmul.bf16.gmra.mxu0 %v3159
    %v3175 = vpop.f32.mrf.mxu0
    %v3176 = vadd.f32 0.0, %v3175
    %v3177 = vpop.f32.mrf.mxu0
    %3178 = vdwg.mxu0
    %v3179 = vsel %vm902, %v3087, %v3171
    %v3180 = vsel %vm902, %v3089, %v3173
    %v3181 = vsel %vm902, %v3092, %v3176
    %v3182 = vpack.c.bf16 %v3180, %v3179
    %v3183 = vpack.c.bf16 %v3181, %v3181
    %3184 = vmatpush.bf16.msra.mxu0 %v2979
    %3185 = vmatpush.bf16.msra.mxu0 %v2978
    %3186 = vmatpush.bf16.msra.mxu0 %v2977
    %3187 = vmatpush.bf16.msra.mxu0 %v2976
    %3188 = vmatpush.bf16.msra.mxu0 %v2975
    %3189 = vmatpush.bf16.msra.mxu0 %v2974
    %3190 = vmatpush.bf16.msra.mxu0 %v2973
    %3191 = vmatpush.bf16.msra.mxu0 %v2972
    %3192 = vmatmul.bf16.gmra.mxu0 %v3182
    %v3193 = vpop.f32.mrf.mxu0
    %v3194 = vadd.f32 0.0, %v3193
    %v3195 = vpop.f32.mrf.mxu0
    %v3196 = vadd.f32 0.0, %v3195
    %3197 = vmatmul.bf16.gmra.mxu0 %v3183
    %v3198 = vpop.f32.mrf.mxu0
    %v3199 = vadd.f32 0.0, %v3198
    %v3200 = vpop.f32.mrf.mxu0
    %3201 = vdwg.mxu0
    %v3202 = vadd.f32 %v2210, %v2998
    %v3203 = vadd.f32 %v2211, %v3000
    %v3204 = vadd.f32 %v2212, %v3003
    %v3205 = vadd.f32 %v2213, %v3194
    %v3206 = vadd.f32 %v2214, %v3196
    %v3207 = vadd.f32 %v2215, %v3199
    %v3208 = vld [vmem:[#allocation5 + $0x238] sm:$0x1]
    %v3209 = vunpack.c.l.bf16 %v3208
    %v3210 = vperm.slane %v3209, 0
    %v3211 = vadd.f32 %v3202, %v3210
    %v3212 = vadd.f32 %v3203, %v3210
    %v3213 = vadd.f32 %v3204, %v3210
    %v3214 = vadd.f32 %v3205, %v3210
    %v3215 = vadd.f32 %v3206, %v3210
    %v3216 = vadd.f32 %v3207, %v3210
    %v3217 = vld [vmem:[#allocation5 + $0x240] sm:$0x1]
    %v3218 = vld [vmem:[#allocation5 + $0x248] sm:$0x1]
    %3219 = vadd.xlane.f32.xlu0 %v3211
    %v3220 = vpop.xlane.xlu0 %3219
    %3221 = vadd.xlane.f32.xlu0 %v3212
    %v3222 = vpop.xlane.xlu0 %3221
    %3223 = vadd.xlane.f32.xlu0 %v3213
    %v3224 = vpop.xlane.xlu0 %3223
    %3225 = vadd.xlane.f32.xlu0 %v3214
    %v3226 = vpop.xlane.xlu0 %3225
    %3227 = vadd.xlane.f32.xlu0 %v3215
    %v3228 = vpop.xlane.xlu0 %3227
    %3229 = vadd.xlane.f32.xlu0 %v3216
    %v3230 = vpop.xlane.xlu0 %3229
    %v3231 = vmul.f32 %v3220, %v210
    %v3232 = vmul.f32 %v3222, %v210
    %v3233 = vmul.f32 %v3224, %v210
    %v3234 = vmul.f32 %v3226, %v210
    %v3235 = vmul.f32 %v3228, %v210
    %v3236 = vmul.f32 %v3230, %v210
    %v3237 = vsub.f32 %v3211, %v3231
    %v3238 = vsub.f32 %v3212, %v3232
    %v3239 = vsub.f32 %v3213, %v3233
    %v3240 = vsub.f32 %v3214, %v3234
    %v3241 = vsub.f32 %v3215, %v3235
    %v3242 = vsub.f32 %v3216, %v3236
    %v3243 = vmul.f32 %v3237, %v3237
    %v3244 = vmul.f32 %v3238, %v3238
    %v3245 = vmul.f32 %v3239, %v3239
    %v3246 = vmul.f32 %v3240, %v3240
    %v3247 = vmul.f32 %v3241, %v3241
    %v3248 = vmul.f32 %v3242, %v3242
    %3249 = vadd.xlane.f32.xlu0 %v3243
    %v3250 = vpop.xlane.xlu0 %3249
    %3251 = vadd.xlane.f32.xlu0 %v3244
    %v3252 = vpop.xlane.xlu0 %3251
    %3253 = vadd.xlane.f32.xlu0 %v3245
    %v3254 = vpop.xlane.xlu0 %3253
    %3255 = vadd.xlane.f32.xlu0 %v3246
    %v3256 = vpop.xlane.xlu0 %3255
    %3257 = vadd.xlane.f32.xlu0 %v3247
    %v3258 = vpop.xlane.xlu0 %3257
    %3259 = vadd.xlane.f32.xlu0 %v3248
    %v3260 = vpop.xlane.xlu0 %3259
    %v3261 = vmul.f32 %v3250, %v210
    %v3262 = vmul.f32 %v3252, %v210
    %v3263 = vmul.f32 %v3254, %v210
    %v3264 = vmul.f32 %v3256, %v210
    %v3265 = vmul.f32 %v3258, %v210
    %v3266 = vmul.f32 %v3260, %v210
    %v3267 = vadd.f32 %v3261, 1e-06
    %v3268 = vadd.f32 %v3262, 1e-06
    %v3269 = vadd.f32 %v3263, 1e-06
    %v3270 = vadd.f32 %v3264, 1e-06
    %v3271 = vadd.f32 %v3265, 1e-06
    %v3272 = vadd.f32 %v3266, 1e-06
    %v3273 = vrsqrt.pop %v3267
    %v3274 = vmul.f32 %v3273, %v3267
    %v3275 = vmul.f32 %v3274, %v3273
    %v3276 = vmul.f32 0.5, %v3275
    %v3277 = vsub.f32 1.5, %v3276
    %v3278 = vmul.f32 %v3273, %v3277
    %vm3279 = vweird.f32 %v3267
    %vm3280 = vweird.f32 %v3273
    %vm3281 = vmor %vm3279, %vm3280
    %v3282 = vsel %vm3281, %v3273, %v3278
    %v3283 = vrsqrt.pop %v3268
    %v3284 = vmul.f32 %v3283, %v3268
    %v3285 = vmul.f32 %v3284, %v3283
    %v3286 = vmul.f32 0.5, %v3285
    %v3287 = vsub.f32 1.5, %v3286
    %v3288 = vmul.f32 %v3283, %v3287
    %vm3289 = vweird.f32 %v3268
    %vm3290 = vweird.f32 %v3283
    %vm3291 = vmor %vm3289, %vm3290
    %v3292 = vsel %vm3291, %v3283, %v3288
    %v3293 = vrsqrt.pop %v3269
    %v3294 = vmul.f32 %v3293, %v3269
    %v3295 = vmul.f32 %v3294, %v3293
    %v3296 = vmul.f32 0.5, %v3295
    %v3297 = vsub.f32 1.5, %v3296
    %v3298 = vmul.f32 %v3293, %v3297
    %vm3299 = vweird.f32 %v3269
    %vm3300 = vweird.f32 %v3293
    %vm3301 = vmor %vm3299, %vm3300
    %v3302 = vsel %vm3301, %v3293, %v3298
    %v3303 = vrsqrt.pop %v3270
    %v3304 = vmul.f32 %v3303, %v3270
    %v3305 = vmul.f32 %v3304, %v3303
    %v3306 = vmul.f32 0.5, %v3305
    %v3307 = vsub.f32 1.5, %v3306
    %v3308 = vmul.f32 %v3303, %v3307
    %vm3309 = vweird.f32 %v3270
    %vm3310 = vweird.f32 %v3303
    %vm3311 = vmor %vm3309, %vm3310
    %v3312 = vsel %vm3311, %v3303, %v3308
    %v3313 = vrsqrt.pop %v3271
    %v3314 = vmul.f32 %v3313, %v3271
    %v3315 = vmul.f32 %v3314, %v3313
    %v3316 = vmul.f32 0.5, %v3315
    %v3317 = vsub.f32 1.5, %v3316
    %v3318 = vmul.f32 %v3313, %v3317
    %vm3319 = vweird.f32 %v3271
    %vm3320 = vweird.f32 %v3313
    %vm3321 = vmor %vm3319, %vm3320
    %v3322 = vsel %vm3321, %v3313, %v3318
    %v3323 = vrsqrt.pop %v3272
    %v3324 = vmul.f32 %v3323, %v3272
    %v3325 = vmul.f32 %v3324, %v3323
    %v3326 = vmul.f32 0.5, %v3325
    %v3327 = vsub.f32 1.5, %v3326
    %v3328 = vmul.f32 %v3323, %v3327
    %vm3329 = vweird.f32 %v3272
    %vm3330 = vweird.f32 %v3323
    %vm3331 = vmor %vm3329, %vm3330
    %v3332 = vsel %vm3331, %v3323, %v3328
    %v3333 = vmul.f32 %v3237, %v3282
    %v3334 = vmul.f32 %v3238, %v3292
    %v3335 = vmul.f32 %v3239, %v3302
    %v3336 = vmul.f32 %v3240, %v3312
    %v3337 = vmul.f32 %v3241, %v3322
    %v3338 = vmul.f32 %v3242, %v3332
    %v3339 = vunpack.c.l.bf16 %v3217
    %v3340 = vperm.slane %v3339, 0
    %v3341 = vmul.f32 %v3333, %v3340
    %v3342 = vmul.f32 %v3334, %v3340
    %v3343 = vmul.f32 %v3335, %v3340
    %v3344 = vmul.f32 %v3336, %v3340
    %v3345 = vmul.f32 %v3337, %v3340
    %v3346 = vmul.f32 %v3338, %v3340
    %v3347 = vunpack.c.l.bf16 %v3218
    %v3348 = vperm.slane %v3347, 0
    %v3349 = vadd.f32 %v3341, %v3348
    %v3350 = vadd.f32 %v3342, %v3348
    %v3351 = vadd.f32 %v3343, %v3348
    %v3352 = vadd.f32 %v3344, %v3348
    %v3353 = vadd.f32 %v3345, %v3348
    %v3354 = vadd.f32 %v3346, %v3348
    %v3355 = vpack.c.bf16 %v3350, %v3349
    %v3356 = vpack.c.bf16 %v3352, %v3351
    %v3357 = vpack.c.bf16 %v3354, %v3353
    %v3358 = vld [vmem:[#allocation7 + $0x360] sm:$0xff]
    %v3359 = vld [vmem:[#allocation7 + $0x370] sm:$0xff]
    %v3360 = vld [vmem:[#allocation7 + $0x380] sm:$0xff]
    %v3361 = vld [vmem:[#allocation7 + $0x390] sm:$0xff]
    %v3362 = vld [vmem:[#allocation7 + $0x3a0] sm:$0xff]
    %v3363 = vld [vmem:[#allocation7 + $0x3b0] sm:$0xff]
    %v3364 = vld [vmem:[#allocation7 + $0x3c0] sm:$0xff]
    %v3365 = vld [vmem:[#allocation7 + $0x3d0] sm:$0xff]
    %v3366 = vld [vmem:[#allocation7 + $0x3e0] sm:$0xff]
    %v3367 = vld [vmem:[#allocation7 + $0x3f0] sm:$0xff]
    %v3368 = vld [vmem:[#allocation7 + $0x400] sm:$0xff]
    %v3369 = vld [vmem:[#allocation7 + $0x410] sm:$0xff]
    %v3370 = vld [vmem:[#allocation7 + $0x420] sm:$0xff]
    %v3371 = vld [vmem:[#allocation7 + $0x430] sm:$0xff]
    %v3372 = vld [vmem:[#allocation7 + $0x440] sm:$0xff]
    %v3373 = vld [vmem:[#allocation7 + $0x450] sm:$0xff]
    %v3374 = vld [vmem:[#allocation7 + $0x460] sm:$0x11]
    %v3375 = vunpack.c.l.bf16 %v3374
    %v3376 = vunpack.c.h.bf16 %v3374
    %v3377 = vperm.slane %v3375, 0
    %v3378 = vperm.slane %v3376, 0
    %v3395 = vunpack.c.l.b16 %v3358
    %v3396 = vunpack.c.h.b16 %v3358
    %v3397 = vunpack.c.l.b16 %v3359
    %v3398 = vunpack.c.h.b16 %v3359
    %v3399 = vunpack.c.l.b16 %v3360
    %v3400 = vunpack.c.h.b16 %v3360
    %v3401 = vunpack.c.l.b16 %v3361
    %v3402 = vunpack.c.h.b16 %v3361
    %v3403 = vunpack.c.l.b16 %v3362
    %v3404 = vunpack.c.h.b16 %v3362
    %v3405 = vunpack.c.l.b16 %v3363
    %v3406 = vunpack.c.h.b16 %v3363
    %v3407 = vunpack.c.l.b16 %v3364
    %v3408 = vunpack.c.h.b16 %v3364
    %v3409 = vunpack.c.l.b16 %v3365
    %v3410 = vunpack.c.h.b16 %v3365
    %v3411 = vunpack.c.l.b16 %v3366
    %v3412 = vunpack.c.h.b16 %v3366
    %v3413 = vunpack.c.l.b16 %v3367
    %v3414 = vunpack.c.h.b16 %v3367
    %v3415 = vunpack.c.l.b16 %v3368
    %v3416 = vunpack.c.h.b16 %v3368
    %v3417 = vunpack.c.l.b16 %v3369
    %v3418 = vunpack.c.h.b16 %v3369
    %v3419 = vunpack.c.l.b16 %v3370
    %v3420 = vunpack.c.h.b16 %v3370
    %v3421 = vunpack.c.l.b16 %v3371
    %v3422 = vunpack.c.h.b16 %v3371
    %v3423 = vunpack.c.l.b16 %v3372
    %v3424 = vunpack.c.h.b16 %v3372
    %v3425 = vunpack.c.l.b16 %v3373
    %v3426 = vunpack.c.h.b16 %v3373
    %v3427 = vpack.c.b16 %v3397, %v3395
    %v3428 = vpack.c.b16 %v3398, %v3396
    %v3429 = vpack.c.b16 %v3401, %v3399
    %v3430 = vpack.c.b16 %v3402, %v3400
    %v3431 = vpack.c.b16 %v3405, %v3403
    %v3432 = vpack.c.b16 %v3406, %v3404
    %v3433 = vpack.c.b16 %v3409, %v3407
    %v3434 = vpack.c.b16 %v3410, %v3408
    %v3435 = vpack.c.b16 %v3413, %v3411
    %v3436 = vpack.c.b16 %v3414, %v3412
    %v3437 = vpack.c.b16 %v3417, %v3415
    %v3438 = vpack.c.b16 %v3418, %v3416
    %v3439 = vpack.c.b16 %v3421, %v3419
    %v3440 = vpack.c.b16 %v3422, %v3420
    %v3441 = vpack.c.b16 %v3425, %v3423
    %v3442 = vpack.c.b16 %v3426, %v3424
    %3459 = vmatpush.bf16.msra.mxu0 %v3441
    %3460 = vmatpush.bf16.msra.mxu0 %v3439
    %3461 = vmatpush.bf16.msra.mxu0 %v3437
    %3462 = vmatpush.bf16.msra.mxu0 %v3435
    %3463 = vmatpush.bf16.msra.mxu0 %v3433
    %3464 = vmatpush.bf16.msra.mxu0 %v3431
    %3465 = vmatpush.bf16.msra.mxu0 %v3429
    %3466 = vmatpush.bf16.msra.mxu0 %v3427
    %3467 = vmatmul.bf16.gmra.mxu0 %v3355
    %v3468 = vpop.f32.mrf.mxu0
    %v3469 = vadd.f32 %v3377, %v3468
    %v3470 = vpop.f32.mrf.mxu0
    %v3471 = vadd.f32 %v3377, %v3470
    %3472 = vmatmul.bf16.gmra.mxu0 %v3356
    %v3473 = vpop.f32.mrf.mxu0
    %v3474 = vadd.f32 %v3377, %v3473
    %v3475 = vpop.f32.mrf.mxu0
    %v3476 = vadd.f32 %v3377, %v3475
    %3477 = vmatmul.bf16.gmra.mxu0 %v3357
    %v3478 = vpop.f32.mrf.mxu0
    %v3479 = vadd.f32 %v3377, %v3478
    %v3480 = vpop.f32.mrf.mxu0
    %v3481 = vadd.f32 %v3377, %v3480
    %3482 = vdwg.mxu0
    %3483 = vmatpush.bf16.msra.mxu0 %v3442
    %3484 = vmatpush.bf16.msra.mxu0 %v3440
    %3485 = vmatpush.bf16.msra.mxu0 %v3438
    %3486 = vmatpush.bf16.msra.mxu0 %v3436
    %3487 = vmatpush.bf16.msra.mxu0 %v3434
    %3488 = vmatpush.bf16.msra.mxu0 %v3432
    %3489 = vmatpush.bf16.msra.mxu0 %v3430
    %3490 = vmatpush.bf16.msra.mxu0 %v3428
    %3491 = vmatmul.bf16.gmra.mxu0 %v3355
    %v3492 = vpop.f32.mrf.mxu0
    %v3493 = vadd.f32 %v3378, %v3492
    %v3494 = vpop.f32.mrf.mxu0
    %v3495 = vadd.f32 %v3378, %v3494
    %3496 = vmatmul.bf16.gmra.mxu0 %v3356
    %v3497 = vpop.f32.mrf.mxu0
    %v3498 = vadd.f32 %v3378, %v3497
    %v3499 = vpop.f32.mrf.mxu0
    %v3500 = vadd.f32 %v3378, %v3499
    %3501 = vmatmul.bf16.gmra.mxu0 %v3357
    %v3502 = vpop.f32.mrf.mxu0
    %v3503 = vadd.f32 %v3378, %v3502
    %v3504 = vpop.f32.mrf.mxu0
    %v3505 = vadd.f32 %v3378, %v3504
    %3506 = vdwg.mxu0
    %v3507 = vmul.f32 %v3469, 0.5
    %v3508 = vmul.f32 %v3493, 0.5
    %v3509 = vmul.f32 %v3471, 0.5
    %v3510 = vmul.f32 %v3495, 0.5
    %v3511 = vmul.f32 %v3474, 0.5
    %v3512 = vmul.f32 %v3498, 0.5
    %v3513 = vmul.f32 %v3476, 0.5
    %v3514 = vmul.f32 %v3500, 0.5
    %v3515 = vmul.f32 %v3479, 0.5
    %v3516 = vmul.f32 %v3503, 0.5
    %v3517 = vmul.f32 %v3481, 0.5
    %v3518 = vmul.f32 %v3505, 0.5
    %v3519 = vmul.f32 %v3469, 0.70710677
    %v3520 = vmul.f32 %v3493, 0.70710677
    %v3521 = vmul.f32 %v3471, 0.70710677
    %v3522 = vmul.f32 %v3495, 0.70710677
    %v3523 = vmul.f32 %v3474, 0.70710677
    %v3524 = vmul.f32 %v3498, 0.70710677
    %v3525 = vmul.f32 %v3476, 0.70710677
    %v3526 = vmul.f32 %v3500, 0.70710677
    %v3527 = vmul.f32 %v3479, 0.70710677
    %v3528 = vmul.f32 %v3503, 0.70710677
    %v3529 = vmul.f32 %v3481, 0.70710677
    %v3530 = vmul.f32 %v3505, 0.70710677
    %v3531 = vmul.f32 %v3519, %v3519
    %v3532 = vmin.f32 16.0, %v3531
    %v3533 = vmul.f32 %v3532, 2.1237322e-06
    %v3534 = vadd.f32 %v3533, 0.00028619796
    %v3535 = vmul.f32 %v3532, %v3534
    %v3536 = vadd.f32 %v3535, 0.0036580483
    %v3537 = vmul.f32 %v3532, %v3536
    %v3538 = vadd.f32 %v3537, 0.05243302
    %v3539 = vmul.f32 %v3532, %v3538
    %v3540 = vadd.f32 %v3539, 0.18741608
    %v3541 = vmul.f32 %v3532, %v3540
    %v3542 = vadd.f32 %v3541, 1.1283791
    %v3543 = vmul.f32 %v3519, %v3542
    %v3544 = vmul.f32 %v3532, 3.8918573e-05
    %v3545 = vadd.f32 %v3544, 0.001143296
    %v3546 = vmul.f32 %v3532, %v3545
    %v3547 = vadd.f32 %v3546, 0.014752088
    %v3548 = vmul.f32 %v3532, %v3547
    %v3549 = vadd.f32 %v3548, 0.112945676
    %v3550 = vmul.f32 %v3532, %v3549
    %v3551 = vadd.f32 %v3550, 0.4994258
    %v3552 = vmul.f32 %v3532, %v3551
    %v3553 = vadd.f32 %v3552, 1.0
    %v3554 = vrcp.pop %v3553
    %v3555 = vmul.f32 %v3553, %v3554
    %v3556 = vsub.f32 1.0, %v3555
    %v3557 = vmul.f32 %v3554, %v3556
    %v3558 = vadd.f32 %v3554, %v3557
    %vm3559 = vweird.f32 %v3553
    %vm3560 = vweird.f32 %v3554
    %vm3561 = vmor %vm3559, %vm3560
    %v3562 = vsel %vm3561, %v3554, %v3558
    %v3563 = vand.u32 2147483647, %v3553
    %vm3564 = vcmp.eq.f32.partialorder %v3563, 8.507059e+37
    %v3565 = vand.u32 %v3553, 2147483648
    %v3566 = vor.u32 1.1754944e-38, %v3565
    %v3567 = vsel %vm3564, %v3566, %v3562
    %v3568 = vmul.f32 %v3543, %v3567
    %v3569 = vmin.f32 %v3568, 1.0
    %v3570 = vmax.f32 %v3569, -1.0
    %v3571 = vmul.f32 %v3520, %v3520
    %v3572 = vmin.f32 16.0, %v3571
    %v3573 = vmul.f32 %v3572, 2.1237322e-06
    %v3574 = vadd.f32 %v3573, 0.00028619796
    %v3575 = vmul.f32 %v3572, %v3574
    %v3576 = vadd.f32 %v3575, 0.0036580483
    %v3577 = vmul.f32 %v3572, %v3576
    %v3578 = vadd.f32 %v3577, 0.05243302
    %v3579 = vmul.f32 %v3572, %v3578
    %v3580 = vadd.f32 %v3579, 0.18741608
    %v3581 = vmul.f32 %v3572, %v3580
    %v3582 = vadd.f32 %v3581, 1.1283791
    %v3583 = vmul.f32 %v3520, %v3582
    %v3584 = vmul.f32 %v3572, 3.8918573e-05
    %v3585 = vadd.f32 %v3584, 0.001143296
    %v3586 = vmul.f32 %v3572, %v3585
    %v3587 = vadd.f32 %v3586, 0.014752088
    %v3588 = vmul.f32 %v3572, %v3587
    %v3589 = vadd.f32 %v3588, 0.112945676
    %v3590 = vmul.f32 %v3572, %v3589
    %v3591 = vadd.f32 %v3590, 0.4994258
    %v3592 = vmul.f32 %v3572, %v3591
    %v3593 = vadd.f32 %v3592, 1.0
    %v3594 = vrcp.pop %v3593
    %v3595 = vmul.f32 %v3593, %v3594
    %v3596 = vsub.f32 1.0, %v3595
    %v3597 = vmul.f32 %v3594, %v3596
    %v3598 = vadd.f32 %v3594, %v3597
    %vm3599 = vweird.f32 %v3593
    %vm3600 = vweird.f32 %v3594
    %vm3601 = vmor %vm3599, %vm3600
    %v3602 = vsel %vm3601, %v3594, %v3598
    %v3603 = vand.u32 2147483647, %v3593
    %vm3604 = vcmp.eq.f32.partialorder %v3603, 8.507059e+37
    %v3605 = vand.u32 %v3593, 2147483648
    %v3606 = vor.u32 1.1754944e-38, %v3605
    %v3607 = vsel %vm3604, %v3606, %v3602
    %v3608 = vmul.f32 %v3583, %v3607
    %v3609 = vmin.f32 %v3608, 1.0
    %v3610 = vmax.f32 %v3609, -1.0
    %v3611 = vmul.f32 %v3521, %v3521
    %v3612 = vmin.f32 16.0, %v3611
    %v3613 = vmul.f32 %v3612, 2.1237322e-06
    %v3614 = vadd.f32 %v3613, 0.00028619796
    %v3615 = vmul.f32 %v3612, %v3614
    %v3616 = vadd.f32 %v3615, 0.0036580483
    %v3617 = vmul.f32 %v3612, %v3616
    %v3618 = vadd.f32 %v3617, 0.05243302
    %v3619 = vmul.f32 %v3612, %v3618
    %v3620 = vadd.f32 %v3619, 0.18741608
    %v3621 = vmul.f32 %v3612, %v3620
    %v3622 = vadd.f32 %v3621, 1.1283791
    %v3623 = vmul.f32 %v3521, %v3622
    %v3624 = vmul.f32 %v3612, 3.8918573e-05
    %v3625 = vadd.f32 %v3624, 0.001143296
    %v3626 = vmul.f32 %v3612, %v3625
    %v3627 = vadd.f32 %v3626, 0.014752088
    %v3628 = vmul.f32 %v3612, %v3627
    %v3629 = vadd.f32 %v3628, 0.112945676
    %v3630 = vmul.f32 %v3612, %v3629
    %v3631 = vadd.f32 %v3630, 0.4994258
    %v3632 = vmul.f32 %v3612, %v3631
    %v3633 = vadd.f32 %v3632, 1.0
    %v3634 = vrcp.pop %v3633
    %v3635 = vmul.f32 %v3633, %v3634
    %v3636 = vsub.f32 1.0, %v3635
    %v3637 = vmul.f32 %v3634, %v3636
    %v3638 = vadd.f32 %v3634, %v3637
    %vm3639 = vweird.f32 %v3633
    %vm3640 = vweird.f32 %v3634
    %vm3641 = vmor %vm3639, %vm3640
    %v3642 = vsel %vm3641, %v3634, %v3638
    %v3643 = vand.u32 2147483647, %v3633
    %vm3644 = vcmp.eq.f32.partialorder %v3643, 8.507059e+37
    %v3645 = vand.u32 %v3633, 2147483648
    %v3646 = vor.u32 1.1754944e-38, %v3645
    %v3647 = vsel %vm3644, %v3646, %v3642
    %v3648 = vmul.f32 %v3623, %v3647
    %v3649 = vmin.f32 %v3648, 1.0
    %v3650 = vmax.f32 %v3649, -1.0
    %v3651 = vmul.f32 %v3522, %v3522
    %v3652 = vmin.f32 16.0, %v3651
    %v3653 = vmul.f32 %v3652, 2.1237322e-06
    %v3654 = vadd.f32 %v3653, 0.00028619796
    %v3655 = vmul.f32 %v3652, %v3654
    %v3656 = vadd.f32 %v3655, 0.0036580483
    %v3657 = vmul.f32 %v3652, %v3656
    %v3658 = vadd.f32 %v3657, 0.05243302
    %v3659 = vmul.f32 %v3652, %v3658
    %v3660 = vadd.f32 %v3659, 0.18741608
    %v3661 = vmul.f32 %v3652, %v3660
    %v3662 = vadd.f32 %v3661, 1.1283791
    %v3663 = vmul.f32 %v3522, %v3662
    %v3664 = vmul.f32 %v3652, 3.8918573e-05
    %v3665 = vadd.f32 %v3664, 0.001143296
    %v3666 = vmul.f32 %v3652, %v3665
    %v3667 = vadd.f32 %v3666, 0.014752088
    %v3668 = vmul.f32 %v3652, %v3667
    %v3669 = vadd.f32 %v3668, 0.112945676
    %v3670 = vmul.f32 %v3652, %v3669
    %v3671 = vadd.f32 %v3670, 0.4994258
    %v3672 = vmul.f32 %v3652, %v3671
    %v3673 = vadd.f32 %v3672, 1.0
    %v3674 = vrcp.pop %v3673
    %v3675 = vmul.f32 %v3673, %v3674
    %v3676 = vsub.f32 1.0, %v3675
    %v3677 = vmul.f32 %v3674, %v3676
    %v3678 = vadd.f32 %v3674, %v3677
    %vm3679 = vweird.f32 %v3673
    %vm3680 = vweird.f32 %v3674
    %vm3681 = vmor %vm3679, %vm3680
    %v3682 = vsel %vm3681, %v3674, %v3678
    %v3683 = vand.u32 2147483647, %v3673
    %vm3684 = vcmp.eq.f32.partialorder %v3683, 8.507059e+37
    %v3685 = vand.u32 %v3673, 2147483648
    %v3686 = vor.u32 1.1754944e-38, %v3685
    %v3687 = vsel %vm3684, %v3686, %v3682
    %v3688 = vmul.f32 %v3663, %v3687
    %v3689 = vmin.f32 %v3688, 1.0
    %v3690 = vmax.f32 %v3689, -1.0
    %v3691 = vmul.f32 %v3523, %v3523
    %v3692 = vmin.f32 16.0, %v3691
    %v3693 = vmul.f32 %v3692, 2.1237322e-06
    %v3694 = vadd.f32 %v3693, 0.00028619796
    %v3695 = vmul.f32 %v3692, %v3694
    %v3696 = vadd.f32 %v3695, 0.0036580483
    %v3697 = vmul.f32 %v3692, %v3696
    %v3698 = vadd.f32 %v3697, 0.05243302
    %v3699 = vmul.f32 %v3692, %v3698
    %v3700 = vadd.f32 %v3699, 0.18741608
    %v3701 = vmul.f32 %v3692, %v3700
    %v3702 = vadd.f32 %v3701, 1.1283791
    %v3703 = vmul.f32 %v3523, %v3702
    %v3704 = vmul.f32 %v3692, 3.8918573e-05
    %v3705 = vadd.f32 %v3704, 0.001143296
    %v3706 = vmul.f32 %v3692, %v3705
    %v3707 = vadd.f32 %v3706, 0.014752088
    %v3708 = vmul.f32 %v3692, %v3707
    %v3709 = vadd.f32 %v3708, 0.112945676
    %v3710 = vmul.f32 %v3692, %v3709
    %v3711 = vadd.f32 %v3710, 0.4994258
    %v3712 = vmul.f32 %v3692, %v3711
    %v3713 = vadd.f32 %v3712, 1.0
    %v3714 = vrcp.pop %v3713
    %v3715 = vmul.f32 %v3713, %v3714
    %v3716 = vsub.f32 1.0, %v3715
    %v3717 = vmul.f32 %v3714, %v3716
    %v3718 = vadd.f32 %v3714, %v3717
    %vm3719 = vweird.f32 %v3713
    %vm3720 = vweird.f32 %v3714
    %vm3721 = vmor %vm3719, %vm3720
    %v3722 = vsel %vm3721, %v3714, %v3718
    %v3723 = vand.u32 2147483647, %v3713
    %vm3724 = vcmp.eq.f32.partialorder %v3723, 8.507059e+37
    %v3725 = vand.u32 %v3713, 2147483648
    %v3726 = vor.u32 1.1754944e-38, %v3725
    %v3727 = vsel %vm3724, %v3726, %v3722
    %v3728 = vmul.f32 %v3703, %v3727
    %v3729 = vmin.f32 %v3728, 1.0
    %v3730 = vmax.f32 %v3729, -1.0
    %v3731 = vmul.f32 %v3524, %v3524
    %v3732 = vmin.f32 16.0, %v3731
    %v3733 = vmul.f32 %v3732, 2.1237322e-06
    %v3734 = vadd.f32 %v3733, 0.00028619796
    %v3735 = vmul.f32 %v3732, %v3734
    %v3736 = vadd.f32 %v3735, 0.0036580483
    %v3737 = vmul.f32 %v3732, %v3736
    %v3738 = vadd.f32 %v3737, 0.05243302
    %v3739 = vmul.f32 %v3732, %v3738
    %v3740 = vadd.f32 %v3739, 0.18741608
    %v3741 = vmul.f32 %v3732, %v3740
    %v3742 = vadd.f32 %v3741, 1.1283791
    %v3743 = vmul.f32 %v3524, %v3742
    %v3744 = vmul.f32 %v3732, 3.8918573e-05
    %v3745 = vadd.f32 %v3744, 0.001143296
    %v3746 = vmul.f32 %v3732, %v3745
    %v3747 = vadd.f32 %v3746, 0.014752088
    %v3748 = vmul.f32 %v3732, %v3747
    %v3749 = vadd.f32 %v3748, 0.112945676
    %v3750 = vmul.f32 %v3732, %v3749
    %v3751 = vadd.f32 %v3750, 0.4994258
    %v3752 = vmul.f32 %v3732, %v3751
    %v3753 = vadd.f32 %v3752, 1.0
    %v3754 = vrcp.pop %v3753
    %v3755 = vmul.f32 %v3753, %v3754
    %v3756 = vsub.f32 1.0, %v3755
    %v3757 = vmul.f32 %v3754, %v3756
    %v3758 = vadd.f32 %v3754, %v3757
    %vm3759 = vweird.f32 %v3753
    %vm3760 = vweird.f32 %v3754
    %vm3761 = vmor %vm3759, %vm3760
    %v3762 = vsel %vm3761, %v3754, %v3758
    %v3763 = vand.u32 2147483647, %v3753
    %vm3764 = vcmp.eq.f32.partialorder %v3763, 8.507059e+37
    %v3765 = vand.u32 %v3753, 2147483648
    %v3766 = vor.u32 1.1754944e-38, %v3765
    %v3767 = vsel %vm3764, %v3766, %v3762
    %v3768 = vmul.f32 %v3743, %v3767
    %v3769 = vmin.f32 %v3768, 1.0
    %v3770 = vmax.f32 %v3769, -1.0
    %v3771 = vmul.f32 %v3525, %v3525
    %v3772 = vmin.f32 16.0, %v3771
    %v3773 = vmul.f32 %v3772, 2.1237322e-06
    %v3774 = vadd.f32 %v3773, 0.00028619796
    %v3775 = vmul.f32 %v3772, %v3774
    %v3776 = vadd.f32 %v3775, 0.0036580483
    %v3777 = vmul.f32 %v3772, %v3776
    %v3778 = vadd.f32 %v3777, 0.05243302
    %v3779 = vmul.f32 %v3772, %v3778
    %v3780 = vadd.f32 %v3779, 0.18741608
    %v3781 = vmul.f32 %v3772, %v3780
    %v3782 = vadd.f32 %v3781, 1.1283791
    %v3783 = vmul.f32 %v3525, %v3782
    %v3784 = vmul.f32 %v3772, 3.8918573e-05
    %v3785 = vadd.f32 %v3784, 0.001143296
    %v3786 = vmul.f32 %v3772, %v3785
    %v3787 = vadd.f32 %v3786, 0.014752088
    %v3788 = vmul.f32 %v3772, %v3787
    %v3789 = vadd.f32 %v3788, 0.112945676
    %v3790 = vmul.f32 %v3772, %v3789
    %v3791 = vadd.f32 %v3790, 0.4994258
    %v3792 = vmul.f32 %v3772, %v3791
    %v3793 = vadd.f32 %v3792, 1.0
    %v3794 = vrcp.pop %v3793
    %v3795 = vmul.f32 %v3793, %v3794
    %v3796 = vsub.f32 1.0, %v3795
    %v3797 = vmul.f32 %v3794, %v3796
    %v3798 = vadd.f32 %v3794, %v3797
    %vm3799 = vweird.f32 %v3793
    %vm3800 = vweird.f32 %v3794
    %vm3801 = vmor %vm3799, %vm3800
    %v3802 = vsel %vm3801, %v3794, %v3798
    %v3803 = vand.u32 2147483647, %v3793
    %vm3804 = vcmp.eq.f32.partialorder %v3803, 8.507059e+37
    %v3805 = vand.u32 %v3793, 2147483648
    %v3806 = vor.u32 1.1754944e-38, %v3805
    %v3807 = vsel %vm3804, %v3806, %v3802
    %v3808 = vmul.f32 %v3783, %v3807
    %v3809 = vmin.f32 %v3808, 1.0
    %v3810 = vmax.f32 %v3809, -1.0
    %v3811 = vmul.f32 %v3526, %v3526
    %v3812 = vmin.f32 16.0, %v3811
    %v3813 = vmul.f32 %v3812, 2.1237322e-06
    %v3814 = vadd.f32 %v3813, 0.00028619796
    %v3815 = vmul.f32 %v3812, %v3814
    %v3816 = vadd.f32 %v3815, 0.0036580483
    %v3817 = vmul.f32 %v3812, %v3816
    %v3818 = vadd.f32 %v3817, 0.05243302
    %v3819 = vmul.f32 %v3812, %v3818
    %v3820 = vadd.f32 %v3819, 0.18741608
    %v3821 = vmul.f32 %v3812, %v3820
    %v3822 = vadd.f32 %v3821, 1.1283791
    %v3823 = vmul.f32 %v3526, %v3822
    %v3824 = vmul.f32 %v3812, 3.8918573e-05
    %v3825 = vadd.f32 %v3824, 0.001143296
    %v3826 = vmul.f32 %v3812, %v3825
    %v3827 = vadd.f32 %v3826, 0.014752088
    %v3828 = vmul.f32 %v3812, %v3827
    %v3829 = vadd.f32 %v3828, 0.112945676
    %v3830 = vmul.f32 %v3812, %v3829
    %v3831 = vadd.f32 %v3830, 0.4994258
    %v3832 = vmul.f32 %v3812, %v3831
    %v3833 = vadd.f32 %v3832, 1.0
    %v3834 = vrcp.pop %v3833
    %v3835 = vmul.f32 %v3833, %v3834
    %v3836 = vsub.f32 1.0, %v3835
    %v3837 = vmul.f32 %v3834, %v3836
    %v3838 = vadd.f32 %v3834, %v3837
    %vm3839 = vweird.f32 %v3833
    %vm3840 = vweird.f32 %v3834
    %vm3841 = vmor %vm3839, %vm3840
    %v3842 = vsel %vm3841, %v3834, %v3838
    %v3843 = vand.u32 2147483647, %v3833
    %vm3844 = vcmp.eq.f32.partialorder %v3843, 8.507059e+37
    %v3845 = vand.u32 %v3833, 2147483648
    %v3846 = vor.u32 1.1754944e-38, %v3845
    %v3847 = vsel %vm3844, %v3846, %v3842
    %v3848 = vmul.f32 %v3823, %v3847
    %v3849 = vmin.f32 %v3848, 1.0
    %v3850 = vmax.f32 %v3849, -1.0
    %v3851 = vmul.f32 %v3527, %v3527
    %v3852 = vmin.f32 16.0, %v3851
    %v3853 = vmul.f32 %v3852, 2.1237322e-06
    %v3854 = vadd.f32 %v3853, 0.00028619796
    %v3855 = vmul.f32 %v3852, %v3854
    %v3856 = vadd.f32 %v3855, 0.0036580483
    %v3857 = vmul.f32 %v3852, %v3856
    %v3858 = vadd.f32 %v3857, 0.05243302
    %v3859 = vmul.f32 %v3852, %v3858
    %v3860 = vadd.f32 %v3859, 0.18741608
    %v3861 = vmul.f32 %v3852, %v3860
    %v3862 = vadd.f32 %v3861, 1.1283791
    %v3863 = vmul.f32 %v3527, %v3862
    %v3864 = vmul.f32 %v3852, 3.8918573e-05
    %v3865 = vadd.f32 %v3864, 0.001143296
    %v3866 = vmul.f32 %v3852, %v3865
    %v3867 = vadd.f32 %v3866, 0.014752088
    %v3868 = vmul.f32 %v3852, %v3867
    %v3869 = vadd.f32 %v3868, 0.112945676
    %v3870 = vmul.f32 %v3852, %v3869
    %v3871 = vadd.f32 %v3870, 0.4994258
    %v3872 = vmul.f32 %v3852, %v3871
    %v3873 = vadd.f32 %v3872, 1.0
    %v3874 = vrcp.pop %v3873
    %v3875 = vmul.f32 %v3873, %v3874
    %v3876 = vsub.f32 1.0, %v3875
    %v3877 = vmul.f32 %v3874, %v3876
    %v3878 = vadd.f32 %v3874, %v3877
    %vm3879 = vweird.f32 %v3873
    %vm3880 = vweird.f32 %v3874
    %vm3881 = vmor %vm3879, %vm3880
    %v3882 = vsel %vm3881, %v3874, %v3878
    %v3883 = vand.u32 2147483647, %v3873
    %vm3884 = vcmp.eq.f32.partialorder %v3883, 8.507059e+37
    %v3885 = vand.u32 %v3873, 2147483648
    %v3886 = vor.u32 1.1754944e-38, %v3885
    %v3887 = vsel %vm3884, %v3886, %v3882
    %v3888 = vmul.f32 %v3863, %v3887
    %v3889 = vmin.f32 %v3888, 1.0
    %v3890 = vmax.f32 %v3889, -1.0
    %v3891 = vmul.f32 %v3528, %v3528
    %v3892 = vmin.f32 16.0, %v3891
    %v3893 = vmul.f32 %v3892, 2.1237322e-06
    %v3894 = vadd.f32 %v3893, 0.00028619796
    %v3895 = vmul.f32 %v3892, %v3894
    %v3896 = vadd.f32 %v3895, 0.0036580483
    %v3897 = vmul.f32 %v3892, %v3896
    %v3898 = vadd.f32 %v3897, 0.05243302
    %v3899 = vmul.f32 %v3892, %v3898
    %v3900 = vadd.f32 %v3899, 0.18741608
    %v3901 = vmul.f32 %v3892, %v3900
    %v3902 = vadd.f32 %v3901, 1.1283791
    %v3903 = vmul.f32 %v3528, %v3902
    %v3904 = vmul.f32 %v3892, 3.8918573e-05
    %v3905 = vadd.f32 %v3904, 0.001143296
    %v3906 = vmul.f32 %v3892, %v3905
    %v3907 = vadd.f32 %v3906, 0.014752088
    %v3908 = vmul.f32 %v3892, %v3907
    %v3909 = vadd.f32 %v3908, 0.112945676
    %v3910 = vmul.f32 %v3892, %v3909
    %v3911 = vadd.f32 %v3910, 0.4994258
    %v3912 = vmul.f32 %v3892, %v3911
    %v3913 = vadd.f32 %v3912, 1.0
    %v3914 = vrcp.pop %v3913
    %v3915 = vmul.f32 %v3913, %v3914
    %v3916 = vsub.f32 1.0, %v3915
    %v3917 = vmul.f32 %v3914, %v3916
    %v3918 = vadd.f32 %v3914, %v3917
    %vm3919 = vweird.f32 %v3913
    %vm3920 = vweird.f32 %v3914
    %vm3921 = vmor %vm3919, %vm3920
    %v3922 = vsel %vm3921, %v3914, %v3918
    %v3923 = vand.u32 2147483647, %v3913
    %vm3924 = vcmp.eq.f32.partialorder %v3923, 8.507059e+37
    %v3925 = vand.u32 %v3913, 2147483648
    %v3926 = vor.u32 1.1754944e-38, %v3925
    %v3927 = vsel %vm3924, %v3926, %v3922
    %v3928 = vmul.f32 %v3903, %v3927
    %v3929 = vmin.f32 %v3928, 1.0
    %v3930 = vmax.f32 %v3929, -1.0
    %v3931 = vmul.f32 %v3529, %v3529
    %v3932 = vmin.f32 16.0, %v3931
    %v3933 = vmul.f32 %v3932, 2.1237322e-06
    %v3934 = vadd.f32 %v3933, 0.00028619796
    %v3935 = vmul.f32 %v3932, %v3934
    %v3936 = vadd.f32 %v3935, 0.0036580483
    %v3937 = vmul.f32 %v3932, %v3936
    %v3938 = vadd.f32 %v3937, 0.05243302
    %v3939 = vmul.f32 %v3932, %v3938
    %v3940 = vadd.f32 %v3939, 0.18741608
    %v3941 = vmul.f32 %v3932, %v3940
    %v3942 = vadd.f32 %v3941, 1.1283791
    %v3943 = vmul.f32 %v3529, %v3942
    %v3944 = vmul.f32 %v3932, 3.8918573e-05
    %v3945 = vadd.f32 %v3944, 0.001143296
    %v3946 = vmul.f32 %v3932, %v3945
    %v3947 = vadd.f32 %v3946, 0.014752088
    %v3948 = vmul.f32 %v3932, %v3947
    %v3949 = vadd.f32 %v3948, 0.112945676
    %v3950 = vmul.f32 %v3932, %v3949
    %v3951 = vadd.f32 %v3950, 0.4994258
    %v3952 = vmul.f32 %v3932, %v3951
    %v3953 = vadd.f32 %v3952, 1.0
    %v3954 = vrcp.pop %v3953
    %v3955 = vmul.f32 %v3953, %v3954
    %v3956 = vsub.f32 1.0, %v3955
    %v3957 = vmul.f32 %v3954, %v3956
    %v3958 = vadd.f32 %v3954, %v3957
    %vm3959 = vweird.f32 %v3953
    %vm3960 = vweird.f32 %v3954
    %vm3961 = vmor %vm3959, %vm3960
    %v3962 = vsel %vm3961, %v3954, %v3958
    %v3963 = vand.u32 2147483647, %v3953
    %vm3964 = vcmp.eq.f32.partialorder %v3963, 8.507059e+37
    %v3965 = vand.u32 %v3953, 2147483648
    %v3966 = vor.u32 1.1754944e-38, %v3965
    %v3967 = vsel %vm3964, %v3966, %v3962
    %v3968 = vmul.f32 %v3943, %v3967
    %v3969 = vmin.f32 %v3968, 1.0
    %v3970 = vmax.f32 %v3969, -1.0
    %v3971 = vmul.f32 %v3530, %v3530
    %v3972 = vmin.f32 16.0, %v3971
    %v3973 = vmul.f32 %v3972, 2.1237322e-06
    %v3974 = vadd.f32 %v3973, 0.00028619796
    %v3975 = vmul.f32 %v3972, %v3974
    %v3976 = vadd.f32 %v3975, 0.0036580483
    %v3977 = vmul.f32 %v3972, %v3976
    %v3978 = vadd.f32 %v3977, 0.05243302
    %v3979 = vmul.f32 %v3972, %v3978
    %v3980 = vadd.f32 %v3979, 0.18741608
    %v3981 = vmul.f32 %v3972, %v3980
    %v3982 = vadd.f32 %v3981, 1.1283791
    %v3983 = vmul.f32 %v3530, %v3982
    %v3984 = vmul.f32 %v3972, 3.8918573e-05
    %v3985 = vadd.f32 %v3984, 0.001143296
    %v3986 = vmul.f32 %v3972, %v3985
    %v3987 = vadd.f32 %v3986, 0.014752088
    %v3988 = vmul.f32 %v3972, %v3987
    %v3989 = vadd.f32 %v3988, 0.112945676
    %v3990 = vmul.f32 %v3972, %v3989
    %v3991 = vadd.f32 %v3990, 0.4994258
    %v3992 = vmul.f32 %v3972, %v3991
    %v3993 = vadd.f32 %v3992, 1.0
    %v3994 = vrcp.pop %v3993
    %v3995 = vmul.f32 %v3993, %v3994
    %v3996 = vsub.f32 1.0, %v3995
    %v3997 = vmul.f32 %v3994, %v3996
    %v3998 = vadd.f32 %v3994, %v3997
    %vm3999 = vweird.f32 %v3993
    %vm4000 = vweird.f32 %v3994
    %vm4001 = vmor %vm3999, %vm4000
    %v4002 = vsel %vm4001, %v3994, %v3998
    %v4003 = vand.u32 2147483647, %v3993
    %vm4004 = vcmp.eq.f32.partialorder %v4003, 8.507059e+37
    %v4005 = vand.u32 %v3993, 2147483648
    %v4006 = vor.u32 1.1754944e-38, %v4005
    %v4007 = vsel %vm4004, %v4006, %v4002
    %v4008 = vmul.f32 %v3983, %v4007
    %v4009 = vmin.f32 %v4008, 1.0
    %v4010 = vmax.f32 %v4009, -1.0
    %v4011 = vadd.f32 %v3570, 1.0
    %v4012 = vadd.f32 %v3610, 1.0
    %v4013 = vadd.f32 %v3650, 1.0
    %v4014 = vadd.f32 %v3690, 1.0
    %v4015 = vadd.f32 %v3730, 1.0
    %v4016 = vadd.f32 %v3770, 1.0
    %v4017 = vadd.f32 %v3810, 1.0
    %v4018 = vadd.f32 %v3850, 1.0
    %v4019 = vadd.f32 %v3890, 1.0
    %v4020 = vadd.f32 %v3930, 1.0
    %v4021 = vadd.f32 %v3970, 1.0
    %v4022 = vadd.f32 %v4010, 1.0
    %v4023 = vmul.f32 %v3507, %v4011
    %v4024 = vmul.f32 %v3508, %v4012
    %v4025 = vmul.f32 %v3509, %v4013
    %v4026 = vmul.f32 %v3510, %v4014
    %v4027 = vmul.f32 %v3511, %v4015
    %v4028 = vmul.f32 %v3512, %v4016
    %v4029 = vmul.f32 %v3513, %v4017
    %v4030 = vmul.f32 %v3514, %v4018
    %v4031 = vmul.f32 %v3515, %v4019
    %v4032 = vmul.f32 %v3516, %v4020
    %v4033 = vmul.f32 %v3517, %v4021
    %v4034 = vmul.f32 %v3518, %v4022
    %v4035 = vpack.c.bf16 %v4025, %v4023
    %v4036 = vpack.c.bf16 %v4026, %v4024
    %v4037 = vpack.c.bf16 %v4029, %v4027
    %v4038 = vpack.c.bf16 %v4030, %v4028
    %v4039 = vpack.c.bf16 %v4033, %v4031
    %v4040 = vpack.c.bf16 %v4034, %v4032
    %v4041 = vld [vmem:[#allocation5 + $0x250] sm:$0xf]
    %v4042 = vld [vmem:[#allocation5 + $0x254] sm:$0xf]
    %v4043 = vld [vmem:[#allocation5 + $0x258] sm:$0xf]
    %v4044 = vld [vmem:[#allocation5 + $0x25c] sm:$0xf]
    %v4045 = vld [vmem:[#allocation5 + $0x260] sm:$0xf]
    %v4046 = vld [vmem:[#allocation5 + $0x264] sm:$0xf]
    %v4047 = vld [vmem:[#allocation5 + $0x268] sm:$0xf]
    %v4048 = vld [vmem:[#allocation5 + $0x26c] sm:$0xf]
    %v4049 = vld [vmem:[#allocation5 + $0x270] sm:$0xf]
    %v4050 = vld [vmem:[#allocation5 + $0x274] sm:$0xf]
    %v4051 = vld [vmem:[#allocation5 + $0x278] sm:$0xf]
    %v4052 = vld [vmem:[#allocation5 + $0x27c] sm:$0xf]
    %v4053 = vld [vmem:[#allocation5 + $0x280] sm:$0xf]
    %v4054 = vld [vmem:[#allocation5 + $0x284] sm:$0xf]
    %v4055 = vld [vmem:[#allocation5 + $0x288] sm:$0xf]
    %v4056 = vld [vmem:[#allocation5 + $0x28c] sm:$0xf]
    %v4057 = vld [vmem:[#allocation5 + $0x290] sm:$0xf]
    %v4058 = vld [vmem:[#allocation5 + $0x294] sm:$0xf]
    %v4059 = vld [vmem:[#allocation5 + $0x298] sm:$0xf]
    %v4060 = vld [vmem:[#allocation5 + $0x29c] sm:$0xf]
    %v4061 = vld [vmem:[#allocation5 + $0x2a0] sm:$0xf]
    %v4062 = vld [vmem:[#allocation5 + $0x2a4] sm:$0xf]
    %v4063 = vld [vmem:[#allocation5 + $0x2a8] sm:$0xf]
    %v4064 = vld [vmem:[#allocation5 + $0x2ac] sm:$0xf]
    %v4065 = vld [vmem:[#allocation5 + $0x2b0] sm:$0xf]
    %v4066 = vld [vmem:[#allocation5 + $0x2b4] sm:$0xf]
    %v4067 = vld [vmem:[#allocation5 + $0x2b8] sm:$0xf]
    %v4068 = vld [vmem:[#allocation5 + $0x2bc] sm:$0xf]
    %v4069 = vld [vmem:[#allocation5 + $0x2c0] sm:$0xf]
    %v4070 = vld [vmem:[#allocation5 + $0x2c4] sm:$0xf]
    %v4071 = vld [vmem:[#allocation5 + $0x2c8] sm:$0xf]
    %v4072 = vld [vmem:[#allocation5 + $0x2cc] sm:$0xf]
    %v4105 = vunpack.c.l.b16 %v4041
    %v4106 = vunpack.c.l.b16 %v4042
    %v4107 = vunpack.c.l.b16 %v4043
    %v4108 = vunpack.c.l.b16 %v4044
    %v4109 = vunpack.c.l.b16 %v4045
    %v4110 = vunpack.c.l.b16 %v4046
    %v4111 = vunpack.c.l.b16 %v4047
    %v4112 = vunpack.c.l.b16 %v4048
    %v4113 = vunpack.c.l.b16 %v4049
    %v4114 = vunpack.c.l.b16 %v4050
    %v4115 = vunpack.c.l.b16 %v4051
    %v4116 = vunpack.c.l.b16 %v4052
    %v4117 = vunpack.c.l.b16 %v4053
    %v4118 = vunpack.c.l.b16 %v4054
    %v4119 = vunpack.c.l.b16 %v4055
    %v4120 = vunpack.c.l.b16 %v4056
    %v4121 = vunpack.c.l.b16 %v4057
    %v4122 = vunpack.c.l.b16 %v4058
    %v4123 = vunpack.c.l.b16 %v4059
    %v4124 = vunpack.c.l.b16 %v4060
    %v4125 = vunpack.c.l.b16 %v4061
    %v4126 = vunpack.c.l.b16 %v4062
    %v4127 = vunpack.c.l.b16 %v4063
    %v4128 = vunpack.c.l.b16 %v4064
    %v4129 = vunpack.c.l.b16 %v4065
    %v4130 = vunpack.c.l.b16 %v4066
    %v4131 = vunpack.c.l.b16 %v4067
    %v4132 = vunpack.c.l.b16 %v4068
    %v4133 = vunpack.c.l.b16 %v4069
    %v4134 = vunpack.c.l.b16 %v4070
    %v4135 = vunpack.c.l.b16 %v4071
    %v4136 = vunpack.c.l.b16 %v4072
    %v4137 = vpack.c.b16 %v4106, %v4105
    %v4138 = vpack.c.b16 %v4108, %v4107
    %v4139 = vpack.c.b16 %v4110, %v4109
    %v4140 = vpack.c.b16 %v4112, %v4111
    %v4141 = vpack.c.b16 %v4114, %v4113
    %v4142 = vpack.c.b16 %v4116, %v4115
    %v4143 = vpack.c.b16 %v4118, %v4117
    %v4144 = vpack.c.b16 %v4120, %v4119
    %v4145 = vpack.c.b16 %v4122, %v4121
    %v4146 = vpack.c.b16 %v4124, %v4123
    %v4147 = vpack.c.b16 %v4126, %v4125
    %v4148 = vpack.c.b16 %v4128, %v4127
    %v4149 = vpack.c.b16 %v4130, %v4129
    %v4150 = vpack.c.b16 %v4132, %v4131
    %v4151 = vpack.c.b16 %v4134, %v4133
    %v4152 = vpack.c.b16 %v4136, %v4135
    %4169 = vmatpush.bf16.msra.mxu0 %v4144
    %4170 = vmatpush.bf16.msra.mxu0 %v4143
    %4171 = vmatpush.bf16.msra.mxu0 %v4142
    %4172 = vmatpush.bf16.msra.mxu0 %v4141
    %4173 = vmatpush.bf16.msra.mxu0 %v4140
    %4174 = vmatpush.bf16.msra.mxu0 %v4139
    %4175 = vmatpush.bf16.msra.mxu0 %v4138
    %4176 = vmatpush.bf16.msra.mxu0 %v4137
    %4177 = vmatmul.bf16.gmra.mxu0 %v4035
    %v4178 = vpop.f32.mrf.mxu0
    %v4179 = vadd.f32 0.0, %v4178
    %v4180 = vpop.f32.mrf.mxu0
    %v4181 = vadd.f32 0.0, %v4180
    %4182 = vmatmul.bf16.gmra.mxu0 %v4037
    %v4183 = vpop.f32.mrf.mxu0
    %v4184 = vadd.f32 0.0, %v4183
    %v4185 = vpop.f32.mrf.mxu0
    %v4186 = vadd.f32 0.0, %v4185
    %4187 = vmatmul.bf16.gmra.mxu0 %v4039
    %v4188 = vpop.f32.mrf.mxu0
    %v4189 = vadd.f32 0.0, %v4188
    %v4190 = vpop.f32.mrf.mxu0
    %v4191 = vadd.f32 0.0, %v4190
    %4192 = vdwg.mxu0
    %4193 = vmatpush.bf16.msra.mxu0 %v4152
    %4194 = vmatpush.bf16.msra.mxu0 %v4151
    %4195 = vmatpush.bf16.msra.mxu0 %v4150
    %4196 = vmatpush.bf16.msra.mxu0 %v4149
    %4197 = vmatpush.bf16.msra.mxu0 %v4148
    %4198 = vmatpush.bf16.msra.mxu0 %v4147
    %4199 = vmatpush.bf16.msra.mxu0 %v4146
    %4200 = vmatpush.bf16.msra.mxu0 %v4145
    %4201 = vmatmul.bf16.gmra.mxu0 %v4036
    %v4202 = vpop.f32.mrf.mxu0
    %v4203 = vadd.f32 %v4179, %v4202
    %v4204 = vpop.f32.mrf.mxu0
    %v4205 = vadd.f32 %v4181, %v4204
    %4206 = vmatmul.bf16.gmra.mxu0 %v4038
    %v4207 = vpop.f32.mrf.mxu0
    %v4208 = vadd.f32 %v4184, %v4207
    %v4209 = vpop.f32.mrf.mxu0
    %v4210 = vadd.f32 %v4186, %v4209
    %4211 = vmatmul.bf16.gmra.mxu0 %v4040
    %v4212 = vpop.f32.mrf.mxu0
    %v4213 = vadd.f32 %v4189, %v4212
    %v4214 = vpop.f32.mrf.mxu0
    %v4215 = vadd.f32 %v4191, %v4214
    %4216 = vdwg.mxu0
    %v4217 = vadd.f32 %v3211, %v4203
    %v4218 = vadd.f32 %v3212, %v4205
    %v4219 = vadd.f32 %v3213, %v4208
    %v4220 = vadd.f32 %v3214, %v4210
    %v4221 = vadd.f32 %v3215, %v4213
    %v4222 = vadd.f32 %v3216, %v4215
    %v4223 = vld [vmem:[#allocation5 + $0x2d0] sm:$0x1]
    %v4224 = vunpack.c.l.bf16 %v4223
    %v4225 = vperm.slane %v4224, 0
    %v4226 = vadd.f32 %v4217, %v4225
    %v4227 = vadd.f32 %v4218, %v4225
    %v4228 = vadd.f32 %v4219, %v4225
    %v4229 = vadd.f32 %v4220, %v4225
    %v4230 = vadd.f32 %v4221, %v4225
    %v4231 = vadd.f32 %v4222, %v4225
    %v4232 = vld [vmem:[#allocation5 + $0x58] sm:$0x1]
    %v4233 = vld [vmem:[#allocation5 + $0x60] sm:$0x1]
    %4234 = vadd.xlane.f32.xlu0 %v4226
    %v4235 = vpop.xlane.xlu0 %4234
    %4236 = vadd.xlane.f32.xlu0 %v4227
    %v4237 = vpop.xlane.xlu0 %4236
    %4238 = vadd.xlane.f32.xlu0 %v4228
    %v4239 = vpop.xlane.xlu0 %4238
    %4240 = vadd.xlane.f32.xlu0 %v4229
    %v4241 = vpop.xlane.xlu0 %4240
    %4242 = vadd.xlane.f32.xlu0 %v4230
    %v4243 = vpop.xlane.xlu0 %4242
    %4244 = vadd.xlane.f32.xlu0 %v4231
    %v4245 = vpop.xlane.xlu0 %4244
    %v4246 = vmul.f32 %v4235, %v210
    %v4247 = vmul.f32 %v4237, %v210
    %v4248 = vmul.f32 %v4239, %v210
    %v4249 = vmul.f32 %v4241, %v210
    %v4250 = vmul.f32 %v4243, %v210
    %v4251 = vmul.f32 %v4245, %v210
    %v4252 = vsub.f32 %v4226, %v4246
    %v4253 = vsub.f32 %v4227, %v4247
    %v4254 = vsub.f32 %v4228, %v4248
    %v4255 = vsub.f32 %v4229, %v4249
    %v4256 = vsub.f32 %v4230, %v4250
    %v4257 = vsub.f32 %v4231, %v4251
    %v4258 = vmul.f32 %v4252, %v4252
    %v4259 = vmul.f32 %v4253, %v4253
    %v4260 = vmul.f32 %v4254, %v4254
    %v4261 = vmul.f32 %v4255, %v4255
    %v4262 = vmul.f32 %v4256, %v4256
    %v4263 = vmul.f32 %v4257, %v4257
    %4264 = vadd.xlane.f32.xlu0 %v4258
    %v4265 = vpop.xlane.xlu0 %4264
    %4266 = vadd.xlane.f32.xlu0 %v4259
    %v4267 = vpop.xlane.xlu0 %4266
    %4268 = vadd.xlane.f32.xlu0 %v4260
    %v4269 = vpop.xlane.xlu0 %4268
    %4270 = vadd.xlane.f32.xlu0 %v4261
    %v4271 = vpop.xlane.xlu0 %4270
    %4272 = vadd.xlane.f32.xlu0 %v4262
    %v4273 = vpop.xlane.xlu0 %4272
    %4274 = vadd.xlane.f32.xlu0 %v4263
    %v4275 = vpop.xlane.xlu0 %4274
    %v4276 = vmul.f32 %v4265, %v210
    %v4277 = vmul.f32 %v4267, %v210
    %v4278 = vmul.f32 %v4269, %v210
    %v4279 = vmul.f32 %v4271, %v210
    %v4280 = vmul.f32 %v4273, %v210
    %v4281 = vmul.f32 %v4275, %v210
    %v4282 = vadd.f32 %v4276, 1e-06
    %v4283 = vadd.f32 %v4277, 1e-06
    %v4284 = vadd.f32 %v4278, 1e-06
    %v4285 = vadd.f32 %v4279, 1e-06
    %v4286 = vadd.f32 %v4280, 1e-06
    %v4287 = vadd.f32 %v4281, 1e-06
    %v4288 = vrsqrt.pop %v4282
    %v4289 = vmul.f32 %v4288, %v4282
    %v4290 = vmul.f32 %v4289, %v4288
    %v4291 = vmul.f32 0.5, %v4290
    %v4292 = vsub.f32 1.5, %v4291
    %v4293 = vmul.f32 %v4288, %v4292
    %vm4294 = vweird.f32 %v4282
    %vm4295 = vweird.f32 %v4288
    %vm4296 = vmor %vm4294, %vm4295
    %v4297 = vsel %vm4296, %v4288, %v4293
    %v4298 = vrsqrt.pop %v4283
    %v4299 = vmul.f32 %v4298, %v4283
    %v4300 = vmul.f32 %v4299, %v4298
    %v4301 = vmul.f32 0.5, %v4300
    %v4302 = vsub.f32 1.5, %v4301
    %v4303 = vmul.f32 %v4298, %v4302
    %vm4304 = vweird.f32 %v4283
    %vm4305 = vweird.f32 %v4298
    %vm4306 = vmor %vm4304, %vm4305
    %v4307 = vsel %vm4306, %v4298, %v4303
    %v4308 = vrsqrt.pop %v4284
    %v4309 = vmul.f32 %v4308, %v4284
    %v4310 = vmul.f32 %v4309, %v4308
    %v4311 = vmul.f32 0.5, %v4310
    %v4312 = vsub.f32 1.5, %v4311
    %v4313 = vmul.f32 %v4308, %v4312
    %vm4314 = vweird.f32 %v4284
    %vm4315 = vweird.f32 %v4308
    %vm4316 = vmor %vm4314, %vm4315
    %v4317 = vsel %vm4316, %v4308, %v4313
    %v4318 = vrsqrt.pop %v4285
    %v4319 = vmul.f32 %v4318, %v4285
    %v4320 = vmul.f32 %v4319, %v4318
    %v4321 = vmul.f32 0.5, %v4320
    %v4322 = vsub.f32 1.5, %v4321
    %v4323 = vmul.f32 %v4318, %v4322
    %vm4324 = vweird.f32 %v4285
    %vm4325 = vweird.f32 %v4318
    %vm4326 = vmor %vm4324, %vm4325
    %v4327 = vsel %vm4326, %v4318, %v4323
    %v4328 = vrsqrt.pop %v4286
    %v4329 = vmul.f32 %v4328, %v4286
    %v4330 = vmul.f32 %v4329, %v4328
    %v4331 = vmul.f32 0.5, %v4330
    %v4332 = vsub.f32 1.5, %v4331
    %v4333 = vmul.f32 %v4328, %v4332
    %vm4334 = vweird.f32 %v4286
    %vm4335 = vweird.f32 %v4328
    %vm4336 = vmor %vm4334, %vm4335
    %v4337 = vsel %vm4336, %v4328, %v4333
    %v4338 = vrsqrt.pop %v4287
    %v4339 = vmul.f32 %v4338, %v4287
    %v4340 = vmul.f32 %v4339, %v4338
    %v4341 = vmul.f32 0.5, %v4340
    %v4342 = vsub.f32 1.5, %v4341
    %v4343 = vmul.f32 %v4338, %v4342
    %vm4344 = vweird.f32 %v4287
    %vm4345 = vweird.f32 %v4338
    %vm4346 = vmor %vm4344, %vm4345
    %v4347 = vsel %vm4346, %v4338, %v4343
    %v4348 = vmul.f32 %v4252, %v4297
    %v4349 = vmul.f32 %v4253, %v4307
    %v4350 = vmul.f32 %v4254, %v4317
    %v4351 = vmul.f32 %v4255, %v4327
    %v4352 = vmul.f32 %v4256, %v4337
    %v4353 = vmul.f32 %v4257, %v4347
    %v4354 = vunpack.c.l.bf16 %v4232
    %v4355 = vperm.slane %v4354, 0
    %v4356 = vmul.f32 %v4348, %v4355
    %v4357 = vmul.f32 %v4349, %v4355
    %v4358 = vmul.f32 %v4350, %v4355
    %v4359 = vmul.f32 %v4351, %v4355
    %v4360 = vmul.f32 %v4352, %v4355
    %v4361 = vmul.f32 %v4353, %v4355
    %v4362 = vunpack.c.l.bf16 %v4233
    %v4363 = vperm.slane %v4362, 0
    %v4364 = vadd.f32 %v4356, %v4363
    %v4365 = vadd.f32 %v4357, %v4363
    %v4366 = vadd.f32 %v4358, %v4363
    %v4367 = vadd.f32 %v4359, %v4363
    %v4368 = vadd.f32 %v4360, %v4363
    %v4369 = vadd.f32 %v4361, %v4363
    %4370 = vst [vmem:[#allocation8] sm:$0xff] %v4364
    %4371 = vst [vmem:[#allocation8 + $0x8] sm:$0xff] %v4365
    %4372 = vst [vmem:[#allocation8 + $0x10] sm:$0xff] %v4366
    %4373 = vst [vmem:[#allocation8 + $0x18] sm:$0xff] %v4367
    %4374 = vst [vmem:[#allocation8 + $0x20] sm:$0xff] %v4368
    %4375 = vst [vmem:[#allocation8 + $0x28] sm:$0xff] %v4369
    // Predicated region
    $region26: #{tpu_custom_call.1} parent=1 // pred_check
      _
    $region27: #{tpu_custom_call.1} parent=1 // pred_check_branch
      %4377 = sbr.rel (0) target = $region29
    $region28: #{tpu_custom_call.1} parent=1 // pred_region
      %4379 = vsyncadd [#allocation4], 0
      %s4380 = sshll.u32 [#allocation8], 4
      %s4381 = int_to_ptr.vmem [resolvable:$true] %s4380
      %s4382 = sshll.u32 %s3, 4
      %s4383 = int_to_ptr.hbm [resolvable:$true] %s4382
      %4388 = dma.vmem_to_hbm [thread:$0]  %s4381, 768, %s4383, [#allocation4], 128, 128, 8
    $region29: #{tpu_custom_call.1} parent=1 // pred_fallthru
      _
    // Predicated region
    $region30: #{tpu_custom_call.1} parent=1 // pred_check
      _
    $region31: #{tpu_custom_call.1} parent=1 // pred_check_branch
      %4390 = sbr.rel (0) target = $region33
    $region32: #{tpu_custom_call.1} parent=1 // pred_region
      %4392 = dma.done [#allocation4], 768
    $region33: #{tpu_custom_call.1} parent=1 // pred_fallthru
      _
    %4393 = vsyncpa [#allocation3], 1
    %4394 = vsyncpa [#allocation6], 1
    %4395 = vsyncpa [#allocation4], 1

</llo_original>
